<compile_context>
chip_gen: v5e
topology: v5e:2x2
jax: 0.10.0
libtpu: 0.0.40
codegen_flags: <defaults>
</compile_context>

<pallas_src>
import math

import numpy as np
import jax
import jax.numpy as jnp
from jax import lax
from jax.experimental import pallas as pl
from jax.experimental.pallas import tpu as pltpu

# ----------------------------- configuration ------------------------------ #
BATCH      = 2
EMB        = 40      # emb_size
PROJ       = 40      # proj_size
ENC_DEPTH  = 2       # reduced-depth small config (same kernel, fewer repeats)
DEC_DEPTH  = 1
NUM_Q      = 3       # num_queries
CHANNEL    = 14
SEQ_LEN    = 250
HEADS      = 8
DEC_PTS    = 24      # decoder num_of_points
EXPANSION  = 4
HID1, HID2 = 256, 64
N_LOGITS   = 4       # final nn.Linear(hidden_size_2, 4)
OUT_PAD    = 128     # classifier logits padded to a lane-dense 128 slab

CONV_CH = 40                       # shallownet conv channel count
K_TIME  = 25                       # temporal conv kernel
POOL_W, POOL_S = 75, 15            # AvgPool2d (1,75) stride (1,15)
T1     = SEQ_LEN - K_TIME + 1      # 226 (after (1,25) conv)
N_SEQ  = (T1 - POOL_W) // POOL_S + 1   # 11 tokens after pooling
INV_SCALE = 1.0 / (float(EMB) ** 0.5)  # torch: softmax(energy / sqrt(emb_size))
NEG = -1e30


# --------------------------- in-kernel math ------------------------------- #
def _erf(x):
    # Abramowitz & Stegun 7.1.26 (|err| < 1.5e-7), matches torch's exact GELU.
    a1, a2, a3, a4, a5 = 0.254829592, -0.284496736, 1.421413741, -1.453152027, 1.061405429
    p = 0.3275911
    s = jnp.where(x < 0.0, -1.0, 1.0)
    ax = jnp.abs(x)
    t = 1.0 / (1.0 + p * ax)
    poly = t * (a1 + t * (a2 + t * (a3 + t * (a4 + t * a5))))
    return s * (1.0 - poly * jnp.exp(-ax * ax))


def _gelu(x):
    return 0.5 * x * (1.0 + _erf(x * (1.0 / math.sqrt(2.0))))


def _elu(x):
    return jnp.where(x > 0.0, x, jnp.exp(x) - 1.0)


def _softmax(x):
    m = jnp.max(x, axis=-1, keepdims=True)
    e = jnp.exp(x - m)
    return e * pl.reciprocal(jnp.sum(e, axis=-1, keepdims=True), approx=True)


def _layer_norm(x, g, b, eps=1e-5):
    mu = jnp.mean(x, axis=-1, keepdims=True)
    var = jnp.mean((x - mu) ** 2, axis=-1, keepdims=True)
    return (x - mu) * lax.rsqrt(var + eps) * g + b


# -------- batched multi-head attention (no per-head loop / lane slices) ---- #
def _mha_heads_batched(q, k, v, consts, bias=None):
    """All heads at once: replicate query rows (one row per (query, head)
    pair), mask each row to its head's lane slice, then 4 dense 2-D MXU
    matmuls + one row softmax.  q:(nq,e), k/v:(n,e)."""
    mask_a, csum, csum_t = consts
    q_rep = jnp.dot(csum_t, q, preferred_element_type=jnp.float32) * mask_a   # (rows, e)
    energy = lax.dot_general(q_rep, k, (((1,), (1,)), ((), ())),
                             preferred_element_type=jnp.float32)              # (rows, n)
    energy = energy * INV_SCALE
    if bias is not None:
        energy = energy + bias
    att = _softmax(energy)
    out = jnp.dot(att, v, preferred_element_type=jnp.float32) * mask_a        # (rows, e)
    return jnp.dot(csum, out, preferred_element_type=jnp.float32)             # (nq, e)


def _self_attn_block(x, p, consts, e):
    # x + MHA(LayerNorm(x)); dropout is identity in eval mode
    ln_g, ln_b, wqkv, bqkv, wo, bo = p
    xn = _layer_norm(x, ln_g, ln_b)
    qkv = jnp.dot(xn, wqkv, preferred_element_type=jnp.float32) + bqkv        # (n, 3e)
    q, k, v = qkv[:, 0:e], qkv[:, e:2 * e], qkv[:, 2 * e:3 * e]
    att = _mha_heads_batched(q, k, v, consts)
    return x + jnp.dot(att, wo, preferred_element_type=jnp.float32) + bo


def _ffn_block(x, p):
    # x + Linear(GELU(Linear(LayerNorm(x))))
    ln_g, ln_b, w1, b1, w2, b2 = p
    xn = _layer_norm(x, ln_g, ln_b)
    h = _gelu(jnp.dot(xn, w1, preferred_element_type=jnp.float32) + b1)
    return x + jnp.dot(h, w2, preferred_element_type=jnp.float32) + b2


def _deform_cross(feat, query, p, consts, cross_bias):
    """Deformable cross-attention batched over all object queries.

    pts|w and k|v projections are fused; the nearest-index gather is one
    broadcast compare + one batched one-hot matmul (no lane concat)."""
    wptsw, bptsw, wkv, bkv, wo, bo = p
    n_feat, e = feat.shape
    ptsw = jnp.dot(query, wptsw, preferred_element_type=jnp.float32) + bptsw  # (nq, 2P)
    pts = ptsw[:, 0:DEC_PTS]
    w = _softmax(ptsw[:, DEC_PTS:2 * DEC_PTS])                                # (nq, P)
    # gather indices: floor(sigmoid(.)*n), clamped to n-1 (torch gather safety)
    idx = jnp.minimum(jnp.floor(jax.nn.sigmoid(pts) * n_feat),
                      float(n_feat - 1)).astype(jnp.int32)                    # (nq, P)
    # weighted one-hot selection tensor: sel[q, p, n] = (n == idx[q,p]) * w[q,p]
    n_iota = lax.broadcasted_iota(jnp.int32, (NUM_Q, DEC_PTS, n_feat), 2)
    sel = jnp.where(n_iota == idx[:, :, None], w[:, :, None], 0.0)            # (nq, P, n)
    feat_b = jnp.broadcast_to(feat[None], (NUM_Q, n_feat, e))
    deform = jnp.einsum('qpn,qne->qpe', sel, feat_b,
                        preferred_element_type=jnp.float32)                   # (nq, P, e)
    deform = deform.reshape(NUM_Q * DEC_PTS, e)                               # merge leading dims
    kv = jnp.dot(deform, wkv, preferred_element_type=jnp.float32) + bkv       # (nq*P, 2e)
    k, v = kv[:, 0:e], kv[:, e:2 * e]
    # raw (unprojected) query attends only to its own P deform keys (block bias)
    att = _mha_heads_batched(query, k, v, consts, bias=cross_bias)
    return jnp.dot(att, wo, preferred_element_type=jnp.float32) + bo          # (nq, e)


# ------------------------------ fused kernel ------------------------------- #
def make_fused_kernel(lay_a, lay_b):
    """lay_a / lay_b map name -> (row_offset, rows, cols) inside the two slabs.
    Offsets are Python ints, so every slice below is static."""

    def kernel(xu_ref, slab_a_ref, slab_b_ref, wc1_ref, out_ref):
        def G(name):
            if name in lay_a:
                off, r, c = lay_a[name]
                return slab_a_ref[off:off + r, 0:c]
            off, r, c = lay_b[name]
            return slab_b_ref[off:off + r, 0:c]

        # host-precomputed attention constants
        enc_consts = (G('c_enc_mask'), G('c_enc_csum'), G('c_enc_csum_t'))
        dec_consts = (G('c_dec_mask'), G('c_dec_csum'), G('c_dec_csum_t'))
        cross_bias = G('c_cross_bias')

        # ---- patch embedding: folded convs + folded BN + pooling matmul ----
        xu = xu_ref[0]                                                 # (T1, C*K)
        h = jnp.dot(xu, G('pe_wcomb'), preferred_element_type=jnp.float32) + G('pe_bcomb')
        h = _elu(h * G('pe_bn_scale') + G('pe_bn_shift'))              # BN (eval) + ELU
        pooled = jnp.dot(G('pe_pool_t'), h, preferred_element_type=jnp.float32)   # (N_SEQ, 40)
        feat = jnp.dot(pooled, G('pe_wproj'),
                       preferred_element_type=jnp.float32) + G('pe_bproj')        # (N_SEQ, EMB)

        # ---- encoder --------------------------------------------------------
        for i in range(ENC_DEPTH):
            p = f'enc{i}_'
            feat = _self_attn_block(
                feat,
                (G(p + 'a_ln_g'), G(p + 'a_ln_b'), G(p + 'wqkv'), G(p + 'bqkv'),
                 G(p + 'wo'), G(p + 'bo')),
                enc_consts, EMB)
            feat = _ffn_block(
                feat,
                (G(p + 'f_ln_g'), G(p + 'f_ln_b'), G(p + 'w1'), G(p + 'b1'),
                 G(p + 'w2'), G(p + 'b2')))

        # ---- decoder --------------------------------------------------------
        query = G('obj_query')                                         # (NUM_Q, PROJ)
        for i in range(DEC_DEPTH):
            p = f'dec{i}_'
            query = _self_attn_block(
                query,
                (G(p + 's_ln_g'), G(p + 's_ln_b'), G(p + 's_wqkv'), G(p + 's_bqkv'),
                 G(p + 's_wo'), G(p + 's_bo')),
                dec_consts, PROJ)                                       # p1
            query = _layer_norm(query, G(p + 'ln_g'), G(p + 'ln_b'))
            query = _deform_cross(
                feat, query,
                (G(p + 'wptsw'), G(p + 'bptsw'), G(p + 'wkv'), G(p + 'bkv'),
                 G(p + 'c_wo'), G(p + 'c_bo')),
                dec_consts, cross_bias)                                 # replaces query
            query = _ffn_block(
                query,
                (G(p + 'f_ln_g'), G(p + 'f_ln_b'), G(p + 'f_w1'), G(p + 'f_b1'),
                 G(p + 'f_w2'), G(p + 'f_b2')))                         # p3

        # ---- classification head (flatten = one batched contraction) -------
        h1 = jnp.einsum('qmp,qph->qmh', query[:, None, :], wc1_ref[...],
                        preferred_element_type=jnp.float32)             # (NUM_Q, 1, HID1)
        h1 = _elu(jnp.sum(h1, axis=0) + G('cls_b1'))                    # (1, HID1)
        h2 = _elu(jnp.dot(h1, G('cls_w2'), preferred_element_type=jnp.float32) + G('cls_b2'))
        out_ref[0] = jnp.dot(h2, G('cls_w3'),
                             preferred_element_type=jnp.float32) + G('cls_b3')    # (1, OUT_PAD)

    return kernel


# --------------------------- host-side packing ------------------------------ #
def _mha_consts_np(nq, e, heads):
    d = e // heads
    rows = nq * heads
    head_of_row = np.arange(rows) % heads
    mask_a = (head_of_row[:, None] == (np.arange(e)[None, :] // d)).astype(np.float32)
    csum = ((np.arange(rows)[None, :] // heads) == np.arange(nq)[:, None]).astype(np.float32)
    csum_t = np.ascontiguousarray(csum.T)
    return mask_a, csum, csum_t


def _pack(entries, width):
    """Pack a list of (name, 2-D array) into one (rows, width) slab with
    8-aligned row offsets.  Returns (slab, {name: (off, rows, cols)})."""
    layout, chunks, off = {}, [], 0
    for name, a in entries:
        a = jnp.asarray(a, jnp.float32)
        r, c = a.shape
        assert c <= width, (name, a.shape, width)
        rp = ((r + 7) // 8) * 8
        layout[name] = (off, r, c)
        chunks.append(jnp.pad(a, ((0, rp - r), (0, width - c))))
        off += rp
    return jnp.concatenate(chunks, axis=0), layout


def pack_params(params):
    ents_a, ents_b = [], []
    A = lambda n, a: ents_a.append((n, a))   # 128-lane slab
    B = lambda n, a: ents_b.append((n, a))   # 256-lane slab (wide matrices)

    # attention constants (precomputed on host)
    em, ec, ect = _mha_consts_np(N_SEQ, EMB, HEADS)
    dm, dc, dct = _mha_consts_np(NUM_Q, PROJ, HEADS)
    A('c_enc_mask', em); A('c_enc_csum', ec); A('c_enc_csum_t', ect)
    A('c_dec_mask', dm); A('c_dec_csum', dc); A('c_dec_csum_t', dct)
    rows = NUM_Q * HEADS
    cross_bias = np.where((np.arange(rows)[:, None] // HEADS)
                          == (np.arange(NUM_Q * DEC_PTS)[None, :] // DEC_PTS),
                          0.0, NEG).astype(np.float32)
    A('c_cross_bias', cross_bias)

    pe = params['patch']
    A('pe_wcomb', pe['wcomb']); A('pe_bcomb', pe['bcomb'])
    A('pe_bn_scale', pe['bn_scale']); A('pe_bn_shift', pe['bn_shift'])
    B('pe_pool_t', pe['pool_t'])
    A('pe_wproj', pe['wproj']); A('pe_bproj', pe['bproj'])

    for i, blk in enumerate(params['encoder']):
        p = f'enc{i}_'
        A(p + 'a_ln_g', blk['a_ln_g']); A(p + 'a_ln_b', blk['a_ln_b'])
        A(p + 'wqkv', blk['wqkv']); A(p + 'bqkv', blk['bqkv'])
        A(p + 'wo', blk['wo']); A(p + 'bo', blk['bo'])
        A(p + 'f_ln_g', blk['f_ln_g']); A(p + 'f_ln_b', blk['f_ln_b'])
        B(p + 'w1', blk['w1']); B(p + 'b1', blk['b1'])
        A(p + 'w2', blk['w2']); A(p + 'b2', blk['b2'])

    for i, blk in enumerate(params['decoder']):
        p = f'dec{i}_'
        A(p + 's_ln_g', blk['s_ln_g']); A(p + 's_ln_b', blk['s_ln_b'])
        A(p + 's_wqkv', blk['s_wqkv']); A(p + 's_bqkv', blk['s_bqkv'])
        A(p + 's_wo', blk['s_wo']); A(p + 's_bo', blk['s_bo'])
        A(p + 'ln_g', blk['ln_g']); A(p + 'ln_b', blk['ln_b'])
        # fused fc_pts|fc_w and keys|values projections
        A(p + 'wptsw', jnp.concatenate([blk['wpts'], blk['ww']], axis=1))
        A(p + 'bptsw', jnp.concatenate([blk['bpts'], blk['bw']], axis=1))
        A(p + 'wkv', jnp.concatenate([blk['c_wk'], blk['c_wv']], axis=1))
        A(p + 'bkv', jnp.concatenate([blk['c_bk'], blk['c_bv']], axis=1))
        A(p + 'c_wo', blk['c_wo']); A(p + 'c_bo', blk['c_bo'])
        A(p + 'f_ln_g', blk['f_ln_g']); A(p + 'f_ln_b', blk['f_ln_b'])
        B(p + 'f_w1', blk['f_w1']); B(p + 'f_b1', blk['f_b1'])
        A(p + 'f_w2', blk['f_w2']); A(p + 'f_b2', blk['f_b2'])

    A('obj_query', params['obj_query'])

    cls = params['cls']
    B('cls_b1', cls['b1'])
    A('cls_w2', cls['w2']); A('cls_b2', cls['b2'])
    A('cls_w3', cls['w3']); A('cls_b3', cls['b3'])

    slab_a, lay_a = _pack(ents_a, 128)
    slab_b, lay_b = _pack(ents_b, 256)
    wc1 = jnp.asarray(cls['w1'], jnp.float32)       # (NUM_Q, PROJ, HID1)
    return slab_a, slab_b, wc1, lay_a, lay_b


# --------------------------- pallas_call wrapper ---------------------------- #
def unfold_time(x):
    # x: (bs, 1, C, T) NCHW  ->  (bs, T1, C*K_TIME) im2col for the (1,25) conv
    bs = x.shape[0]
    cols = [x[:, 0, :, k:k + T1] for k in range(K_TIME)]   # each (bs, C, T1)
    xu = jnp.stack(cols, axis=-1)                          # (bs, C, T1, K)
    xu = jnp.transpose(xu, (0, 2, 1, 3))                   # (bs, T1, C, K)
    return xu.reshape(bs, T1, CHANNEL * K_TIME)


def build_forward(lay_a, lay_b):
    kernel = make_fused_kernel(lay_a, lay_b)

    @jax.jit
    def forward(slab_a, slab_b, wc1, x):
        bs = x.shape[0]
        xu = unfold_time(x)
        out = pl.pallas_call(
            kernel,
            out_shape=jax.ShapeDtypeStruct((bs, 1, OUT_PAD), jnp.float32),
            grid=(bs,),
            in_specs=[
                pl.BlockSpec((1, T1, CHANNEL * K_TIME), lambda b: (b, 0, 0)),
                pl.BlockSpec(slab_a.shape, lambda b: (0, 0)),     # constant block -> fetched once
                pl.BlockSpec(slab_b.shape, lambda b: (0, 0)),
                pl.BlockSpec((NUM_Q, PROJ, HID1), lambda b: (0, 0, 0)),
            ],
            out_specs=pl.BlockSpec((1, 1, OUT_PAD), lambda b: (b, 0, 0)),
            compiler_params=pltpu.CompilerParams(
                dimension_semantics=("parallel",)),   # one batch element per TC on v7x
        )(xu, slab_a, slab_b, wc1)
        return out.reshape(bs, OUT_PAD)[:, :N_LOGITS]

    return forward


# ------------------------------- parameters -------------------------------- #
def init_params(key):
    kit = iter(jax.random.split(key, 256))

    def nrm(shape, scale=0.02):
        return scale * jax.random.normal(next(kit), shape, dtype=jnp.float32)

    # PatchEmbedding: Conv2d(1,40,(1,25)) ∘ Conv2d(40,40,(channel,1)) folded
    # into one matmul; BatchNorm folded (eval-mode running stats).
    w1 = nrm((K_TIME, CONV_CH))                 # conv1 weight [k, out]
    b1 = nrm((CONV_CH,))
    w2 = nrm((CONV_CH, CONV_CH, CHANNEL))       # conv2 weight [out, in, channel]
    b2 = nrm((CONV_CH,))
    bn_g = jnp.ones((CONV_CH,), jnp.float32)
    bn_b = jnp.zeros((CONV_CH,), jnp.float32)
    bn_rm = jnp.zeros((CONV_CH,), jnp.float32)
    bn_rv = jnp.ones((CONV_CH,), jnp.float32)
    inv_std = bn_g / jnp.sqrt(bn_rv + 1e-5)
    # AvgPool2d((1,75),(1,15)) as a dense (N_SEQ, T1) matrix of 1/75 entries
    r = jnp.arange(N_SEQ, dtype=jnp.int32)[:, None]
    c = jnp.arange(T1, dtype=jnp.int32)[None, :]
    pool_t = jnp.where((c >= r * POOL_S) & (c < r * POOL_S + POOL_W),
                       1.0 / POOL_W, 0.0).astype(jnp.float32)
    patch = dict(
        wcomb=jnp.einsum('ki,oic->cko', w1, w2).reshape(CHANNEL * K_TIME, CONV_CH),
        bcomb=(jnp.einsum('oic,i->o', w2, b1) + b2).reshape(1, CONV_CH),
        bn_scale=inv_std.reshape(1, CONV_CH),
        bn_shift=(bn_b - bn_rm * inv_std).reshape(1, CONV_CH),
        pool_t=pool_t,
        wproj=nrm((CONV_CH, EMB)),
        bproj=nrm((1, EMB)),
    )

    def enc_block(e):
        return dict(
            a_ln_g=jnp.ones((1, e), jnp.float32), a_ln_b=jnp.zeros((1, e), jnp.float32),
            wqkv=jnp.concatenate([nrm((e, e)) for _ in range(3)], axis=1),   # [Wq|Wk|Wv]
            bqkv=jnp.concatenate([nrm((1, e)) for _ in range(3)], axis=1),
            wo=nrm((e, e)), bo=nrm((1, e)),
            f_ln_g=jnp.ones((1, e), jnp.float32), f_ln_b=jnp.zeros((1, e), jnp.float32),
            w1=nrm((e, EXPANSION * e)), b1=nrm((1, EXPANSION * e)),
            w2=nrm((EXPANSION * e, e)), b2=nrm((1, e)),
        )

    def dec_block(e, npts):
        return dict(
            s_ln_g=jnp.ones((1, e), jnp.float32), s_ln_b=jnp.zeros((1, e), jnp.float32),
            s_wqkv=jnp.concatenate([nrm((e, e)) for _ in range(3)], axis=1),
            s_bqkv=jnp.concatenate([nrm((1, e)) for _ in range(3)], axis=1),
            s_wo=nrm((e, e)), s_bo=nrm((1, e)),
            ln_g=jnp.ones((1, e), jnp.float32), ln_b=jnp.zeros((1, e), jnp.float32),
            wpts=nrm((e, npts)), bpts=nrm((1, npts)),
            ww=nrm((e, npts)), bw=nrm((1, npts)),
            c_wk=nrm((e, e)), c_bk=nrm((1, e)),
            c_wv=nrm((e, e)), c_bv=nrm((1, e)),
            c_wo=nrm((e, e)), c_bo=nrm((1, e)),
            f_ln_g=jnp.ones((1, e), jnp.float32), f_ln_b=jnp.zeros((1, e), jnp.float32),
            f_w1=nrm((e, EXPANSION * e)), f_b1=nrm((1, EXPANSION * e)),
            f_w2=nrm((EXPANSION * e, e)), f_b2=nrm((1, e)),
        )

    cls = dict(
        w1=nrm((PROJ * NUM_Q, HID1)).reshape(NUM_Q, PROJ, HID1),  # pre-split flatten weight
        b1=nrm((1, HID1)),
        w2=nrm((HID1, HID2)), b2=nrm((1, HID2)),
        w3=jnp.pad(nrm((HID2, N_LOGITS)), ((0, 0), (0, OUT_PAD - N_LOGITS))),
        b3=jnp.pad(nrm((1, N_LOGITS)), ((0, 0), (0, OUT_PAD - N_LOGITS))),
    )
    obj_query = jax.random.normal(next(kit), (NUM_Q, PROJ), jnp.float32)
    return dict(patch=patch,
                encoder=[enc_block(EMB) for _ in range(ENC_DEPTH)],
                decoder=[dec_block(PROJ, DEC_PTS) for _ in range(DEC_DEPTH)],
                obj_query=obj_query, cls=cls)


if __name__ == "__main__":
    key = jax.random.PRNGKey(0)
    pkey, xkey = jax.random.split(key)
    params = init_params(pkey)
    slab_a, slab_b, wc1, lay_a, lay_b = pack_params(params)
    forward = build_forward(lay_a, lay_b)

    x = jax.random.normal(xkey, (BATCH, 1, CHANNEL, SEQ_LEN), jnp.float32)
    out = forward(slab_a, slab_b, wc1, x)
    out = jax.block_until_ready(out)
    assert out.shape == (BATCH, N_LOGITS) and out.dtype == jnp.float32
    print("KERNEL_OK")
</pallas_src>

<mosaic_0001>
module attributes {stable_mosaic.version = 11 : i64} {
  func.func @kernel(%arg0: i32, %arg1: memref<1x226x350xf32, #tpu.memory_space<vmem>>, %arg2: memref<2088x128xf32, #tpu.memory_space<vmem>>, %arg3: memref<168x256xf32, #tpu.memory_space<vmem>>, %arg4: memref<3x40x256xf32, #tpu.memory_space<vmem>>, %arg5: memref<1x1x128xf32, #tpu.memory_space<vmem>>) attributes {dimension_semantics = [#tpu.dimension_semantics<parallel>], iteration_bounds = array<i64: 2>, scalar_prefetch = 0 : i64, scratch_operands = 0 : i64, tpu.core_type = #tpu.core_type<tc>, window_params = [{transform_indices = @transform_0, window_bounds = array<i64: 1, 226, 350>}, {pipeline_mode = #tpu.pipeline_mode<synchronous>, transform_indices = @transform_1, window_bounds = array<i64: 2088, 128>}, {pipeline_mode = #tpu.pipeline_mode<synchronous>, transform_indices = @transform_2, window_bounds = array<i64: 168, 256>}, {pipeline_mode = #tpu.pipeline_mode<synchronous>, transform_indices = @transform_3, window_bounds = array<i64: 3, 40, 256>}, {transform_indices = @transform_4, window_bounds = array<i64: 1, 1, 128>}]} {
    %c0 = arith.constant 0 : index
    %c0_0 = arith.constant 0 : index
    %0 = vector.load %arg2[%c0, %c0_0] : memref<2088x128xf32, #tpu.memory_space<vmem>>, vector<88x40xf32>
    %c88 = arith.constant 88 : index
    %c0_1 = arith.constant 0 : index
    %1 = vector.load %arg2[%c88, %c0_1] : memref<2088x128xf32, #tpu.memory_space<vmem>>, vector<11x88xf32>
    %c104 = arith.constant 104 : index
    %c0_2 = arith.constant 0 : index
    %2 = vector.load %arg2[%c104, %c0_2] : memref<2088x128xf32, #tpu.memory_space<vmem>>, vector<88x11xf32>
    %c192 = arith.constant 192 : index
    %c0_3 = arith.constant 0 : index
    %3 = vector.load %arg2[%c192, %c0_3] : memref<2088x128xf32, #tpu.memory_space<vmem>>, vector<24x40xf32>
    %c216 = arith.constant 216 : index
    %c0_4 = arith.constant 0 : index
    %4 = vector.load %arg2[%c216, %c0_4] : memref<2088x128xf32, #tpu.memory_space<vmem>>, vector<3x24xf32>
    %c224 = arith.constant 224 : index
    %c0_5 = arith.constant 0 : index
    %5 = vector.load %arg2[%c224, %c0_5] : memref<2088x128xf32, #tpu.memory_space<vmem>>, vector<24x3xf32>
    %c248 = arith.constant 248 : index
    %c0_6 = arith.constant 0 : index
    %6 = vector.load %arg2[%c248, %c0_6] : memref<2088x128xf32, #tpu.memory_space<vmem>>, vector<24x72xf32>
    %c0_7 = arith.constant 0 : index
    %c0_8 = arith.constant 0 : index
    %c0_9 = arith.constant 0 : index
    %7 = vector.load %arg1[%c0_7, %c0_8, %c0_9] : memref<1x226x350xf32, #tpu.memory_space<vmem>>, vector<1x226x350xf32>
    %8 = vector.shape_cast %7 : vector<1x226x350xf32> to vector<226x350xf32>
    %c272 = arith.constant 272 : index
    %c0_10 = arith.constant 0 : index
    %9 = vector.load %arg2[%c272, %c0_10] : memref<2088x128xf32, #tpu.memory_space<vmem>>, vector<350x40xf32>
    %cst = arith.constant dense<0.000000e+00> : vector<226x40xf32>
    %10 = tpu.matmul %8, %9, %cst {dimension_numbers = #tpu.dot_dimension_numbers<[1], [0], [0], [1], [0, 0, 1, 1], [], []>} : vector<226x350xf32>, vector<350x40xf32>, vector<226x40xf32> -> vector<226x40xf32>
    %c624 = arith.constant 624 : index
    %c0_11 = arith.constant 0 : index
    %11 = vector.load %arg2[%c624, %c0_11] : memref<2088x128xf32, #tpu.memory_space<vmem>>, vector<1x40xf32>
    %12 = vector.broadcast %11 : vector<1x40xf32> to vector<226x40xf32>
    %13 = arith.addf %10, %12 : vector<226x40xf32>
    %c632 = arith.constant 632 : index
    %c0_12 = arith.constant 0 : index
    %14 = vector.load %arg2[%c632, %c0_12] : memref<2088x128xf32, #tpu.memory_space<vmem>>, vector<1x40xf32>
    %15 = vector.broadcast %14 : vector<1x40xf32> to vector<226x40xf32>
    %16 = arith.mulf %13, %15 : vector<226x40xf32>
    %c640 = arith.constant 640 : index
    %c0_13 = arith.constant 0 : index
    %17 = vector.load %arg2[%c640, %c0_13] : memref<2088x128xf32, #tpu.memory_space<vmem>>, vector<1x40xf32>
    %18 = vector.broadcast %17 : vector<1x40xf32> to vector<226x40xf32>
    %19 = arith.addf %16, %18 : vector<226x40xf32>
    %cst_14 = arith.constant 0.000000e+00 : f32
    %20 = vector.broadcast %cst_14 : f32 to vector<226x40xf32>
    %21 = arith.cmpf ogt, %19, %20 : vector<226x40xf32>
    %22 = math.exp %19 : vector<226x40xf32>
    %cst_15 = arith.constant 1.000000e+00 : f32
    %23 = vector.broadcast %cst_15 : f32 to vector<226x40xf32>
    %24 = arith.subf %22, %23 : vector<226x40xf32>
    %25 = arith.select %21, %19, %24 : vector<226x40xi1>, vector<226x40xf32>
    %c0_16 = arith.constant 0 : index
    %c0_17 = arith.constant 0 : index
    %26 = vector.load %arg3[%c0_16, %c0_17] : memref<168x256xf32, #tpu.memory_space<vmem>>, vector<11x226xf32>
    %cst_18 = arith.constant dense<0.000000e+00> : vector<11x40xf32>
    %27 = tpu.matmul %26, %25, %cst_18 {dimension_numbers = #tpu.dot_dimension_numbers<[1], [0], [0], [1], [0, 0, 1, 1], [], []>} : vector<11x226xf32>, vector<226x40xf32>, vector<11x40xf32> -> vector<11x40xf32>
    %c648 = arith.constant 648 : index
    %c0_19 = arith.constant 0 : index
    %28 = vector.load %arg2[%c648, %c0_19] : memref<2088x128xf32, #tpu.memory_space<vmem>>, vector<40x40xf32>
    %cst_20 = arith.constant dense<0.000000e+00> : vector<11x40xf32>
    %29 = tpu.matmul %27, %28, %cst_20 {dimension_numbers = #tpu.dot_dimension_numbers<[1], [0], [0], [1], [0, 0, 1, 1], [], []>} : vector<11x40xf32>, vector<40x40xf32>, vector<11x40xf32> -> vector<11x40xf32>
    %c688 = arith.constant 688 : index
    %c0_21 = arith.constant 0 : index
    %30 = vector.load %arg2[%c688, %c0_21] : memref<2088x128xf32, #tpu.memory_space<vmem>>, vector<1x40xf32>
    %31 = vector.broadcast %30 : vector<1x40xf32> to vector<11x40xf32>
    %32 = arith.addf %29, %31 : vector<11x40xf32>
    %c696 = arith.constant 696 : index
    %c0_22 = arith.constant 0 : index
    %33 = vector.load %arg2[%c696, %c0_22] : memref<2088x128xf32, #tpu.memory_space<vmem>>, vector<1x40xf32>
    %c704 = arith.constant 704 : index
    %c0_23 = arith.constant 0 : index
    %34 = vector.load %arg2[%c704, %c0_23] : memref<2088x128xf32, #tpu.memory_space<vmem>>, vector<1x40xf32>
    %c712 = arith.constant 712 : index
    %c0_24 = arith.constant 0 : index
    %35 = vector.load %arg2[%c712, %c0_24] : memref<2088x128xf32, #tpu.memory_space<vmem>>, vector<40x120xf32>
    %c752 = arith.constant 752 : index
    %c0_25 = arith.constant 0 : index
    %36 = vector.load %arg2[%c752, %c0_25] : memref<2088x128xf32, #tpu.memory_space<vmem>>, vector<1x120xf32>
    %c760 = arith.constant 760 : index
    %c0_26 = arith.constant 0 : index
    %37 = vector.load %arg2[%c760, %c0_26] : memref<2088x128xf32, #tpu.memory_space<vmem>>, vector<40x40xf32>
    %c800 = arith.constant 800 : index
    %c0_27 = arith.constant 0 : index
    %38 = vector.load %arg2[%c800, %c0_27] : memref<2088x128xf32, #tpu.memory_space<vmem>>, vector<1x40xf32>
    %cst_28 = arith.constant dense<0.000000e+00> : vector<11xf32>
    %39 = vector.multi_reduction <add>, %32, %cst_28 [1] : vector<11x40xf32> to vector<11xf32>
    %40 = vector.shape_cast %39 : vector<11xf32> to vector<11x1xf32>
    %cst_29 = arith.constant 4.000000e+01 : f32
    %41 = vector.broadcast %cst_29 : f32 to vector<11x1xf32>
    %42 = arith.divf %40, %41 : vector<11x1xf32>
    %43 = vector.broadcast %42 : vector<11x1xf32> to vector<11x40xf32>
    %44 = arith.subf %32, %43 : vector<11x40xf32>
    %45 = arith.mulf %44, %44 : vector<11x40xf32>
    %cst_30 = arith.constant dense<0.000000e+00> : vector<11xf32>
    %46 = vector.multi_reduction <add>, %45, %cst_30 [1] : vector<11x40xf32> to vector<11xf32>
    %47 = vector.shape_cast %46 : vector<11xf32> to vector<11x1xf32>
    %cst_31 = arith.constant 4.000000e+01 : f32
    %48 = vector.broadcast %cst_31 : f32 to vector<11x1xf32>
    %49 = arith.divf %47, %48 : vector<11x1xf32>
    %50 = vector.broadcast %42 : vector<11x1xf32> to vector<11x40xf32>
    %51 = arith.subf %32, %50 : vector<11x40xf32>
    %cst_32 = arith.constant 9.99999974E-6 : f32
    %52 = vector.broadcast %cst_32 : f32 to vector<11x1xf32>
    %53 = arith.addf %49, %52 : vector<11x1xf32>
    %54 = math.rsqrt %53 : vector<11x1xf32>
    %55 = vector.broadcast %54 : vector<11x1xf32> to vector<11x40xf32>
    %56 = arith.mulf %51, %55 : vector<11x40xf32>
    %57 = vector.broadcast %33 : vector<1x40xf32> to vector<11x40xf32>
    %58 = arith.mulf %56, %57 : vector<11x40xf32>
    %59 = vector.broadcast %34 : vector<1x40xf32> to vector<11x40xf32>
    %60 = arith.addf %58, %59 : vector<11x40xf32>
    %cst_33 = arith.constant dense<0.000000e+00> : vector<11x120xf32>
    %61 = tpu.matmul %60, %35, %cst_33 {dimension_numbers = #tpu.dot_dimension_numbers<[1], [0], [0], [1], [0, 0, 1, 1], [], []>} : vector<11x40xf32>, vector<40x120xf32>, vector<11x120xf32> -> vector<11x120xf32>
    %62 = vector.broadcast %36 : vector<1x120xf32> to vector<11x120xf32>
    %63 = arith.addf %61, %62 : vector<11x120xf32>
    %64 = vector.extract_strided_slice %63 {offsets = [0, 0], sizes = [11, 40], strides = [1, 1]} : vector<11x120xf32> to vector<11x40xf32>
    %65 = vector.extract_strided_slice %63 {offsets = [0, 40], sizes = [11, 40], strides = [1, 1]} : vector<11x120xf32> to vector<11x40xf32>
    %66 = vector.extract_strided_slice %63 {offsets = [0, 80], sizes = [11, 40], strides = [1, 1]} : vector<11x120xf32> to vector<11x40xf32>
    %cst_34 = arith.constant dense<0.000000e+00> : vector<88x40xf32>
    %67 = tpu.matmul %2, %64, %cst_34 {dimension_numbers = #tpu.dot_dimension_numbers<[1], [0], [0], [1], [0, 0, 1, 1], [], []>} : vector<88x11xf32>, vector<11x40xf32>, vector<88x40xf32> -> vector<88x40xf32>
    %68 = arith.mulf %67, %0 : vector<88x40xf32>
    %cst_35 = arith.constant dense<0.000000e+00> : vector<88x11xf32>
    %69 = tpu.matmul %68, %65, %cst_35 {dimension_numbers = #tpu.dot_dimension_numbers<[1], [1], [0], [0], [0, 0, 1, 0], [], []>} : vector<88x40xf32>, vector<11x40xf32>, vector<88x11xf32> -> vector<88x11xf32>
    %cst_36 = arith.constant 0.158113882 : f32
    %70 = vector.broadcast %cst_36 : f32 to vector<88x11xf32>
    %71 = arith.mulf %69, %70 : vector<88x11xf32>
    %cst_37 = arith.constant dense<0xFF800000> : vector<88xf32>
    %72 = vector.multi_reduction <maximumf>, %71, %cst_37 [1] : vector<88x11xf32> to vector<88xf32>
    %73 = vector.shape_cast %72 : vector<88xf32> to vector<88x1xf32>
    %74 = vector.broadcast %73 : vector<88x1xf32> to vector<88x11xf32>
    %75 = arith.subf %71, %74 : vector<88x11xf32>
    %76 = math.exp %75 : vector<88x11xf32>
    %cst_38 = arith.constant dense<0.000000e+00> : vector<88xf32>
    %77 = vector.multi_reduction <add>, %76, %cst_38 [1] : vector<88x11xf32> to vector<88xf32>
    %78 = vector.shape_cast %77 : vector<88xf32> to vector<88x1xf32>
    %79 = tpu.reciprocal %78 {approx = true} : vector<88x1xf32> -> vector<88x1xf32>
    %80 = vector.broadcast %79 : vector<88x1xf32> to vector<88x11xf32>
    %81 = arith.mulf %76, %80 : vector<88x11xf32>
    %cst_39 = arith.constant dense<0.000000e+00> : vector<88x40xf32>
    %82 = tpu.matmul %81, %66, %cst_39 {dimension_numbers = #tpu.dot_dimension_numbers<[1], [0], [0], [1], [0, 0, 1, 1], [], []>} : vector<88x11xf32>, vector<11x40xf32>, vector<88x40xf32> -> vector<88x40xf32>
    %83 = arith.mulf %82, %0 : vector<88x40xf32>
    %cst_40 = arith.constant dense<0.000000e+00> : vector<11x40xf32>
    %84 = tpu.matmul %1, %83, %cst_40 {dimension_numbers = #tpu.dot_dimension_numbers<[1], [0], [0], [1], [0, 0, 1, 1], [], []>} : vector<11x88xf32>, vector<88x40xf32>, vector<11x40xf32> -> vector<11x40xf32>
    %cst_41 = arith.constant dense<0.000000e+00> : vector<11x40xf32>
    %85 = tpu.matmul %84, %37, %cst_41 {dimension_numbers = #tpu.dot_dimension_numbers<[1], [0], [0], [1], [0, 0, 1, 1], [], []>} : vector<11x40xf32>, vector<40x40xf32>, vector<11x40xf32> -> vector<11x40xf32>
    %86 = arith.addf %32, %85 : vector<11x40xf32>
    %87 = vector.broadcast %38 : vector<1x40xf32> to vector<11x40xf32>
    %88 = arith.addf %86, %87 : vector<11x40xf32>
    %c808 = arith.constant 808 : index
    %c0_42 = arith.constant 0 : index
    %89 = vector.load %arg2[%c808, %c0_42] : memref<2088x128xf32, #tpu.memory_space<vmem>>, vector<1x40xf32>
    %c816 = arith.constant 816 : index
    %c0_43 = arith.constant 0 : index
    %90 = vector.load %arg2[%c816, %c0_43] : memref<2088x128xf32, #tpu.memory_space<vmem>>, vector<1x40xf32>
    %c16 = arith.constant 16 : index
    %c0_44 = arith.constant 0 : index
    %91 = vector.load %arg3[%c16, %c0_44] : memref<168x256xf32, #tpu.memory_space<vmem>>, vector<40x160xf32>
    %c56 = arith.constant 56 : index
    %c0_45 = arith.constant 0 : index
    %92 = vector.load %arg3[%c56, %c0_45] : memref<168x256xf32, #tpu.memory_space<vmem>>, vector<1x160xf32>
    %c824 = arith.constant 824 : index
    %c0_46 = arith.constant 0 : index
    %93 = vector.load %arg2[%c824, %c0_46] : memref<2088x128xf32, #tpu.memory_space<vmem>>, vector<160x40xf32>
    %c984 = arith.constant 984 : index
    %c0_47 = arith.constant 0 : index
    %94 = vector.load %arg2[%c984, %c0_47] : memref<2088x128xf32, #tpu.memory_space<vmem>>, vector<1x40xf32>
    %cst_48 = arith.constant dense<0.000000e+00> : vector<11xf32>
    %95 = vector.multi_reduction <add>, %88, %cst_48 [1] : vector<11x40xf32> to vector<11xf32>
    %96 = vector.shape_cast %95 : vector<11xf32> to vector<11x1xf32>
    %cst_49 = arith.constant 4.000000e+01 : f32
    %97 = vector.broadcast %cst_49 : f32 to vector<11x1xf32>
    %98 = arith.divf %96, %97 : vector<11x1xf32>
    %99 = vector.broadcast %98 : vector<11x1xf32> to vector<11x40xf32>
    %100 = arith.subf %88, %99 : vector<11x40xf32>
    %101 = arith.mulf %100, %100 : vector<11x40xf32>
    %cst_50 = arith.constant dense<0.000000e+00> : vector<11xf32>
    %102 = vector.multi_reduction <add>, %101, %cst_50 [1] : vector<11x40xf32> to vector<11xf32>
    %103 = vector.shape_cast %102 : vector<11xf32> to vector<11x1xf32>
    %cst_51 = arith.constant 4.000000e+01 : f32
    %104 = vector.broadcast %cst_51 : f32 to vector<11x1xf32>
    %105 = arith.divf %103, %104 : vector<11x1xf32>
    %106 = vector.broadcast %98 : vector<11x1xf32> to vector<11x40xf32>
    %107 = arith.subf %88, %106 : vector<11x40xf32>
    %cst_52 = arith.constant 9.99999974E-6 : f32
    %108 = vector.broadcast %cst_52 : f32 to vector<11x1xf32>
    %109 = arith.addf %105, %108 : vector<11x1xf32>
    %110 = math.rsqrt %109 : vector<11x1xf32>
    %111 = vector.broadcast %110 : vector<11x1xf32> to vector<11x40xf32>
    %112 = arith.mulf %107, %111 : vector<11x40xf32>
    %113 = vector.broadcast %89 : vector<1x40xf32> to vector<11x40xf32>
    %114 = arith.mulf %112, %113 : vector<11x40xf32>
    %115 = vector.broadcast %90 : vector<1x40xf32> to vector<11x40xf32>
    %116 = arith.addf %114, %115 : vector<11x40xf32>
    %cst_53 = arith.constant dense<0.000000e+00> : vector<11x160xf32>
    %117 = tpu.matmul %116, %91, %cst_53 {dimension_numbers = #tpu.dot_dimension_numbers<[1], [0], [0], [1], [0, 0, 1, 1], [], []>} : vector<11x40xf32>, vector<40x160xf32>, vector<11x160xf32> -> vector<11x160xf32>
    %118 = vector.broadcast %92 : vector<1x160xf32> to vector<11x160xf32>
    %119 = arith.addf %117, %118 : vector<11x160xf32>
    %cst_54 = arith.constant 5.000000e-01 : f32
    %120 = vector.broadcast %cst_54 : f32 to vector<11x160xf32>
    %121 = arith.mulf %120, %119 : vector<11x160xf32>
    %cst_55 = arith.constant 0.707106769 : f32
    %122 = vector.broadcast %cst_55 : f32 to vector<11x160xf32>
    %123 = arith.mulf %119, %122 : vector<11x160xf32>
    %cst_56 = arith.constant 0.000000e+00 : f32
    %124 = vector.broadcast %cst_56 : f32 to vector<11x160xf32>
    %125 = arith.cmpf olt, %123, %124 : vector<11x160xf32>
    %cst_57 = arith.constant -1.000000e+00 : f32
    %cst_58 = arith.constant 1.000000e+00 : f32
    %126 = vector.broadcast %cst_57 : f32 to vector<11x160xf32>
    %127 = vector.broadcast %cst_58 : f32 to vector<11x160xf32>
    %128 = arith.select %125, %126, %127 : vector<11x160xi1>, vector<11x160xf32>
    %129 = math.absf %123 : vector<11x160xf32>
    %cst_59 = arith.constant 0.327591091 : f32
    %130 = vector.broadcast %cst_59 : f32 to vector<11x160xf32>
    %131 = arith.mulf %130, %129 : vector<11x160xf32>
    %cst_60 = arith.constant 1.000000e+00 : f32
    %132 = vector.broadcast %cst_60 : f32 to vector<11x160xf32>
    %133 = arith.addf %132, %131 : vector<11x160xf32>
    %cst_61 = arith.constant 1.000000e+00 : f32
    %134 = vector.broadcast %cst_61 : f32 to vector<11x160xf32>
    %135 = arith.divf %134, %133 : vector<11x160xf32>
    %cst_62 = arith.constant 1.06140542 : f32
    %136 = vector.broadcast %cst_62 : f32 to vector<11x160xf32>
    %137 = arith.mulf %135, %136 : vector<11x160xf32>
    %cst_63 = arith.constant -1.45315206 : f32
    %138 = vector.broadcast %cst_63 : f32 to vector<11x160xf32>
    %139 = arith.addf %138, %137 : vector<11x160xf32>
    %140 = arith.mulf %135, %139 : vector<11x160xf32>
    %cst_64 = arith.constant 1.42141378 : f32
    %141 = vector.broadcast %cst_64 : f32 to vector<11x160xf32>
    %142 = arith.addf %141, %140 : vector<11x160xf32>
    %143 = arith.mulf %135, %142 : vector<11x160xf32>
    %cst_65 = arith.constant -0.284496725 : f32
    %144 = vector.broadcast %cst_65 : f32 to vector<11x160xf32>
    %145 = arith.addf %144, %143 : vector<11x160xf32>
    %146 = arith.mulf %135, %145 : vector<11x160xf32>
    %cst_66 = arith.constant 0.254829586 : f32
    %147 = vector.broadcast %cst_66 : f32 to vector<11x160xf32>
    %148 = arith.addf %147, %146 : vector<11x160xf32>
    %149 = arith.mulf %135, %148 : vector<11x160xf32>
    %cst_67 = arith.constant 0.000000e+00 : f32
    %150 = vector.broadcast %cst_67 : f32 to vector<11x160xf32>
    %151 = arith.subf %150, %129 : vector<11x160xf32>
    %152 = arith.mulf %151, %129 : vector<11x160xf32>
    %153 = math.exp %152 : vector<11x160xf32>
    %154 = arith.mulf %149, %153 : vector<11x160xf32>
    %cst_68 = arith.constant 1.000000e+00 : f32
    %155 = vector.broadcast %cst_68 : f32 to vector<11x160xf32>
    %156 = arith.subf %155, %154 : vector<11x160xf32>
    %157 = arith.mulf %128, %156 : vector<11x160xf32>
    %cst_69 = arith.constant 1.000000e+00 : f32
    %158 = vector.broadcast %cst_69 : f32 to vector<11x160xf32>
    %159 = arith.addf %158, %157 : vector<11x160xf32>
    %160 = arith.mulf %121, %159 : vector<11x160xf32>
    %cst_70 = arith.constant dense<0.000000e+00> : vector<11x40xf32>
    %161 = tpu.matmul %160, %93, %cst_70 {dimension_numbers = #tpu.dot_dimension_numbers<[1], [0], [0], [1], [0, 0, 1, 1], [], []>} : vector<11x160xf32>, vector<160x40xf32>, vector<11x40xf32> -> vector<11x40xf32>
    %162 = arith.addf %88, %161 : vector<11x40xf32>
    %163 = vector.broadcast %94 : vector<1x40xf32> to vector<11x40xf32>
    %164 = arith.addf %162, %163 : vector<11x40xf32>
    %c992 = arith.constant 992 : index
    %c0_71 = arith.constant 0 : index
    %165 = vector.load %arg2[%c992, %c0_71] : memref<2088x128xf32, #tpu.memory_space<vmem>>, vector<1x40xf32>
    %c1000 = arith.constant 1000 : index
    %c0_72 = arith.constant 0 : index
    %166 = vector.load %arg2[%c1000, %c0_72] : memref<2088x128xf32, #tpu.memory_space<vmem>>, vector<1x40xf32>
    %c1008 = arith.constant 1008 : index
    %c0_73 = arith.constant 0 : index
    %167 = vector.load %arg2[%c1008, %c0_73] : memref<2088x128xf32, #tpu.memory_space<vmem>>, vector<40x120xf32>
    %c1048 = arith.constant 1048 : index
    %c0_74 = arith.constant 0 : index
    %168 = vector.load %arg2[%c1048, %c0_74] : memref<2088x128xf32, #tpu.memory_space<vmem>>, vector<1x120xf32>
    %c1056 = arith.constant 1056 : index
    %c0_75 = arith.constant 0 : index
    %169 = vector.load %arg2[%c1056, %c0_75] : memref<2088x128xf32, #tpu.memory_space<vmem>>, vector<40x40xf32>
    %c1096 = arith.constant 1096 : index
    %c0_76 = arith.constant 0 : index
    %170 = vector.load %arg2[%c1096, %c0_76] : memref<2088x128xf32, #tpu.memory_space<vmem>>, vector<1x40xf32>
    %cst_77 = arith.constant dense<0.000000e+00> : vector<11xf32>
    %171 = vector.multi_reduction <add>, %164, %cst_77 [1] : vector<11x40xf32> to vector<11xf32>
    %172 = vector.shape_cast %171 : vector<11xf32> to vector<11x1xf32>
    %cst_78 = arith.constant 4.000000e+01 : f32
    %173 = vector.broadcast %cst_78 : f32 to vector<11x1xf32>
    %174 = arith.divf %172, %173 : vector<11x1xf32>
    %175 = vector.broadcast %174 : vector<11x1xf32> to vector<11x40xf32>
    %176 = arith.subf %164, %175 : vector<11x40xf32>
    %177 = arith.mulf %176, %176 : vector<11x40xf32>
    %cst_79 = arith.constant dense<0.000000e+00> : vector<11xf32>
    %178 = vector.multi_reduction <add>, %177, %cst_79 [1] : vector<11x40xf32> to vector<11xf32>
    %179 = vector.shape_cast %178 : vector<11xf32> to vector<11x1xf32>
    %cst_80 = arith.constant 4.000000e+01 : f32
    %180 = vector.broadcast %cst_80 : f32 to vector<11x1xf32>
    %181 = arith.divf %179, %180 : vector<11x1xf32>
    %182 = vector.broadcast %174 : vector<11x1xf32> to vector<11x40xf32>
    %183 = arith.subf %164, %182 : vector<11x40xf32>
    %cst_81 = arith.constant 9.99999974E-6 : f32
    %184 = vector.broadcast %cst_81 : f32 to vector<11x1xf32>
    %185 = arith.addf %181, %184 : vector<11x1xf32>
    %186 = math.rsqrt %185 : vector<11x1xf32>
    %187 = vector.broadcast %186 : vector<11x1xf32> to vector<11x40xf32>
    %188 = arith.mulf %183, %187 : vector<11x40xf32>
    %189 = vector.broadcast %165 : vector<1x40xf32> to vector<11x40xf32>
    %190 = arith.mulf %188, %189 : vector<11x40xf32>
    %191 = vector.broadcast %166 : vector<1x40xf32> to vector<11x40xf32>
    %192 = arith.addf %190, %191 : vector<11x40xf32>
    %cst_82 = arith.constant dense<0.000000e+00> : vector<11x120xf32>
    %193 = tpu.matmul %192, %167, %cst_82 {dimension_numbers = #tpu.dot_dimension_numbers<[1], [0], [0], [1], [0, 0, 1, 1], [], []>} : vector<11x40xf32>, vector<40x120xf32>, vector<11x120xf32> -> vector<11x120xf32>
    %194 = vector.broadcast %168 : vector<1x120xf32> to vector<11x120xf32>
    %195 = arith.addf %193, %194 : vector<11x120xf32>
    %196 = vector.extract_strided_slice %195 {offsets = [0, 0], sizes = [11, 40], strides = [1, 1]} : vector<11x120xf32> to vector<11x40xf32>
    %197 = vector.extract_strided_slice %195 {offsets = [0, 40], sizes = [11, 40], strides = [1, 1]} : vector<11x120xf32> to vector<11x40xf32>
    %198 = vector.extract_strided_slice %195 {offsets = [0, 80], sizes = [11, 40], strides = [1, 1]} : vector<11x120xf32> to vector<11x40xf32>
    %cst_83 = arith.constant dense<0.000000e+00> : vector<88x40xf32>
    %199 = tpu.matmul %2, %196, %cst_83 {dimension_numbers = #tpu.dot_dimension_numbers<[1], [0], [0], [1], [0, 0, 1, 1], [], []>} : vector<88x11xf32>, vector<11x40xf32>, vector<88x40xf32> -> vector<88x40xf32>
    %200 = arith.mulf %199, %0 : vector<88x40xf32>
    %cst_84 = arith.constant dense<0.000000e+00> : vector<88x11xf32>
    %201 = tpu.matmul %200, %197, %cst_84 {dimension_numbers = #tpu.dot_dimension_numbers<[1], [1], [0], [0], [0, 0, 1, 0], [], []>} : vector<88x40xf32>, vector<11x40xf32>, vector<88x11xf32> -> vector<88x11xf32>
    %cst_85 = arith.constant 0.158113882 : f32
    %202 = vector.broadcast %cst_85 : f32 to vector<88x11xf32>
    %203 = arith.mulf %201, %202 : vector<88x11xf32>
    %cst_86 = arith.constant dense<0xFF800000> : vector<88xf32>
    %204 = vector.multi_reduction <maximumf>, %203, %cst_86 [1] : vector<88x11xf32> to vector<88xf32>
    %205 = vector.shape_cast %204 : vector<88xf32> to vector<88x1xf32>
    %206 = vector.broadcast %205 : vector<88x1xf32> to vector<88x11xf32>
    %207 = arith.subf %203, %206 : vector<88x11xf32>
    %208 = math.exp %207 : vector<88x11xf32>
    %cst_87 = arith.constant dense<0.000000e+00> : vector<88xf32>
    %209 = vector.multi_reduction <add>, %208, %cst_87 [1] : vector<88x11xf32> to vector<88xf32>
    %210 = vector.shape_cast %209 : vector<88xf32> to vector<88x1xf32>
    %211 = tpu.reciprocal %210 {approx = true} : vector<88x1xf32> -> vector<88x1xf32>
    %212 = vector.broadcast %211 : vector<88x1xf32> to vector<88x11xf32>
    %213 = arith.mulf %208, %212 : vector<88x11xf32>
    %cst_88 = arith.constant dense<0.000000e+00> : vector<88x40xf32>
    %214 = tpu.matmul %213, %198, %cst_88 {dimension_numbers = #tpu.dot_dimension_numbers<[1], [0], [0], [1], [0, 0, 1, 1], [], []>} : vector<88x11xf32>, vector<11x40xf32>, vector<88x40xf32> -> vector<88x40xf32>
    %215 = arith.mulf %214, %0 : vector<88x40xf32>
    %cst_89 = arith.constant dense<0.000000e+00> : vector<11x40xf32>
    %216 = tpu.matmul %1, %215, %cst_89 {dimension_numbers = #tpu.dot_dimension_numbers<[1], [0], [0], [1], [0, 0, 1, 1], [], []>} : vector<11x88xf32>, vector<88x40xf32>, vector<11x40xf32> -> vector<11x40xf32>
    %cst_90 = arith.constant dense<0.000000e+00> : vector<11x40xf32>
    %217 = tpu.matmul %216, %169, %cst_90 {dimension_numbers = #tpu.dot_dimension_numbers<[1], [0], [0], [1], [0, 0, 1, 1], [], []>} : vector<11x40xf32>, vector<40x40xf32>, vector<11x40xf32> -> vector<11x40xf32>
    %218 = arith.addf %164, %217 : vector<11x40xf32>
    %219 = vector.broadcast %170 : vector<1x40xf32> to vector<11x40xf32>
    %220 = arith.addf %218, %219 : vector<11x40xf32>
    %c1104 = arith.constant 1104 : index
    %c0_91 = arith.constant 0 : index
    %221 = vector.load %arg2[%c1104, %c0_91] : memref<2088x128xf32, #tpu.memory_space<vmem>>, vector<1x40xf32>
    %c1112 = arith.constant 1112 : index
    %c0_92 = arith.constant 0 : index
    %222 = vector.load %arg2[%c1112, %c0_92] : memref<2088x128xf32, #tpu.memory_space<vmem>>, vector<1x40xf32>
    %c64 = arith.constant 64 : index
    %c0_93 = arith.constant 0 : index
    %223 = vector.load %arg3[%c64, %c0_93] : memref<168x256xf32, #tpu.memory_space<vmem>>, vector<40x160xf32>
    %c104_94 = arith.constant 104 : index
    %c0_95 = arith.constant 0 : index
    %224 = vector.load %arg3[%c104_94, %c0_95] : memref<168x256xf32, #tpu.memory_space<vmem>>, vector<1x160xf32>
    %c1120 = arith.constant 1120 : index
    %c0_96 = arith.constant 0 : index
    %225 = vector.load %arg2[%c1120, %c0_96] : memref<2088x128xf32, #tpu.memory_space<vmem>>, vector<160x40xf32>
    %c1280 = arith.constant 1280 : index
    %c0_97 = arith.constant 0 : index
    %226 = vector.load %arg2[%c1280, %c0_97] : memref<2088x128xf32, #tpu.memory_space<vmem>>, vector<1x40xf32>
    %cst_98 = arith.constant dense<0.000000e+00> : vector<11xf32>
    %227 = vector.multi_reduction <add>, %220, %cst_98 [1] : vector<11x40xf32> to vector<11xf32>
    %228 = vector.shape_cast %227 : vector<11xf32> to vector<11x1xf32>
    %cst_99 = arith.constant 4.000000e+01 : f32
    %229 = vector.broadcast %cst_99 : f32 to vector<11x1xf32>
    %230 = arith.divf %228, %229 : vector<11x1xf32>
    %231 = vector.broadcast %230 : vector<11x1xf32> to vector<11x40xf32>
    %232 = arith.subf %220, %231 : vector<11x40xf32>
    %233 = arith.mulf %232, %232 : vector<11x40xf32>
    %cst_100 = arith.constant dense<0.000000e+00> : vector<11xf32>
    %234 = vector.multi_reduction <add>, %233, %cst_100 [1] : vector<11x40xf32> to vector<11xf32>
    %235 = vector.shape_cast %234 : vector<11xf32> to vector<11x1xf32>
    %cst_101 = arith.constant 4.000000e+01 : f32
    %236 = vector.broadcast %cst_101 : f32 to vector<11x1xf32>
    %237 = arith.divf %235, %236 : vector<11x1xf32>
    %238 = vector.broadcast %230 : vector<11x1xf32> to vector<11x40xf32>
    %239 = arith.subf %220, %238 : vector<11x40xf32>
    %cst_102 = arith.constant 9.99999974E-6 : f32
    %240 = vector.broadcast %cst_102 : f32 to vector<11x1xf32>
    %241 = arith.addf %237, %240 : vector<11x1xf32>
    %242 = math.rsqrt %241 : vector<11x1xf32>
    %243 = vector.broadcast %242 : vector<11x1xf32> to vector<11x40xf32>
    %244 = arith.mulf %239, %243 : vector<11x40xf32>
    %245 = vector.broadcast %221 : vector<1x40xf32> to vector<11x40xf32>
    %246 = arith.mulf %244, %245 : vector<11x40xf32>
    %247 = vector.broadcast %222 : vector<1x40xf32> to vector<11x40xf32>
    %248 = arith.addf %246, %247 : vector<11x40xf32>
    %cst_103 = arith.constant dense<0.000000e+00> : vector<11x160xf32>
    %249 = tpu.matmul %248, %223, %cst_103 {dimension_numbers = #tpu.dot_dimension_numbers<[1], [0], [0], [1], [0, 0, 1, 1], [], []>} : vector<11x40xf32>, vector<40x160xf32>, vector<11x160xf32> -> vector<11x160xf32>
    %250 = vector.broadcast %224 : vector<1x160xf32> to vector<11x160xf32>
    %251 = arith.addf %249, %250 : vector<11x160xf32>
    %cst_104 = arith.constant 5.000000e-01 : f32
    %252 = vector.broadcast %cst_104 : f32 to vector<11x160xf32>
    %253 = arith.mulf %252, %251 : vector<11x160xf32>
    %cst_105 = arith.constant 0.707106769 : f32
    %254 = vector.broadcast %cst_105 : f32 to vector<11x160xf32>
    %255 = arith.mulf %251, %254 : vector<11x160xf32>
    %cst_106 = arith.constant 0.000000e+00 : f32
    %256 = vector.broadcast %cst_106 : f32 to vector<11x160xf32>
    %257 = arith.cmpf olt, %255, %256 : vector<11x160xf32>
    %cst_107 = arith.constant -1.000000e+00 : f32
    %cst_108 = arith.constant 1.000000e+00 : f32
    %258 = vector.broadcast %cst_107 : f32 to vector<11x160xf32>
    %259 = vector.broadcast %cst_108 : f32 to vector<11x160xf32>
    %260 = arith.select %257, %258, %259 : vector<11x160xi1>, vector<11x160xf32>
    %261 = math.absf %255 : vector<11x160xf32>
    %cst_109 = arith.constant 0.327591091 : f32
    %262 = vector.broadcast %cst_109 : f32 to vector<11x160xf32>
    %263 = arith.mulf %262, %261 : vector<11x160xf32>
    %cst_110 = arith.constant 1.000000e+00 : f32
    %264 = vector.broadcast %cst_110 : f32 to vector<11x160xf32>
    %265 = arith.addf %264, %263 : vector<11x160xf32>
    %cst_111 = arith.constant 1.000000e+00 : f32
    %266 = vector.broadcast %cst_111 : f32 to vector<11x160xf32>
    %267 = arith.divf %266, %265 : vector<11x160xf32>
    %cst_112 = arith.constant 1.06140542 : f32
    %268 = vector.broadcast %cst_112 : f32 to vector<11x160xf32>
    %269 = arith.mulf %267, %268 : vector<11x160xf32>
    %cst_113 = arith.constant -1.45315206 : f32
    %270 = vector.broadcast %cst_113 : f32 to vector<11x160xf32>
    %271 = arith.addf %270, %269 : vector<11x160xf32>
    %272 = arith.mulf %267, %271 : vector<11x160xf32>
    %cst_114 = arith.constant 1.42141378 : f32
    %273 = vector.broadcast %cst_114 : f32 to vector<11x160xf32>
    %274 = arith.addf %273, %272 : vector<11x160xf32>
    %275 = arith.mulf %267, %274 : vector<11x160xf32>
    %cst_115 = arith.constant -0.284496725 : f32
    %276 = vector.broadcast %cst_115 : f32 to vector<11x160xf32>
    %277 = arith.addf %276, %275 : vector<11x160xf32>
    %278 = arith.mulf %267, %277 : vector<11x160xf32>
    %cst_116 = arith.constant 0.254829586 : f32
    %279 = vector.broadcast %cst_116 : f32 to vector<11x160xf32>
    %280 = arith.addf %279, %278 : vector<11x160xf32>
    %281 = arith.mulf %267, %280 : vector<11x160xf32>
    %cst_117 = arith.constant 0.000000e+00 : f32
    %282 = vector.broadcast %cst_117 : f32 to vector<11x160xf32>
    %283 = arith.subf %282, %261 : vector<11x160xf32>
    %284 = arith.mulf %283, %261 : vector<11x160xf32>
    %285 = math.exp %284 : vector<11x160xf32>
    %286 = arith.mulf %281, %285 : vector<11x160xf32>
    %cst_118 = arith.constant 1.000000e+00 : f32
    %287 = vector.broadcast %cst_118 : f32 to vector<11x160xf32>
    %288 = arith.subf %287, %286 : vector<11x160xf32>
    %289 = arith.mulf %260, %288 : vector<11x160xf32>
    %cst_119 = arith.constant 1.000000e+00 : f32
    %290 = vector.broadcast %cst_119 : f32 to vector<11x160xf32>
    %291 = arith.addf %290, %289 : vector<11x160xf32>
    %292 = arith.mulf %253, %291 : vector<11x160xf32>
    %cst_120 = arith.constant dense<0.000000e+00> : vector<11x40xf32>
    %293 = tpu.matmul %292, %225, %cst_120 {dimension_numbers = #tpu.dot_dimension_numbers<[1], [0], [0], [1], [0, 0, 1, 1], [], []>} : vector<11x160xf32>, vector<160x40xf32>, vector<11x40xf32> -> vector<11x40xf32>
    %294 = arith.addf %220, %293 : vector<11x40xf32>
    %295 = vector.broadcast %226 : vector<1x40xf32> to vector<11x40xf32>
    %296 = arith.addf %294, %295 : vector<11x40xf32>
    %c1744 = arith.constant 1744 : index
    %c0_121 = arith.constant 0 : index
    %297 = vector.load %arg2[%c1744, %c0_121] : memref<2088x128xf32, #tpu.memory_space<vmem>>, vector<3x40xf32>
    %c1288 = arith.constant 1288 : index
    %c0_122 = arith.constant 0 : index
    %298 = vector.load %arg2[%c1288, %c0_122] : memref<2088x128xf32, #tpu.memory_space<vmem>>, vector<1x40xf32>
    %c1296 = arith.constant 1296 : index
    %c0_123 = arith.constant 0 : index
    %299 = vector.load %arg2[%c1296, %c0_123] : memref<2088x128xf32, #tpu.memory_space<vmem>>, vector<1x40xf32>
    %c1304 = arith.constant 1304 : index
    %c0_124 = arith.constant 0 : index
    %300 = vector.load %arg2[%c1304, %c0_124] : memref<2088x128xf32, #tpu.memory_space<vmem>>, vector<40x120xf32>
    %c1344 = arith.constant 1344 : index
    %c0_125 = arith.constant 0 : index
    %301 = vector.load %arg2[%c1344, %c0_125] : memref<2088x128xf32, #tpu.memory_space<vmem>>, vector<1x120xf32>
    %c1352 = arith.constant 1352 : index
    %c0_126 = arith.constant 0 : index
    %302 = vector.load %arg2[%c1352, %c0_126] : memref<2088x128xf32, #tpu.memory_space<vmem>>, vector<40x40xf32>
    %c1392 = arith.constant 1392 : index
    %c0_127 = arith.constant 0 : index
    %303 = vector.load %arg2[%c1392, %c0_127] : memref<2088x128xf32, #tpu.memory_space<vmem>>, vector<1x40xf32>
    %cst_128 = arith.constant dense<0.000000e+00> : vector<3xf32>
    %304 = vector.multi_reduction <add>, %297, %cst_128 [1] : vector<3x40xf32> to vector<3xf32>
    %305 = vector.shape_cast %304 : vector<3xf32> to vector<3x1xf32>
    %cst_129 = arith.constant 4.000000e+01 : f32
    %306 = vector.broadcast %cst_129 : f32 to vector<3x1xf32>
    %307 = arith.divf %305, %306 : vector<3x1xf32>
    %308 = vector.broadcast %307 : vector<3x1xf32> to vector<3x40xf32>
    %309 = arith.subf %297, %308 : vector<3x40xf32>
    %310 = arith.mulf %309, %309 : vector<3x40xf32>
    %cst_130 = arith.constant dense<0.000000e+00> : vector<3xf32>
    %311 = vector.multi_reduction <add>, %310, %cst_130 [1] : vector<3x40xf32> to vector<3xf32>
    %312 = vector.shape_cast %311 : vector<3xf32> to vector<3x1xf32>
    %cst_131 = arith.constant 4.000000e+01 : f32
    %313 = vector.broadcast %cst_131 : f32 to vector<3x1xf32>
    %314 = arith.divf %312, %313 : vector<3x1xf32>
    %315 = vector.broadcast %307 : vector<3x1xf32> to vector<3x40xf32>
    %316 = arith.subf %297, %315 : vector<3x40xf32>
    %cst_132 = arith.constant 9.99999974E-6 : f32
    %317 = vector.broadcast %cst_132 : f32 to vector<3x1xf32>
    %318 = arith.addf %314, %317 : vector<3x1xf32>
    %319 = math.rsqrt %318 : vector<3x1xf32>
    %320 = vector.broadcast %319 : vector<3x1xf32> to vector<3x40xf32>
    %321 = arith.mulf %316, %320 : vector<3x40xf32>
    %322 = vector.broadcast %298 : vector<1x40xf32> to vector<3x40xf32>
    %323 = arith.mulf %321, %322 : vector<3x40xf32>
    %324 = vector.broadcast %299 : vector<1x40xf32> to vector<3x40xf32>
    %325 = arith.addf %323, %324 : vector<3x40xf32>
    %cst_133 = arith.constant dense<0.000000e+00> : vector<3x120xf32>
    %326 = tpu.matmul %325, %300, %cst_133 {dimension_numbers = #tpu.dot_dimension_numbers<[1], [0], [0], [1], [0, 0, 1, 1], [], []>} : vector<3x40xf32>, vector<40x120xf32>, vector<3x120xf32> -> vector<3x120xf32>
    %327 = vector.broadcast %301 : vector<1x120xf32> to vector<3x120xf32>
    %328 = arith.addf %326, %327 : vector<3x120xf32>
    %329 = vector.extract_strided_slice %328 {offsets = [0, 0], sizes = [3, 40], strides = [1, 1]} : vector<3x120xf32> to vector<3x40xf32>
    %330 = vector.extract_strided_slice %328 {offsets = [0, 40], sizes = [3, 40], strides = [1, 1]} : vector<3x120xf32> to vector<3x40xf32>
    %331 = vector.extract_strided_slice %328 {offsets = [0, 80], sizes = [3, 40], strides = [1, 1]} : vector<3x120xf32> to vector<3x40xf32>
    %cst_134 = arith.constant dense<0.000000e+00> : vector<24x40xf32>
    %332 = tpu.matmul %5, %329, %cst_134 {dimension_numbers = #tpu.dot_dimension_numbers<[1], [0], [0], [1], [0, 0, 1, 1], [], []>} : vector<24x3xf32>, vector<3x40xf32>, vector<24x40xf32> -> vector<24x40xf32>
    %333 = arith.mulf %332, %3 : vector<24x40xf32>
    %cst_135 = arith.constant dense<0.000000e+00> : vector<24x3xf32>
    %334 = tpu.matmul %333, %330, %cst_135 {dimension_numbers = #tpu.dot_dimension_numbers<[1], [1], [0], [0], [0, 0, 1, 0], [], []>} : vector<24x40xf32>, vector<3x40xf32>, vector<24x3xf32> -> vector<24x3xf32>
    %cst_136 = arith.constant 0.158113882 : f32
    %335 = vector.broadcast %cst_136 : f32 to vector<24x3xf32>
    %336 = arith.mulf %334, %335 : vector<24x3xf32>
    %cst_137 = arith.constant dense<0xFF800000> : vector<24xf32>
    %337 = vector.multi_reduction <maximumf>, %336, %cst_137 [1] : vector<24x3xf32> to vector<24xf32>
    %338 = vector.shape_cast %337 : vector<24xf32> to vector<24x1xf32>
    %339 = vector.broadcast %338 : vector<24x1xf32> to vector<24x3xf32>
    %340 = arith.subf %336, %339 : vector<24x3xf32>
    %341 = math.exp %340 : vector<24x3xf32>
    %cst_138 = arith.constant dense<0.000000e+00> : vector<24xf32>
    %342 = vector.multi_reduction <add>, %341, %cst_138 [1] : vector<24x3xf32> to vector<24xf32>
    %343 = vector.shape_cast %342 : vector<24xf32> to vector<24x1xf32>
    %344 = tpu.reciprocal %343 {approx = true} : vector<24x1xf32> -> vector<24x1xf32>
    %345 = vector.broadcast %344 : vector<24x1xf32> to vector<24x3xf32>
    %346 = arith.mulf %341, %345 : vector<24x3xf32>
    %cst_139 = arith.constant dense<0.000000e+00> : vector<24x40xf32>
    %347 = tpu.matmul %346, %331, %cst_139 {dimension_numbers = #tpu.dot_dimension_numbers<[1], [0], [0], [1], [0, 0, 1, 1], [], []>} : vector<24x3xf32>, vector<3x40xf32>, vector<24x40xf32> -> vector<24x40xf32>
    %348 = arith.mulf %347, %3 : vector<24x40xf32>
    %cst_140 = arith.constant dense<0.000000e+00> : vector<3x40xf32>
    %349 = tpu.matmul %4, %348, %cst_140 {dimension_numbers = #tpu.dot_dimension_numbers<[1], [0], [0], [1], [0, 0, 1, 1], [], []>} : vector<3x24xf32>, vector<24x40xf32>, vector<3x40xf32> -> vector<3x40xf32>
    %cst_141 = arith.constant dense<0.000000e+00> : vector<3x40xf32>
    %350 = tpu.matmul %349, %302, %cst_141 {dimension_numbers = #tpu.dot_dimension_numbers<[1], [0], [0], [1], [0, 0, 1, 1], [], []>} : vector<3x40xf32>, vector<40x40xf32>, vector<3x40xf32> -> vector<3x40xf32>
    %351 = arith.addf %297, %350 : vector<3x40xf32>
    %352 = vector.broadcast %303 : vector<1x40xf32> to vector<3x40xf32>
    %353 = arith.addf %351, %352 : vector<3x40xf32>
    %c1400 = arith.constant 1400 : index
    %c0_142 = arith.constant 0 : index
    %354 = vector.load %arg2[%c1400, %c0_142] : memref<2088x128xf32, #tpu.memory_space<vmem>>, vector<1x40xf32>
    %c1408 = arith.constant 1408 : index
    %c0_143 = arith.constant 0 : index
    %355 = vector.load %arg2[%c1408, %c0_143] : memref<2088x128xf32, #tpu.memory_space<vmem>>, vector<1x40xf32>
    %cst_144 = arith.constant dense<0.000000e+00> : vector<3xf32>
    %356 = vector.multi_reduction <add>, %353, %cst_144 [1] : vector<3x40xf32> to vector<3xf32>
    %357 = vector.shape_cast %356 : vector<3xf32> to vector<3x1xf32>
    %cst_145 = arith.constant 4.000000e+01 : f32
    %358 = vector.broadcast %cst_145 : f32 to vector<3x1xf32>
    %359 = arith.divf %357, %358 : vector<3x1xf32>
    %360 = vector.broadcast %359 : vector<3x1xf32> to vector<3x40xf32>
    %361 = arith.subf %353, %360 : vector<3x40xf32>
    %362 = arith.mulf %361, %361 : vector<3x40xf32>
    %cst_146 = arith.constant dense<0.000000e+00> : vector<3xf32>
    %363 = vector.multi_reduction <add>, %362, %cst_146 [1] : vector<3x40xf32> to vector<3xf32>
    %364 = vector.shape_cast %363 : vector<3xf32> to vector<3x1xf32>
    %cst_147 = arith.constant 4.000000e+01 : f32
    %365 = vector.broadcast %cst_147 : f32 to vector<3x1xf32>
    %366 = arith.divf %364, %365 : vector<3x1xf32>
    %367 = vector.broadcast %359 : vector<3x1xf32> to vector<3x40xf32>
    %368 = arith.subf %353, %367 : vector<3x40xf32>
    %cst_148 = arith.constant 9.99999974E-6 : f32
    %369 = vector.broadcast %cst_148 : f32 to vector<3x1xf32>
    %370 = arith.addf %366, %369 : vector<3x1xf32>
    %371 = math.rsqrt %370 : vector<3x1xf32>
    %372 = vector.broadcast %371 : vector<3x1xf32> to vector<3x40xf32>
    %373 = arith.mulf %368, %372 : vector<3x40xf32>
    %374 = vector.broadcast %354 : vector<1x40xf32> to vector<3x40xf32>
    %375 = arith.mulf %373, %374 : vector<3x40xf32>
    %376 = vector.broadcast %355 : vector<1x40xf32> to vector<3x40xf32>
    %377 = arith.addf %375, %376 : vector<3x40xf32>
    %c1416 = arith.constant 1416 : index
    %c0_149 = arith.constant 0 : index
    %378 = vector.load %arg2[%c1416, %c0_149] : memref<2088x128xf32, #tpu.memory_space<vmem>>, vector<40x48xf32>
    %c1456 = arith.constant 1456 : index
    %c0_150 = arith.constant 0 : index
    %379 = vector.load %arg2[%c1456, %c0_150] : memref<2088x128xf32, #tpu.memory_space<vmem>>, vector<1x48xf32>
    %c1464 = arith.constant 1464 : index
    %c0_151 = arith.constant 0 : index
    %380 = vector.load %arg2[%c1464, %c0_151] : memref<2088x128xf32, #tpu.memory_space<vmem>>, vector<40x80xf32>
    %c1504 = arith.constant 1504 : index
    %c0_152 = arith.constant 0 : index
    %381 = vector.load %arg2[%c1504, %c0_152] : memref<2088x128xf32, #tpu.memory_space<vmem>>, vector<1x80xf32>
    %c1512 = arith.constant 1512 : index
    %c0_153 = arith.constant 0 : index
    %382 = vector.load %arg2[%c1512, %c0_153] : memref<2088x128xf32, #tpu.memory_space<vmem>>, vector<40x40xf32>
    %c1552 = arith.constant 1552 : index
    %c0_154 = arith.constant 0 : index
    %383 = vector.load %arg2[%c1552, %c0_154] : memref<2088x128xf32, #tpu.memory_space<vmem>>, vector<1x40xf32>
    %cst_155 = arith.constant dense<0.000000e+00> : vector<3x48xf32>
    %384 = tpu.matmul %377, %378, %cst_155 {dimension_numbers = #tpu.dot_dimension_numbers<[1], [0], [0], [1], [0, 0, 1, 1], [], []>} : vector<3x40xf32>, vector<40x48xf32>, vector<3x48xf32> -> vector<3x48xf32>
    %385 = vector.broadcast %379 : vector<1x48xf32> to vector<3x48xf32>
    %386 = arith.addf %384, %385 : vector<3x48xf32>
    %387 = vector.extract_strided_slice %386 {offsets = [0, 0], sizes = [3, 24], strides = [1, 1]} : vector<3x48xf32> to vector<3x24xf32>
    %388 = vector.extract_strided_slice %386 {offsets = [0, 24], sizes = [3, 24], strides = [1, 1]} : vector<3x48xf32> to vector<3x24xf32>
    %cst_156 = arith.constant dense<0xFF800000> : vector<3xf32>
    %389 = vector.multi_reduction <maximumf>, %388, %cst_156 [1] : vector<3x24xf32> to vector<3xf32>
    %390 = vector.shape_cast %389 : vector<3xf32> to vector<3x1xf32>
    %391 = vector.broadcast %390 : vector<3x1xf32> to vector<3x24xf32>
    %392 = arith.subf %388, %391 : vector<3x24xf32>
    %393 = math.exp %392 : vector<3x24xf32>
    %cst_157 = arith.constant dense<0.000000e+00> : vector<3xf32>
    %394 = vector.multi_reduction <add>, %393, %cst_157 [1] : vector<3x24xf32> to vector<3xf32>
    %395 = vector.shape_cast %394 : vector<3xf32> to vector<3x1xf32>
    %396 = tpu.reciprocal %395 {approx = true} : vector<3x1xf32> -> vector<3x1xf32>
    %397 = vector.broadcast %396 : vector<3x1xf32> to vector<3x24xf32>
    %398 = arith.mulf %393, %397 : vector<3x24xf32>
    %399 = arith.negf %387 : vector<3x24xf32>
    %400 = math.exp %399 : vector<3x24xf32>
    %cst_158 = arith.constant 1.000000e+00 : f32
    %401 = vector.broadcast %cst_158 : f32 to vector<3x24xf32>
    %402 = arith.addf %401, %400 : vector<3x24xf32>
    %403 = arith.divf %401, %402 : vector<3x24xf32>
    %cst_159 = arith.constant 1.100000e+01 : f32
    %404 = vector.broadcast %cst_159 : f32 to vector<3x24xf32>
    %405 = arith.mulf %403, %404 : vector<3x24xf32>
    %406 = math.floor %405 : vector<3x24xf32>
    %cst_160 = arith.constant 1.000000e+01 : f32
    %407 = vector.broadcast %cst_160 : f32 to vector<3x24xf32>
    %408 = arith.minimumf %406, %407 : vector<3x24xf32>
    %409 = arith.fptosi %408 : vector<3x24xf32> to vector<3x24xi32>
    %410 = tpu.iota {dimensions = array<i32: 2>} : vector<3x24x11xi32>
    %411 = vector.shape_cast %409 : vector<3x24xi32> to vector<3x24x1xi32>
    %412 = vector.broadcast %411 : vector<3x24x1xi32> to vector<3x24x11xi32>
    %413 = arith.cmpi eq, %410, %412 : vector<3x24x11xi32>
    %414 = vector.shape_cast %398 : vector<3x24xf32> to vector<3x24x1xf32>
    %cst_161 = arith.constant 0.000000e+00 : f32
    %415 = vector.shape_cast %414 : vector<3x24x1xf32> to vector<3x24x1xf32>
    %416 = vector.broadcast %415 : vector<3x24x1xf32> to vector<3x24x11xf32>
    %417 = vector.broadcast %cst_161 : f32 to vector<3x24x11xf32>
    %418 = arith.select %413, %416, %417 : vector<3x24x11xi1>, vector<3x24x11xf32>
    %419 = vector.shape_cast %296 : vector<11x40xf32> to vector<1x11x40xf32>
    %420 = vector.shape_cast %419 : vector<1x11x40xf32> to vector<1x11x40xf32>
    %421 = vector.broadcast %420 : vector<1x11x40xf32> to vector<3x11x40xf32>
    "tpu.trace_start"() <{level = 10 : i32, message = "qpn,qne->qpe"}> : () -> ()
    %cst_162 = arith.constant dense<0.000000e+00> : vector<3x24x40xf32>
    %422 = tpu.matmul %418, %421, %cst_162 {dimension_numbers = #tpu.dot_dimension_numbers<[2], [1], [1], [2], [0, 0, 0, 1, 1, 2], [0], [0]>} : vector<3x24x11xf32>, vector<3x11x40xf32>, vector<3x24x40xf32> -> vector<3x24x40xf32>
    "tpu.trace_stop"() : () -> ()
    %423 = vector.shape_cast %422 : vector<3x24x40xf32> to vector<72x40xf32>
    %cst_163 = arith.constant dense<0.000000e+00> : vector<72x80xf32>
    %424 = tpu.matmul %423, %380, %cst_163 {dimension_numbers = #tpu.dot_dimension_numbers<[1], [0], [0], [1], [0, 0, 1, 1], [], []>} : vector<72x40xf32>, vector<40x80xf32>, vector<72x80xf32> -> vector<72x80xf32>
    %425 = vector.broadcast %381 : vector<1x80xf32> to vector<72x80xf32>
    %426 = arith.addf %424, %425 : vector<72x80xf32>
    %427 = vector.extract_strided_slice %426 {offsets = [0, 0], sizes = [72, 40], strides = [1, 1]} : vector<72x80xf32> to vector<72x40xf32>
    %428 = vector.extract_strided_slice %426 {offsets = [0, 40], sizes = [72, 40], strides = [1, 1]} : vector<72x80xf32> to vector<72x40xf32>
    %cst_164 = arith.constant dense<0.000000e+00> : vector<24x40xf32>
    %429 = tpu.matmul %5, %377, %cst_164 {dimension_numbers = #tpu.dot_dimension_numbers<[1], [0], [0], [1], [0, 0, 1, 1], [], []>} : vector<24x3xf32>, vector<3x40xf32>, vector<24x40xf32> -> vector<24x40xf32>
    %430 = arith.mulf %429, %3 : vector<24x40xf32>
    %cst_165 = arith.constant dense<0.000000e+00> : vector<24x72xf32>
    %431 = tpu.matmul %430, %427, %cst_165 {dimension_numbers = #tpu.dot_dimension_numbers<[1], [1], [0], [0], [0, 0, 1, 0], [], []>} : vector<24x40xf32>, vector<72x40xf32>, vector<24x72xf32> -> vector<24x72xf32>
    %cst_166 = arith.constant 0.158113882 : f32
    %432 = vector.broadcast %cst_166 : f32 to vector<24x72xf32>
    %433 = arith.mulf %431, %432 : vector<24x72xf32>
    %434 = arith.addf %433, %6 : vector<24x72xf32>
    %cst_167 = arith.constant dense<0xFF800000> : vector<24xf32>
    %435 = vector.multi_reduction <maximumf>, %434, %cst_167 [1] : vector<24x72xf32> to vector<24xf32>
    %436 = vector.shape_cast %435 : vector<24xf32> to vector<24x1xf32>
    %437 = vector.broadcast %436 : vector<24x1xf32> to vector<24x72xf32>
    %438 = arith.subf %434, %437 : vector<24x72xf32>
    %439 = math.exp %438 : vector<24x72xf32>
    %cst_168 = arith.constant dense<0.000000e+00> : vector<24xf32>
    %440 = vector.multi_reduction <add>, %439, %cst_168 [1] : vector<24x72xf32> to vector<24xf32>
    %441 = vector.shape_cast %440 : vector<24xf32> to vector<24x1xf32>
    %442 = tpu.reciprocal %441 {approx = true} : vector<24x1xf32> -> vector<24x1xf32>
    %443 = vector.broadcast %442 : vector<24x1xf32> to vector<24x72xf32>
    %444 = arith.mulf %439, %443 : vector<24x72xf32>
    %cst_169 = arith.constant dense<0.000000e+00> : vector<24x40xf32>
    %445 = tpu.matmul %444, %428, %cst_169 {dimension_numbers = #tpu.dot_dimension_numbers<[1], [0], [0], [1], [0, 0, 1, 1], [], []>} : vector<24x72xf32>, vector<72x40xf32>, vector<24x40xf32> -> vector<24x40xf32>
    %446 = arith.mulf %445, %3 : vector<24x40xf32>
    %cst_170 = arith.constant dense<0.000000e+00> : vector<3x40xf32>
    %447 = tpu.matmul %4, %446, %cst_170 {dimension_numbers = #tpu.dot_dimension_numbers<[1], [0], [0], [1], [0, 0, 1, 1], [], []>} : vector<3x24xf32>, vector<24x40xf32>, vector<3x40xf32> -> vector<3x40xf32>
    %cst_171 = arith.constant dense<0.000000e+00> : vector<3x40xf32>
    %448 = tpu.matmul %447, %382, %cst_171 {dimension_numbers = #tpu.dot_dimension_numbers<[1], [0], [0], [1], [0, 0, 1, 1], [], []>} : vector<3x40xf32>, vector<40x40xf32>, vector<3x40xf32> -> vector<3x40xf32>
    %449 = vector.broadcast %383 : vector<1x40xf32> to vector<3x40xf32>
    %450 = arith.addf %448, %449 : vector<3x40xf32>
    %c1560 = arith.constant 1560 : index
    %c0_172 = arith.constant 0 : index
    %451 = vector.load %arg2[%c1560, %c0_172] : memref<2088x128xf32, #tpu.memory_space<vmem>>, vector<1x40xf32>
    %c1568 = arith.constant 1568 : index
    %c0_173 = arith.constant 0 : index
    %452 = vector.load %arg2[%c1568, %c0_173] : memref<2088x128xf32, #tpu.memory_space<vmem>>, vector<1x40xf32>
    %c112 = arith.constant 112 : index
    %c0_174 = arith.constant 0 : index
    %453 = vector.load %arg3[%c112, %c0_174] : memref<168x256xf32, #tpu.memory_space<vmem>>, vector<40x160xf32>
    %c152 = arith.constant 152 : index
    %c0_175 = arith.constant 0 : index
    %454 = vector.load %arg3[%c152, %c0_175] : memref<168x256xf32, #tpu.memory_space<vmem>>, vector<1x160xf32>
    %c1576 = arith.constant 1576 : index
    %c0_176 = arith.constant 0 : index
    %455 = vector.load %arg2[%c1576, %c0_176] : memref<2088x128xf32, #tpu.memory_space<vmem>>, vector<160x40xf32>
    %c1736 = arith.constant 1736 : index
    %c0_177 = arith.constant 0 : index
    %456 = vector.load %arg2[%c1736, %c0_177] : memref<2088x128xf32, #tpu.memory_space<vmem>>, vector<1x40xf32>
    %cst_178 = arith.constant dense<0.000000e+00> : vector<3xf32>
    %457 = vector.multi_reduction <add>, %450, %cst_178 [1] : vector<3x40xf32> to vector<3xf32>
    %458 = vector.shape_cast %457 : vector<3xf32> to vector<3x1xf32>
    %cst_179 = arith.constant 4.000000e+01 : f32
    %459 = vector.broadcast %cst_179 : f32 to vector<3x1xf32>
    %460 = arith.divf %458, %459 : vector<3x1xf32>
    %461 = vector.broadcast %460 : vector<3x1xf32> to vector<3x40xf32>
    %462 = arith.subf %450, %461 : vector<3x40xf32>
    %463 = arith.mulf %462, %462 : vector<3x40xf32>
    %cst_180 = arith.constant dense<0.000000e+00> : vector<3xf32>
    %464 = vector.multi_reduction <add>, %463, %cst_180 [1] : vector<3x40xf32> to vector<3xf32>
    %465 = vector.shape_cast %464 : vector<3xf32> to vector<3x1xf32>
    %cst_181 = arith.constant 4.000000e+01 : f32
    %466 = vector.broadcast %cst_181 : f32 to vector<3x1xf32>
    %467 = arith.divf %465, %466 : vector<3x1xf32>
    %468 = vector.broadcast %460 : vector<3x1xf32> to vector<3x40xf32>
    %469 = arith.subf %450, %468 : vector<3x40xf32>
    %cst_182 = arith.constant 9.99999974E-6 : f32
    %470 = vector.broadcast %cst_182 : f32 to vector<3x1xf32>
    %471 = arith.addf %467, %470 : vector<3x1xf32>
    %472 = math.rsqrt %471 : vector<3x1xf32>
    %473 = vector.broadcast %472 : vector<3x1xf32> to vector<3x40xf32>
    %474 = arith.mulf %469, %473 : vector<3x40xf32>
    %475 = vector.broadcast %451 : vector<1x40xf32> to vector<3x40xf32>
    %476 = arith.mulf %474, %475 : vector<3x40xf32>
    %477 = vector.broadcast %452 : vector<1x40xf32> to vector<3x40xf32>
    %478 = arith.addf %476, %477 : vector<3x40xf32>
    %cst_183 = arith.constant dense<0.000000e+00> : vector<3x160xf32>
    %479 = tpu.matmul %478, %453, %cst_183 {dimension_numbers = #tpu.dot_dimension_numbers<[1], [0], [0], [1], [0, 0, 1, 1], [], []>} : vector<3x40xf32>, vector<40x160xf32>, vector<3x160xf32> -> vector<3x160xf32>
    %480 = vector.broadcast %454 : vector<1x160xf32> to vector<3x160xf32>
    %481 = arith.addf %479, %480 : vector<3x160xf32>
    %cst_184 = arith.constant 5.000000e-01 : f32
    %482 = vector.broadcast %cst_184 : f32 to vector<3x160xf32>
    %483 = arith.mulf %482, %481 : vector<3x160xf32>
    %cst_185 = arith.constant 0.707106769 : f32
    %484 = vector.broadcast %cst_185 : f32 to vector<3x160xf32>
    %485 = arith.mulf %481, %484 : vector<3x160xf32>
    %cst_186 = arith.constant 0.000000e+00 : f32
    %486 = vector.broadcast %cst_186 : f32 to vector<3x160xf32>
    %487 = arith.cmpf olt, %485, %486 : vector<3x160xf32>
    %cst_187 = arith.constant -1.000000e+00 : f32
    %cst_188 = arith.constant 1.000000e+00 : f32
    %488 = vector.broadcast %cst_187 : f32 to vector<3x160xf32>
    %489 = vector.broadcast %cst_188 : f32 to vector<3x160xf32>
    %490 = arith.select %487, %488, %489 : vector<3x160xi1>, vector<3x160xf32>
    %491 = math.absf %485 : vector<3x160xf32>
    %cst_189 = arith.constant 0.327591091 : f32
    %492 = vector.broadcast %cst_189 : f32 to vector<3x160xf32>
    %493 = arith.mulf %492, %491 : vector<3x160xf32>
    %cst_190 = arith.constant 1.000000e+00 : f32
    %494 = vector.broadcast %cst_190 : f32 to vector<3x160xf32>
    %495 = arith.addf %494, %493 : vector<3x160xf32>
    %cst_191 = arith.constant 1.000000e+00 : f32
    %496 = vector.broadcast %cst_191 : f32 to vector<3x160xf32>
    %497 = arith.divf %496, %495 : vector<3x160xf32>
    %cst_192 = arith.constant 1.06140542 : f32
    %498 = vector.broadcast %cst_192 : f32 to vector<3x160xf32>
    %499 = arith.mulf %497, %498 : vector<3x160xf32>
    %cst_193 = arith.constant -1.45315206 : f32
    %500 = vector.broadcast %cst_193 : f32 to vector<3x160xf32>
    %501 = arith.addf %500, %499 : vector<3x160xf32>
    %502 = arith.mulf %497, %501 : vector<3x160xf32>
    %cst_194 = arith.constant 1.42141378 : f32
    %503 = vector.broadcast %cst_194 : f32 to vector<3x160xf32>
    %504 = arith.addf %503, %502 : vector<3x160xf32>
    %505 = arith.mulf %497, %504 : vector<3x160xf32>
    %cst_195 = arith.constant -0.284496725 : f32
    %506 = vector.broadcast %cst_195 : f32 to vector<3x160xf32>
    %507 = arith.addf %506, %505 : vector<3x160xf32>
    %508 = arith.mulf %497, %507 : vector<3x160xf32>
    %cst_196 = arith.constant 0.254829586 : f32
    %509 = vector.broadcast %cst_196 : f32 to vector<3x160xf32>
    %510 = arith.addf %509, %508 : vector<3x160xf32>
    %511 = arith.mulf %497, %510 : vector<3x160xf32>
    %cst_197 = arith.constant 0.000000e+00 : f32
    %512 = vector.broadcast %cst_197 : f32 to vector<3x160xf32>
    %513 = arith.subf %512, %491 : vector<3x160xf32>
    %514 = arith.mulf %513, %491 : vector<3x160xf32>
    %515 = math.exp %514 : vector<3x160xf32>
    %516 = arith.mulf %511, %515 : vector<3x160xf32>
    %cst_198 = arith.constant 1.000000e+00 : f32
    %517 = vector.broadcast %cst_198 : f32 to vector<3x160xf32>
    %518 = arith.subf %517, %516 : vector<3x160xf32>
    %519 = arith.mulf %490, %518 : vector<3x160xf32>
    %cst_199 = arith.constant 1.000000e+00 : f32
    %520 = vector.broadcast %cst_199 : f32 to vector<3x160xf32>
    %521 = arith.addf %520, %519 : vector<3x160xf32>
    %522 = arith.mulf %483, %521 : vector<3x160xf32>
    %cst_200 = arith.constant dense<0.000000e+00> : vector<3x40xf32>
    %523 = tpu.matmul %522, %455, %cst_200 {dimension_numbers = #tpu.dot_dimension_numbers<[1], [0], [0], [1], [0, 0, 1, 1], [], []>} : vector<3x160xf32>, vector<160x40xf32>, vector<3x40xf32> -> vector<3x40xf32>
    %524 = arith.addf %450, %523 : vector<3x40xf32>
    %525 = vector.broadcast %456 : vector<1x40xf32> to vector<3x40xf32>
    %526 = arith.addf %524, %525 : vector<3x40xf32>
    %527 = vector.shape_cast %526 : vector<3x40xf32> to vector<3x1x40xf32>
    %c0_201 = arith.constant 0 : index
    %c0_202 = arith.constant 0 : index
    %c0_203 = arith.constant 0 : index
    %528 = vector.load %arg4[%c0_201, %c0_202, %c0_203] : memref<3x40x256xf32, #tpu.memory_space<vmem>>, vector<3x40x256xf32>
    "tpu.trace_start"() <{level = 10 : i32, message = "qmp,qph->qmh"}> : () -> ()
    %cst_204 = arith.constant dense<0.000000e+00> : vector<3x1x256xf32>
    %529 = tpu.matmul %527, %528, %cst_204 {dimension_numbers = #tpu.dot_dimension_numbers<[2], [1], [1], [2], [0, 0, 0, 1, 1, 2], [0], [0]>} : vector<3x1x40xf32>, vector<3x40x256xf32>, vector<3x1x256xf32> -> vector<3x1x256xf32>
    "tpu.trace_stop"() : () -> ()
    %cst_205 = arith.constant dense<0.000000e+00> : vector<1x256xf32>
    %530 = vector.multi_reduction <add>, %529, %cst_205 [0] : vector<3x1x256xf32> to vector<1x256xf32>
    %c160 = arith.constant 160 : index
    %c0_206 = arith.constant 0 : index
    %531 = vector.load %arg3[%c160, %c0_206] : memref<168x256xf32, #tpu.memory_space<vmem>>, vector<1x256xf32>
    %532 = arith.addf %530, %531 : vector<1x256xf32>
    %cst_207 = arith.constant 0.000000e+00 : f32
    %533 = vector.broadcast %cst_207 : f32 to vector<1x256xf32>
    %534 = arith.cmpf ogt, %532, %533 : vector<1x256xf32>
    %535 = math.exp %532 : vector<1x256xf32>
    %cst_208 = arith.constant 1.000000e+00 : f32
    %536 = vector.broadcast %cst_208 : f32 to vector<1x256xf32>
    %537 = arith.subf %535, %536 : vector<1x256xf32>
    %538 = arith.select %534, %532, %537 : vector<1x256xi1>, vector<1x256xf32>
    %c1752 = arith.constant 1752 : index
    %c0_209 = arith.constant 0 : index
    %539 = vector.load %arg2[%c1752, %c0_209] : memref<2088x128xf32, #tpu.memory_space<vmem>>, vector<256x64xf32>
    %cst_210 = arith.constant dense<0.000000e+00> : vector<1x64xf32>
    %540 = tpu.matmul %538, %539, %cst_210 {dimension_numbers = #tpu.dot_dimension_numbers<[1], [0], [0], [1], [0, 0, 1, 1], [], []>} : vector<1x256xf32>, vector<256x64xf32>, vector<1x64xf32> -> vector<1x64xf32>
    %c2008 = arith.constant 2008 : index
    %c0_211 = arith.constant 0 : index
    %541 = vector.load %arg2[%c2008, %c0_211] : memref<2088x128xf32, #tpu.memory_space<vmem>>, vector<1x64xf32>
    %542 = arith.addf %540, %541 : vector<1x64xf32>
    %cst_212 = arith.constant 0.000000e+00 : f32
    %543 = vector.broadcast %cst_212 : f32 to vector<1x64xf32>
    %544 = arith.cmpf ogt, %542, %543 : vector<1x64xf32>
    %545 = math.exp %542 : vector<1x64xf32>
    %cst_213 = arith.constant 1.000000e+00 : f32
    %546 = vector.broadcast %cst_213 : f32 to vector<1x64xf32>
    %547 = arith.subf %545, %546 : vector<1x64xf32>
    %548 = arith.select %544, %542, %547 : vector<1x64xi1>, vector<1x64xf32>
    %c2016 = arith.constant 2016 : index
    %c0_214 = arith.constant 0 : index
    %549 = vector.load %arg2[%c2016, %c0_214] : memref<2088x128xf32, #tpu.memory_space<vmem>>, vector<64x128xf32>
    %cst_215 = arith.constant dense<0.000000e+00> : vector<1x128xf32>
    %550 = tpu.matmul %548, %549, %cst_215 {dimension_numbers = #tpu.dot_dimension_numbers<[1], [0], [0], [1], [0, 0, 1, 1], [], []>} : vector<1x64xf32>, vector<64x128xf32>, vector<1x128xf32> -> vector<1x128xf32>
    %c2080 = arith.constant 2080 : index
    %c0_216 = arith.constant 0 : index
    %551 = vector.load %arg2[%c2080, %c0_216] : memref<2088x128xf32, #tpu.memory_space<vmem>>, vector<1x128xf32>
    %552 = arith.addf %550, %551 : vector<1x128xf32>
    %c0_217 = arith.constant 0 : index
    %c0_218 = arith.constant 0 : index
    %c0_219 = arith.constant 0 : index
    %553 = vector.load %arg5[%c0_217, %c0_218, %c0_219] : memref<1x1x128xf32, #tpu.memory_space<vmem>>, vector<1x1x128xf32>
    %554 = vector.shape_cast %553 : vector<1x1x128xf32> to vector<1x128xf32>
    %555 = vector.shape_cast %552 : vector<1x128xf32> to vector<1x1x128xf32>
    tpu.vector_store %arg5[%c0_217, %c0_218, %c0_219], %555 {strides = array<i32>} : memref<1x1x128xf32, #tpu.memory_space<vmem>>, vector<1x1x128xf32>,
    return
  }
  func.func @transform_0(%arg0: i32) -> (i32, i32, i32) {
    %c0_i32 = arith.constant 0 : i32
    %c0_i32_0 = arith.constant 0 : i32
    %c0_i32_1 = arith.constant 0 : i32
    return %arg0, %c0_i32, %c0_i32_0 : i32, i32, i32
  }
  func.func @transform_1(%arg0: i32) -> (i32, i32) {
    %c0_i32 = arith.constant 0 : i32
    %c0_i32_0 = arith.constant 0 : i32
    %c0_i32_1 = arith.constant 0 : i32
    return %c0_i32, %c0_i32_0 : i32, i32
  }
  func.func @transform_2(%arg0: i32) -> (i32, i32) {
    %c0_i32 = arith.constant 0 : i32
    %c0_i32_0 = arith.constant 0 : i32
    %c0_i32_1 = arith.constant 0 : i32
    return %c0_i32, %c0_i32_0 : i32, i32
  }
  func.func @transform_3(%arg0: i32) -> (i32, i32, i32) {
    %c0_i32 = arith.constant 0 : i32
    %c0_i32_0 = arith.constant 0 : i32
    %c0_i32_1 = arith.constant 0 : i32
    %c0_i32_2 = arith.constant 0 : i32
    return %c0_i32, %c0_i32_0, %c0_i32_1 : i32, i32, i32
  }
  func.func @transform_4(%arg0: i32) -> (i32, i32, i32) {
    %c0_i32 = arith.constant 0 : i32
    %c0_i32_0 = arith.constant 0 : i32
    %c0_i32_1 = arith.constant 0 : i32
    return %arg0, %c0_i32, %c0_i32_0 : i32, i32, i32
  }
}

</mosaic_0001>

<llo_original>
// kernel: forward.1
$region0: #{forward.1}
  #allocation0 [shape = 'u32[]', space=smem, size = 0x4, offset = 0x4, fixed_abs, tag = 'smem constant byte address 0x4 - core index']
  #allocation1 [shape = 'u32[72,128]{1,0:T(1,128)}', space=vmem, size = 0x9000, scoped, tag = 'internal scratch']
  %s0 = inlined_call_operand.vmem [shape: f32[2,226,350], index: 0, kind: input, shape index: {}]
  %s1 = inlined_call_operand.vmem [shape: f32[2088,128], index: 1, kind: input, shape index: {}]
  %s2 = inlined_call_operand.vmem [shape: f32[168,256], index: 2, kind: input, shape index: {}]
  %s3 = inlined_call_operand.vmem [shape: f32[3,40,256], index: 3, kind: input, shape index: {}]
  %s4 = inlined_call_operand.hbm [shape: f32[2,1,128], index: 4, kind: output, shape index: {}]
  %s5 = sld [smem:[#allocation0]]
  $region49: #{forward.1} parent=0
    _
  %s7 = ssub.s32 1, %s5
  %s8 = scalar_select 0, %s7, %s5
  $region1: #{forward.1} parent=0
    #allocation2 [shape = 'u8[1024]{0}', space=vmem, size = 0x400, scoped, tag = 'output window, operand 0']
    #allocation3 [shape = 's32[2]{0}', space=sflag, size = 0x8, scoped, tag = 'scoped memory for forward.1']
    %9 = vsyncpa [#allocation3], 0
    %s10 = scalar_lea.sflag [#allocation3], 1
    %11 = vsyncpa %s10, 0
    loop: start=0, step=1, limit=4
    $region2: #{forward.1} parent=1 // loop_pre_header
      _
    $region3: #{forward.1} parent=1 // loop_header
      %s13 = sphi 0, %s17
      %p14 = scmp.ge.s32.totalorder %s13, 4
      %s23 = sphi 0, %s25
      %s26 = sphi 0, %s23
      %s27 = sphi 0, %s26
      %s43 = sphi 0, %s27
      %s47 = sphi 0, %s47
      %s49 = sphi 0, %s47
      %s50 = sphi 0, %s49
      %s64 = sphi 0, %s50
      %s68 = sphi 0, %s68
      %s70 = sphi 0, %s68
      %s71 = sphi 0, %s70
      %s85 = sphi 0, %s71
      %s89 = sphi 0, %s89
      %s91 = sphi 0, %s89
      %s92 = sphi 0, %s91
      %s106 = sphi 0, %s92
      %s112 = sphi 0, %s114
      %s115 = sphi 0, %s112
      %s116 = sphi 0, %s115
      %s132 = sphi 0, %s116
    $region4: #{forward.1} parent=1 // loop_header_branch
      %16 = sbr.rel (%p14) target = $region8
    $region5: #{forward.1} parent=1 // loop_body
      %s18 = ssub.s32 %s13, 1
      %s19 = ssub.s32 %s13, 2
      %s20 = sadd.s32 %s13, 1
      %s21 = ssub.s32 %s13, %s20
      %p22 = scmp.eq.s32.totalorder %s21, 0
      %s24 = sadd.s32 %s23, 1
      %s25 = scalar_select %p22, %s23, %s24
      %p28 = pneg %p22
      %p29 = scmp.eq.s32.totalorder %s13, 1
      %p30 = por %p28, %p29
      %p31 = scmp.ne.s32.totalorder %s23, %s26
      %p32 = scmp.eq.s32.totalorder %s13, 0
      %p33 = por %p31, %p32
      %p34 = scmp.ne.s32.totalorder %s23, %s26
      %p35 = scmp.eq.s32.totalorder %s18, 1
      %p36 = por %p34, %p35
      %p37 = scmp.ne.s32.totalorder %s26, %s27
      %p38 = scmp.eq.s32.totalorder %s18, 0
      %p39 = por %p37, %p38
      %p40 = scmp.ne.s32.totalorder %s26, %s27
      %p41 = scmp.eq.s32.totalorder %s19, 1
      %p42 = por %p40, %p41
      %p44 = scmp.ne.s32.totalorder %s27, %s43
      %p45 = scmp.eq.s32.totalorder %s19, 0
      %p46 = por %p44, %p45
      %s48 = sadd.s32 %s47, 1
      %p51 = scmp.eq.s32.totalorder %s13, 1
      %p52 = scmp.ne.s32.totalorder %s47, %s49
      %p53 = scmp.eq.s32.totalorder %s13, 0
      %p54 = por %p52, %p53
      %p55 = scmp.ne.s32.totalorder %s47, %s49
      %p56 = scmp.eq.s32.totalorder %s18, 1
      %p57 = por %p55, %p56
      %p58 = scmp.ne.s32.totalorder %s49, %s50
      %p59 = scmp.eq.s32.totalorder %s18, 0
      %p60 = por %p58, %p59
      %p61 = scmp.ne.s32.totalorder %s49, %s50
      %p62 = scmp.eq.s32.totalorder %s19, 1
      %p63 = por %p61, %p62
      %p65 = scmp.ne.s32.totalorder %s50, %s64
      %p66 = scmp.eq.s32.totalorder %s19, 0
      %p67 = por %p65, %p66
      %s69 = sadd.s32 %s68, 1
      %p72 = scmp.eq.s32.totalorder %s13, 1
      %p73 = scmp.ne.s32.totalorder %s68, %s70
      %p74 = scmp.eq.s32.totalorder %s13, 0
      %p75 = por %p73, %p74
      %p76 = scmp.ne.s32.totalorder %s68, %s70
      %p77 = scmp.eq.s32.totalorder %s18, 1
      %p78 = por %p76, %p77
      %p79 = scmp.ne.s32.totalorder %s70, %s71
      %p80 = scmp.eq.s32.totalorder %s18, 0
      %p81 = por %p79, %p80
      %p82 = scmp.ne.s32.totalorder %s70, %s71
      %p83 = scmp.eq.s32.totalorder %s19, 1
      %p84 = por %p82, %p83
      %p86 = scmp.ne.s32.totalorder %s71, %s85
      %p87 = scmp.eq.s32.totalorder %s19, 0
      %p88 = por %p86, %p87
      %s90 = sadd.s32 %s89, 1
      %p93 = scmp.eq.s32.totalorder %s13, 1
      %p94 = scmp.ne.s32.totalorder %s89, %s91
      %p95 = scmp.eq.s32.totalorder %s13, 0
      %p96 = por %p94, %p95
      %p97 = scmp.ne.s32.totalorder %s89, %s91
      %p98 = scmp.eq.s32.totalorder %s18, 1
      %p99 = por %p97, %p98
      %p100 = scmp.ne.s32.totalorder %s91, %s92
      %p101 = scmp.eq.s32.totalorder %s18, 0
      %p102 = por %p100, %p101
      %p103 = scmp.ne.s32.totalorder %s91, %s92
      %p104 = scmp.eq.s32.totalorder %s19, 1
      %p105 = por %p103, %p104
      %p107 = scmp.ne.s32.totalorder %s92, %s106
      %p108 = scmp.eq.s32.totalorder %s19, 0
      %p109 = por %p107, %p108
      %s110 = ssub.s32 %s13, %s20
      %p111 = scmp.eq.s32.totalorder %s110, 0
      %s113 = sadd.s32 %s112, 1
      %s114 = scalar_select %p111, %s112, %s113
      %p117 = pneg %p111
      %p118 = scmp.eq.s32.totalorder %s13, 1
      %p119 = por %p117, %p118
      %p120 = scmp.ne.s32.totalorder %s112, %s115
      %p121 = scmp.eq.s32.totalorder %s13, 0
      %p122 = por %p120, %p121
      %p123 = scmp.ne.s32.totalorder %s112, %s115
      %p124 = scmp.eq.s32.totalorder %s18, 1
      %p125 = por %p123, %p124
      %p126 = scmp.ne.s32.totalorder %s115, %s116
      %p127 = scmp.eq.s32.totalorder %s18, 0
      %p128 = por %p126, %p127
      %p129 = scmp.ne.s32.totalorder %s115, %s116
      %p130 = scmp.eq.s32.totalorder %s19, 1
      %p131 = por %p129, %p130
      %p133 = scmp.ne.s32.totalorder %s116, %s132
      %p134 = scmp.eq.s32.totalorder %s19, 0
      %p135 = por %p133, %p134
      %p136 = scmp.le.s32.totalorder 1, %s13
      %p137 = scmp.lt.s32.totalorder %s13, 3
      %p138 = pnand %p136, %p137
      %p139 = pneg %p138
      // Predicated region
      $region9: #{forward.1} parent=5 // pred_check
        _
      $region10: #{forward.1} parent=5 // pred_check_branch
        %141 = sbr.rel (%p138) target = $region12
      $region11: #{forward.1} parent=5 // pred_region
        %s142 = ssub.s32 %s13, 1
        // Predicated region
        $region13: #{forward.1} parent=11 // pred_check
          %p143 = pneg %p60
        $region14: #{forward.1} parent=11 // pred_check_branch
          %145 = sbr.rel (%p143) target = $region16
        $region15: #{forward.1} parent=11 // pred_region
          _
        $region16: #{forward.1} parent=11 // pred_fallthru
          _
        // Predicated region
        $region17: #{forward.1} parent=11 // pred_check
          %p146 = pneg %p81
        $region18: #{forward.1} parent=11 // pred_check_branch
          %148 = sbr.rel (%p146) target = $region20
        $region19: #{forward.1} parent=11 // pred_region
          _
        $region20: #{forward.1} parent=11 // pred_fallthru
          _
        // Predicated region
        $region21: #{forward.1} parent=11 // pred_check
          %p149 = pneg %p102
        $region22: #{forward.1} parent=11 // pred_check_branch
          %151 = sbr.rel (%p149) target = $region24
        $region23: #{forward.1} parent=11 // pred_region
          _
        $region24: #{forward.1} parent=11 // pred_fallthru
          _
      $region12: #{forward.1} parent=5 // pred_fallthru
        _
      %p152 = scmp.lt.s32.totalorder %s13, 2
      // Predicated region
      $region25: #{forward.1} parent=5 // pred_check
        %p153 = pneg %p152
      $region26: #{forward.1} parent=5 // pred_check_branch
        %155 = sbr.rel (%p153) target = $region28
      $region27: #{forward.1} parent=5 // pred_region
        // Predicated region
        $region29: #{forward.1} parent=27 // pred_check
          %p156 = pneg %p33
        $region30: #{forward.1} parent=27 // pred_check_branch
          %158 = sbr.rel (%p156) target = $region32
        $region31: #{forward.1} parent=27 // pred_region
          %p159 = scmp.lt.s32.totalorder %s13, 1
          %s160 = scalar_select %p159, %s13, 1
          %s161 = smul.addr %s160, 87
          %s162 = smul.addr %s161, 8
          %s163 = scalar_lea.vmem %s0, %s162
        $region32: #{forward.1} parent=27 // pred_fallthru
          _
      $region28: #{forward.1} parent=5 // pred_fallthru
        _
      %p164 = scmp.le.s32.totalorder 1, %s13
      %p165 = scmp.lt.s32.totalorder %s13, 3
      %p166 = pnand %p164, %p165
      %p167 = pneg %p166
      // Predicated region
      $region33: #{forward.1} parent=5 // pred_check
        _
      $region34: #{forward.1} parent=5 // pred_check_branch
        %169 = sbr.rel (%p166) target = $region36
      $region35: #{forward.1} parent=5 // pred_region
        %s170 = ssub.s32 %s13, 1
        %p171 = scmp.lt.s32.totalorder %s18, 1
        %s172 = scalar_select %p171, %s18, 1
        %s173 = smul.addr %s172, 87
        %s174 = smul.addr %s173, 8
        %s175 = scalar_lea.vmem %s0, %s174
        %p176 = pneg %p39
        %p177 = pneg %p36
        %p178 = pneg %p60
        %p179 = pneg %p57
        %p180 = pneg %p81
        %p181 = pneg %p78
        %p182 = pneg %p102
        %p183 = pneg %p99
        %p184 = pneg %p128
        %p185 = pneg %p125
        %s186 = sand.u32 %s115, 1
        %s187 = scalar_lea.sflag [#allocation3], %s186
        %s188 = sand.u32 %s115, 1
        %s189 = scalar_lea.vmem [#allocation2], %s188
        %p190 = scmp.lt.s32.totalorder %s18, 1
        %s191 = scalar_select %p190, %s18, 1
        %s192 = smul.addr %s191, 87
        %s193 = smul.addr %s192, 8
        %s194 = scalar_lea.vmem %s0, %s193
        %v195 = vld [vmem:[%s1] sm:$0xff]
        %v196 = vld [vmem:[%s1 + $0x8] sm:$0xff]
        %v197 = vld [vmem:[%s1 + $0x10] sm:$0xff]
        %v198 = vld [vmem:[%s1 + $0x18] sm:$0xff]
        %v199 = vld [vmem:[%s1 + $0x20] sm:$0xff]
        %v200 = vld [vmem:[%s1 + $0x28] sm:$0xff]
        %v201 = vld [vmem:[%s1 + $0x30] sm:$0xff]
        %v202 = vld [vmem:[%s1 + $0x38] sm:$0xff]
        %v203 = vld [vmem:[%s1 + $0x40] sm:$0xff]
        %v204 = vld [vmem:[%s1 + $0x48] sm:$0xff]
        %v205 = vld [vmem:[%s1 + $0x50] sm:$0xff]
        %v206 = vld [vmem:[%s1 + $0x58] sm:$0xff]
        %v207 = vld [vmem:[%s1 + $0x60] sm:$0x7]
        %v208 = vld [vmem:[%s1 + $0x68] sm:$0xff]
        %v209 = vld [vmem:[%s1 + $0x70] sm:$0xff]
        %v210 = vld [vmem:[%s1 + $0x78] sm:$0xff]
        %v211 = vld [vmem:[%s1 + $0x80] sm:$0xff]
        %v212 = vld [vmem:[%s1 + $0x88] sm:$0xff]
        %v213 = vld [vmem:[%s1 + $0x90] sm:$0xff]
        %v214 = vld [vmem:[%s1 + $0x98] sm:$0xff]
        %v215 = vld [vmem:[%s1 + $0xa0] sm:$0xff]
        %v216 = vld [vmem:[%s1 + $0xa8] sm:$0xff]
        %v217 = vld [vmem:[%s1 + $0xb0] sm:$0xff]
        %v218 = vld [vmem:[%s1 + $0xb8] sm:$0xff]
        %v219 = vld [vmem:[%s1 + $0xc0] sm:$0xff]
        %v220 = vld [vmem:[%s1 + $0xc8] sm:$0xff]
        %v221 = vld [vmem:[%s1 + $0xd0] sm:$0xff]
        %v222 = vld [vmem:[%s1 + $0xd8] sm:$0x7]
        %v223 = vld [vmem:[%s1 + $0xe0] sm:$0xff]
        %v224 = vld [vmem:[%s1 + $0xe8] sm:$0xff]
        %v225 = vld [vmem:[%s1 + $0xf0] sm:$0xff]
        %v226 = vld [vmem:[%s1 + $0xf8] sm:$0xff]
        %v227 = vld [vmem:[%s1 + $0x100] sm:$0xff]
        %v228 = vld [vmem:[%s1 + $0x108] sm:$0xff]
        %v229 = vld [vmem:[%s194] sm:$0xff]
        %v230 = vld [vmem:[%s194 + $0x8] sm:$0xff]
        %v231 = vld [vmem:[%s194 + $0x10] sm:$0xff]
        %v232 = vld [vmem:[%s194 + $0x18] sm:$0xff]
        %v233 = vld [vmem:[%s194 + $0x20] sm:$0xff]
        %v234 = vld [vmem:[%s194 + $0x28] sm:$0xff]
        %v235 = vld [vmem:[%s194 + $0x30] sm:$0xff]
        %v236 = vld [vmem:[%s194 + $0x38] sm:$0xff]
        %v237 = vld [vmem:[%s194 + $0x40] sm:$0xff]
        %v238 = vld [vmem:[%s194 + $0x48] sm:$0xff]
        %v239 = vld [vmem:[%s194 + $0x50] sm:$0xff]
        %v240 = vld [vmem:[%s194 + $0x58] sm:$0xff]
        %v241 = vld [vmem:[%s194 + $0x60] sm:$0xff]
        %v242 = vld [vmem:[%s194 + $0x68] sm:$0xff]
        %v243 = vld [vmem:[%s194 + $0x70] sm:$0xff]
        %v244 = vld [vmem:[%s194 + $0x78] sm:$0xff]
        %v245 = vld [vmem:[%s194 + $0x80] sm:$0xff]
        %v246 = vld [vmem:[%s194 + $0x88] sm:$0xff]
        %v247 = vld [vmem:[%s194 + $0x90] sm:$0xff]
        %v248 = vld [vmem:[%s194 + $0x98] sm:$0xff]
        %v249 = vld [vmem:[%s194 + $0xa0] sm:$0xff]
        %v250 = vld [vmem:[%s194 + $0xa8] sm:$0xff]
        %v251 = vld [vmem:[%s194 + $0xb0] sm:$0xff]
        %v252 = vld [vmem:[%s194 + $0xb8] sm:$0xff]
        %v253 = vld [vmem:[%s194 + $0xc0] sm:$0xff]
        %v254 = vld [vmem:[%s194 + $0xc8] sm:$0xff]
        %v255 = vld [vmem:[%s194 + $0xd0] sm:$0xff]
        %v256 = vld [vmem:[%s194 + $0xd8] sm:$0xff]
        %v257 = vld [vmem:[%s194 + $0xe0] sm:$0xff]
        %v258 = vld [vmem:[%s194 + $0xe8] sm:$0xff]
        %v259 = vld [vmem:[%s194 + $0xf0] sm:$0xff]
        %v260 = vld [vmem:[%s194 + $0xf8] sm:$0xff]
        %v261 = vld [vmem:[%s194 + $0x100] sm:$0xff]
        %v262 = vld [vmem:[%s194 + $0x108] sm:$0xff]
        %v263 = vld [vmem:[%s194 + $0x110] sm:$0xff]
        %v264 = vld [vmem:[%s194 + $0x118] sm:$0xff]
        %v265 = vld [vmem:[%s194 + $0x120] sm:$0xff]
        %v266 = vld [vmem:[%s194 + $0x128] sm:$0xff]
        %v267 = vld [vmem:[%s194 + $0x130] sm:$0xff]
        %v268 = vld [vmem:[%s194 + $0x138] sm:$0xff]
        %v269 = vld [vmem:[%s194 + $0x140] sm:$0xff]
        %v270 = vld [vmem:[%s194 + $0x148] sm:$0xff]
        %v271 = vld [vmem:[%s194 + $0x150] sm:$0xff]
        %v272 = vld [vmem:[%s194 + $0x158] sm:$0xff]
        %v273 = vld [vmem:[%s194 + $0x160] sm:$0xff]
        %v274 = vld [vmem:[%s194 + $0x168] sm:$0xff]
        %v275 = vld [vmem:[%s194 + $0x170] sm:$0xff]
        %v276 = vld [vmem:[%s194 + $0x178] sm:$0xff]
        %v277 = vld [vmem:[%s194 + $0x180] sm:$0xff]
        %v278 = vld [vmem:[%s194 + $0x188] sm:$0xff]
        %v279 = vld [vmem:[%s194 + $0x190] sm:$0xff]
        %v280 = vld [vmem:[%s194 + $0x198] sm:$0xff]
        %v281 = vld [vmem:[%s194 + $0x1a0] sm:$0xff]
        %v282 = vld [vmem:[%s194 + $0x1a8] sm:$0xff]
        %v283 = vld [vmem:[%s194 + $0x1b0] sm:$0xff]
        %v284 = vld [vmem:[%s194 + $0x1b8] sm:$0xff]
        %v285 = vld [vmem:[%s194 + $0x1c0] sm:$0xff]
        %v286 = vld [vmem:[%s194 + $0x1c8] sm:$0xff]
        %v287 = vld [vmem:[%s194 + $0x1d0] sm:$0xff]
        %v288 = vld [vmem:[%s194 + $0x1d8] sm:$0xff]
        %v289 = vld [vmem:[%s194 + $0x1e0] sm:$0xff]
        %v290 = vld [vmem:[%s194 + $0x1e8] sm:$0xff]
        %v291 = vld [vmem:[%s194 + $0x1f0] sm:$0xff]
        %v292 = vld [vmem:[%s194 + $0x1f8] sm:$0xff]
        %v293 = vld [vmem:[%s194 + $0x200] sm:$0xff]
        %v294 = vld [vmem:[%s194 + $0x208] sm:$0xff]
        %v295 = vld [vmem:[%s194 + $0x210] sm:$0xff]
        %v296 = vld [vmem:[%s194 + $0x218] sm:$0xff]
        %v297 = vld [vmem:[%s194 + $0x220] sm:$0xff]
        %v298 = vld [vmem:[%s194 + $0x228] sm:$0xff]
        %v299 = vld [vmem:[%s194 + $0x230] sm:$0xff]
        %v300 = vld [vmem:[%s194 + $0x238] sm:$0xff]
        %v301 = vld [vmem:[%s194 + $0x240] sm:$0xff]
        %v302 = vld [vmem:[%s194 + $0x248] sm:$0xff]
        %v303 = vld [vmem:[%s194 + $0x250] sm:$0xff]
        %v304 = vld [vmem:[%s194 + $0x258] sm:$0xff]
        %v305 = vld [vmem:[%s194 + $0x260] sm:$0xff]
        %v306 = vld [vmem:[%s194 + $0x268] sm:$0xff]
        %v307 = vld [vmem:[%s194 + $0x270] sm:$0xff]
        %v308 = vld [vmem:[%s194 + $0x278] sm:$0xff]
        %v309 = vld [vmem:[%s194 + $0x280] sm:$0xff]
        %v310 = vld [vmem:[%s194 + $0x288] sm:$0xff]
        %v311 = vld [vmem:[%s194 + $0x290] sm:$0xff]
        %v312 = vld [vmem:[%s194 + $0x298] sm:$0xff]
        %v313 = vld [vmem:[%s194 + $0x2a0] sm:$0x3]
        %v314 = vld [vmem:[%s194 + $0x2a8] sm:$0x3]
        %v315 = vld [vmem:[%s194 + $0x2b0] sm:$0x3]
        %v316 = vld [vmem:[%s1 + $0x110] sm:$0xff]
        %v317 = vld [vmem:[%s1 + $0x118] sm:$0xff]
        %v318 = vld [vmem:[%s1 + $0x120] sm:$0xff]
        %v319 = vld [vmem:[%s1 + $0x128] sm:$0xff]
        %v320 = vld [vmem:[%s1 + $0x130] sm:$0xff]
        %v321 = vld [vmem:[%s1 + $0x138] sm:$0xff]
        %v322 = vld [vmem:[%s1 + $0x140] sm:$0xff]
        %v323 = vld [vmem:[%s1 + $0x148] sm:$0xff]
        %v324 = vld [vmem:[%s1 + $0x150] sm:$0xff]
        %v325 = vld [vmem:[%s1 + $0x158] sm:$0xff]
        %v326 = vld [vmem:[%s1 + $0x160] sm:$0xff]
        %v327 = vld [vmem:[%s1 + $0x168] sm:$0xff]
        %v328 = vld [vmem:[%s1 + $0x170] sm:$0xff]
        %v329 = vld [vmem:[%s1 + $0x178] sm:$0xff]
        %v330 = vld [vmem:[%s1 + $0x180] sm:$0xff]
        %v331 = vld [vmem:[%s1 + $0x188] sm:$0xff]
        %v332 = vld [vmem:[%s1 + $0x190] sm:$0xff]
        %v333 = vld [vmem:[%s1 + $0x198] sm:$0xff]
        %v334 = vld [vmem:[%s1 + $0x1a0] sm:$0xff]
        %v335 = vld [vmem:[%s1 + $0x1a8] sm:$0xff]
        %v336 = vld [vmem:[%s1 + $0x1b0] sm:$0xff]
        %v337 = vld [vmem:[%s1 + $0x1b8] sm:$0xff]
        %v338 = vld [vmem:[%s1 + $0x1c0] sm:$0xff]
        %v339 = vld [vmem:[%s1 + $0x1c8] sm:$0xff]
        %v340 = vld [vmem:[%s1 + $0x1d0] sm:$0xff]
        %v341 = vld [vmem:[%s1 + $0x1d8] sm:$0xff]
        %v342 = vld [vmem:[%s1 + $0x1e0] sm:$0xff]
        %v343 = vld [vmem:[%s1 + $0x1e8] sm:$0xff]
        %v344 = vld [vmem:[%s1 + $0x1f0] sm:$0xff]
        %v345 = vld [vmem:[%s1 + $0x1f8] sm:$0xff]
        %v346 = vld [vmem:[%s1 + $0x200] sm:$0xff]
        %v347 = vld [vmem:[%s1 + $0x208] sm:$0xff]
        %v348 = vld [vmem:[%s1 + $0x210] sm:$0xff]
        %v349 = vld [vmem:[%s1 + $0x218] sm:$0xff]
        %v350 = vld [vmem:[%s1 + $0x220] sm:$0xff]
        %v351 = vld [vmem:[%s1 + $0x228] sm:$0xff]
        %v352 = vld [vmem:[%s1 + $0x230] sm:$0xff]
        %v353 = vld [vmem:[%s1 + $0x238] sm:$0xff]
        %v354 = vld [vmem:[%s1 + $0x240] sm:$0xff]
        %v355 = vld [vmem:[%s1 + $0x248] sm:$0xff]
        %v356 = vld [vmem:[%s1 + $0x250] sm:$0xff]
        %v357 = vld [vmem:[%s1 + $0x258] sm:$0xff]
        %v358 = vld [vmem:[%s1 + $0x260] sm:$0xff]
        %v359 = vld [vmem:[%s1 + $0x268] sm:$0x3f]
        %v360 = vld [vmem:[%s1 + $0x270] sm:$0x1]
        %v361 = vperm.slane %v360, 0
        %vm362 = vcmask 769024
        %v364 = vsel %vm362, %v231, 0
        %v367 = vsel %vm362, %v234, 0
        %v370 = vsel %vm362, %v237, 0
        %v373 = vsel %vm362, %v240, 0
        %v376 = vsel %vm362, %v243, 0
        %v379 = vsel %vm362, %v246, 0
        %v382 = vsel %vm362, %v249, 0
        %v385 = vsel %vm362, %v252, 0
        %v388 = vsel %vm362, %v255, 0
        %v391 = vsel %vm362, %v258, 0
        %v394 = vsel %vm362, %v261, 0
        %v397 = vsel %vm362, %v264, 0
        %v400 = vsel %vm362, %v267, 0
        %v403 = vsel %vm362, %v270, 0
        %v406 = vsel %vm362, %v273, 0
        %v409 = vsel %vm362, %v276, 0
        %v412 = vsel %vm362, %v279, 0
        %v415 = vsel %vm362, %v282, 0
        %v418 = vsel %vm362, %v285, 0
        %v421 = vsel %vm362, %v288, 0
        %v424 = vsel %vm362, %v291, 0
        %v427 = vsel %vm362, %v294, 0
        %v430 = vsel %vm362, %v297, 0
        %v433 = vsel %vm362, %v300, 0
        %v436 = vsel %vm362, %v303, 0
        %v439 = vsel %vm362, %v306, 0
        %v442 = vsel %vm362, %v309, 0
        %v445 = vsel %vm362, %v312, 0
        %v448 = vsel %vm362, %v315, 0
        %vm450 = vcmask 1045504
        %v452 = vsel %vm450, %v359, 0
        %454 = vmatpush.msra.mxu0 %v331
        %455 = vmatpush.msra.mxu0 %v330
        %456 = vmatpush.msra.mxu0 %v329
        %457 = vmatpush.msra.mxu0 %v328
        %458 = vmatpush.msra.mxu0 %v327
        %459 = vmatpush.msra.mxu0 %v326
        %460 = vmatpush.msra.mxu0 %v325
        %461 = vmatpush.msra.mxu0 %v324
        %462 = vmatpush.msra.mxu0 %v323
        %463 = vmatpush.msra.mxu0 %v322
        %464 = vmatpush.msra.mxu0 %v321
        %465 = vmatpush.msra.mxu0 %v320
        %466 = vmatpush.msra.mxu0 %v319
        %467 = vmatpush.msra.mxu0 %v318
        %468 = vmatpush.msra.mxu0 %v317
        %469 = vmatpush.msra.mxu0 %v316
        %470 = vmatmul.f32.gmra.mxu0 %v229
        %v471 = vpop.f32.mrf.mxu0
        %v472 = vadd.f32 %v361, %v471
        %473 = vmatmul.f32.gmra.mxu0 %v232
        %v474 = vpop.f32.mrf.mxu0
        %v475 = vadd.f32 %v361, %v474
        %476 = vmatmul.f32.gmra.mxu0 %v235
        %v477 = vpop.f32.mrf.mxu0
        %v478 = vadd.f32 %v361, %v477
        %479 = vmatmul.f32.gmra.mxu0 %v238
        %v480 = vpop.f32.mrf.mxu0
        %v481 = vadd.f32 %v361, %v480
        %482 = vmatmul.f32.gmra.mxu0 %v241
        %v483 = vpop.f32.mrf.mxu0
        %v484 = vadd.f32 %v361, %v483
        %485 = vmatmul.f32.gmra.mxu0 %v244
        %v486 = vpop.f32.mrf.mxu0
        %v487 = vadd.f32 %v361, %v486
        %488 = vmatmul.f32.gmra.mxu0 %v247
        %v489 = vpop.f32.mrf.mxu0
        %v490 = vadd.f32 %v361, %v489
        %491 = vmatmul.f32.gmra.mxu0 %v250
        %v492 = vpop.f32.mrf.mxu0
        %v493 = vadd.f32 %v361, %v492
        %494 = vmatmul.f32.gmra.mxu0 %v253
        %v495 = vpop.f32.mrf.mxu0
        %v496 = vadd.f32 %v361, %v495
        %497 = vmatmul.f32.gmra.mxu0 %v256
        %v498 = vpop.f32.mrf.mxu0
        %v499 = vadd.f32 %v361, %v498
        %500 = vmatmul.f32.gmra.mxu0 %v259
        %v501 = vpop.f32.mrf.mxu0
        %v502 = vadd.f32 %v361, %v501
        %503 = vmatmul.f32.gmra.mxu0 %v262
        %v504 = vpop.f32.mrf.mxu0
        %v505 = vadd.f32 %v361, %v504
        %506 = vmatmul.f32.gmra.mxu0 %v265
        %v507 = vpop.f32.mrf.mxu0
        %v508 = vadd.f32 %v361, %v507
        %509 = vmatmul.f32.gmra.mxu0 %v268
        %v510 = vpop.f32.mrf.mxu0
        %v511 = vadd.f32 %v361, %v510
        %512 = vmatmul.f32.gmra.mxu0 %v271
        %v513 = vpop.f32.mrf.mxu0
        %v514 = vadd.f32 %v361, %v513
        %515 = vmatmul.f32.gmra.mxu0 %v274
        %v516 = vpop.f32.mrf.mxu0
        %v517 = vadd.f32 %v361, %v516
        %518 = vmatmul.f32.gmra.mxu0 %v277
        %v519 = vpop.f32.mrf.mxu0
        %v520 = vadd.f32 %v361, %v519
        %521 = vmatmul.f32.gmra.mxu0 %v280
        %v522 = vpop.f32.mrf.mxu0
        %v523 = vadd.f32 %v361, %v522
        %524 = vmatmul.f32.gmra.mxu0 %v283
        %v525 = vpop.f32.mrf.mxu0
        %v526 = vadd.f32 %v361, %v525
        %527 = vmatmul.f32.gmra.mxu0 %v286
        %v528 = vpop.f32.mrf.mxu0
        %v529 = vadd.f32 %v361, %v528
        %530 = vmatmul.f32.gmra.mxu0 %v289
        %v531 = vpop.f32.mrf.mxu0
        %v532 = vadd.f32 %v361, %v531
        %533 = vmatmul.f32.gmra.mxu0 %v292
        %v534 = vpop.f32.mrf.mxu0
        %v535 = vadd.f32 %v361, %v534
        %536 = vmatmul.f32.gmra.mxu0 %v295
        %v537 = vpop.f32.mrf.mxu0
        %v538 = vadd.f32 %v361, %v537
        %539 = vmatmul.f32.gmra.mxu0 %v298
        %v540 = vpop.f32.mrf.mxu0
        %v541 = vadd.f32 %v361, %v540
        %542 = vmatmul.f32.gmra.mxu0 %v301
        %v543 = vpop.f32.mrf.mxu0
        %v544 = vadd.f32 %v361, %v543
        %545 = vmatmul.f32.gmra.mxu0 %v304
        %v546 = vpop.f32.mrf.mxu0
        %v547 = vadd.f32 %v361, %v546
        %548 = vmatmul.f32.gmra.mxu0 %v307
        %v549 = vpop.f32.mrf.mxu0
        %v550 = vadd.f32 %v361, %v549
        %551 = vmatmul.f32.gmra.mxu0 %v310
        %v552 = vpop.f32.mrf.mxu0
        %v553 = vadd.f32 %v361, %v552
        %554 = vmatmul.f32.gmra.mxu0 %v313
        %v555 = vpop.f32.mrf.mxu0
        %v556 = vadd.f32 %v361, %v555
        %557 = vdwg.mxu0
        %558 = vmatpush.msra.mxu0 %v347
        %559 = vmatpush.msra.mxu0 %v346
        %560 = vmatpush.msra.mxu0 %v345
        %561 = vmatpush.msra.mxu0 %v344
        %562 = vmatpush.msra.mxu0 %v343
        %563 = vmatpush.msra.mxu0 %v342
        %564 = vmatpush.msra.mxu0 %v341
        %565 = vmatpush.msra.mxu0 %v340
        %566 = vmatpush.msra.mxu0 %v339
        %567 = vmatpush.msra.mxu0 %v338
        %568 = vmatpush.msra.mxu0 %v337
        %569 = vmatpush.msra.mxu0 %v336
        %570 = vmatpush.msra.mxu0 %v335
        %571 = vmatpush.msra.mxu0 %v334
        %572 = vmatpush.msra.mxu0 %v333
        %573 = vmatpush.msra.mxu0 %v332
        %574 = vmatmul.f32.gmra.mxu0 %v230
        %v575 = vpop.f32.mrf.mxu0
        %v576 = vadd.f32 %v472, %v575
        %577 = vmatmul.f32.gmra.mxu0 %v233
        %v578 = vpop.f32.mrf.mxu0
        %v579 = vadd.f32 %v475, %v578
        %580 = vmatmul.f32.gmra.mxu0 %v236
        %v581 = vpop.f32.mrf.mxu0
        %v582 = vadd.f32 %v478, %v581
        %583 = vmatmul.f32.gmra.mxu0 %v239
        %v584 = vpop.f32.mrf.mxu0
        %v585 = vadd.f32 %v481, %v584
        %586 = vmatmul.f32.gmra.mxu0 %v242
        %v587 = vpop.f32.mrf.mxu0
        %v588 = vadd.f32 %v484, %v587
        %589 = vmatmul.f32.gmra.mxu0 %v245
        %v590 = vpop.f32.mrf.mxu0
        %v591 = vadd.f32 %v487, %v590
        %592 = vmatmul.f32.gmra.mxu0 %v248
        %v593 = vpop.f32.mrf.mxu0
        %v594 = vadd.f32 %v490, %v593
        %595 = vmatmul.f32.gmra.mxu0 %v251
        %v596 = vpop.f32.mrf.mxu0
        %v597 = vadd.f32 %v493, %v596
        %598 = vmatmul.f32.gmra.mxu0 %v254
        %v599 = vpop.f32.mrf.mxu0
        %v600 = vadd.f32 %v496, %v599
        %601 = vmatmul.f32.gmra.mxu0 %v257
        %v602 = vpop.f32.mrf.mxu0
        %v603 = vadd.f32 %v499, %v602
        %604 = vmatmul.f32.gmra.mxu0 %v260
        %v605 = vpop.f32.mrf.mxu0
        %v606 = vadd.f32 %v502, %v605
        %607 = vmatmul.f32.gmra.mxu0 %v263
        %v608 = vpop.f32.mrf.mxu0
        %v609 = vadd.f32 %v505, %v608
        %610 = vmatmul.f32.gmra.mxu0 %v266
        %v611 = vpop.f32.mrf.mxu0
        %v612 = vadd.f32 %v508, %v611
        %613 = vmatmul.f32.gmra.mxu0 %v269
        %v614 = vpop.f32.mrf.mxu0
        %v615 = vadd.f32 %v511, %v614
        %616 = vmatmul.f32.gmra.mxu0 %v272
        %v617 = vpop.f32.mrf.mxu0
        %v618 = vadd.f32 %v514, %v617
        %619 = vmatmul.f32.gmra.mxu0 %v275
        %v620 = vpop.f32.mrf.mxu0
        %v621 = vadd.f32 %v517, %v620
        %622 = vmatmul.f32.gmra.mxu0 %v278
        %v623 = vpop.f32.mrf.mxu0
        %v624 = vadd.f32 %v520, %v623
        %625 = vmatmul.f32.gmra.mxu0 %v281
        %v626 = vpop.f32.mrf.mxu0
        %v627 = vadd.f32 %v523, %v626
        %628 = vmatmul.f32.gmra.mxu0 %v284
        %v629 = vpop.f32.mrf.mxu0
        %v630 = vadd.f32 %v526, %v629
        %631 = vmatmul.f32.gmra.mxu0 %v287
        %v632 = vpop.f32.mrf.mxu0
        %v633 = vadd.f32 %v529, %v632
        %634 = vmatmul.f32.gmra.mxu0 %v290
        %v635 = vpop.f32.mrf.mxu0
        %v636 = vadd.f32 %v532, %v635
        %637 = vmatmul.f32.gmra.mxu0 %v293
        %v638 = vpop.f32.mrf.mxu0
        %v639 = vadd.f32 %v535, %v638
        %640 = vmatmul.f32.gmra.mxu0 %v296
        %v641 = vpop.f32.mrf.mxu0
        %v642 = vadd.f32 %v538, %v641
        %643 = vmatmul.f32.gmra.mxu0 %v299
        %v644 = vpop.f32.mrf.mxu0
        %v645 = vadd.f32 %v541, %v644
        %646 = vmatmul.f32.gmra.mxu0 %v302
        %v647 = vpop.f32.mrf.mxu0
        %v648 = vadd.f32 %v544, %v647
        %649 = vmatmul.f32.gmra.mxu0 %v305
        %v650 = vpop.f32.mrf.mxu0
        %v651 = vadd.f32 %v547, %v650
        %652 = vmatmul.f32.gmra.mxu0 %v308
        %v653 = vpop.f32.mrf.mxu0
        %v654 = vadd.f32 %v550, %v653
        %655 = vmatmul.f32.gmra.mxu0 %v311
        %v656 = vpop.f32.mrf.mxu0
        %v657 = vadd.f32 %v553, %v656
        %658 = vmatmul.f32.gmra.mxu0 %v314
        %v659 = vpop.f32.mrf.mxu0
        %v660 = vadd.f32 %v556, %v659
        %661 = vdwg.mxu0
        %662 = vmatpush.msra.mxu0 0.0
        %663 = vmatpush.msra.mxu0 0.0
        %664 = vmatpush.msra.mxu0 0.0
        %665 = vmatpush.msra.mxu0 0.0
        %666 = vmatpush.msra.mxu0 %v452
        %667 = vmatpush.msra.mxu0 %v358
        %668 = vmatpush.msra.mxu0 %v357
        %669 = vmatpush.msra.mxu0 %v356
        %670 = vmatpush.msra.mxu0 %v355
        %671 = vmatpush.msra.mxu0 %v354
        %672 = vmatpush.msra.mxu0 %v353
        %673 = vmatpush.msra.mxu0 %v352
        %674 = vmatpush.msra.mxu0 %v351
        %675 = vmatpush.msra.mxu0 %v350
        %676 = vmatpush.msra.mxu0 %v349
        %677 = vmatpush.msra.mxu0 %v348
        %678 = vmatmul.f32.gmra.mxu0 %v364
        %v679 = vpop.f32.mrf.mxu0
        %v680 = vadd.f32 %v576, %v679
        %681 = vmatmul.f32.gmra.mxu0 %v367
        %v682 = vpop.f32.mrf.mxu0
        %v683 = vadd.f32 %v579, %v682
        %684 = vmatmul.f32.gmra.mxu0 %v370
        %v685 = vpop.f32.mrf.mxu0
        %v686 = vadd.f32 %v582, %v685
        %687 = vmatmul.f32.gmra.mxu0 %v373
        %v688 = vpop.f32.mrf.mxu0
        %v689 = vadd.f32 %v585, %v688
        %690 = vmatmul.f32.gmra.mxu0 %v376
        %v691 = vpop.f32.mrf.mxu0
        %v692 = vadd.f32 %v588, %v691
        %693 = vmatmul.f32.gmra.mxu0 %v379
        %v694 = vpop.f32.mrf.mxu0
        %v695 = vadd.f32 %v591, %v694
        %696 = vmatmul.f32.gmra.mxu0 %v382
        %v697 = vpop.f32.mrf.mxu0
        %v698 = vadd.f32 %v594, %v697
        %699 = vmatmul.f32.gmra.mxu0 %v385
        %v700 = vpop.f32.mrf.mxu0
        %v701 = vadd.f32 %v597, %v700
        %702 = vmatmul.f32.gmra.mxu0 %v388
        %v703 = vpop.f32.mrf.mxu0
        %v704 = vadd.f32 %v600, %v703
        %705 = vmatmul.f32.gmra.mxu0 %v391
        %v706 = vpop.f32.mrf.mxu0
        %v707 = vadd.f32 %v603, %v706
        %708 = vmatmul.f32.gmra.mxu0 %v394
        %v709 = vpop.f32.mrf.mxu0
        %v710 = vadd.f32 %v606, %v709
        %711 = vmatmul.f32.gmra.mxu0 %v397
        %v712 = vpop.f32.mrf.mxu0
        %v713 = vadd.f32 %v609, %v712
        %714 = vmatmul.f32.gmra.mxu0 %v400
        %v715 = vpop.f32.mrf.mxu0
        %v716 = vadd.f32 %v612, %v715
        %717 = vmatmul.f32.gmra.mxu0 %v403
        %v718 = vpop.f32.mrf.mxu0
        %v719 = vadd.f32 %v615, %v718
        %720 = vmatmul.f32.gmra.mxu0 %v406
        %v721 = vpop.f32.mrf.mxu0
        %v722 = vadd.f32 %v618, %v721
        %723 = vmatmul.f32.gmra.mxu0 %v409
        %v724 = vpop.f32.mrf.mxu0
        %v725 = vadd.f32 %v621, %v724
        %726 = vmatmul.f32.gmra.mxu0 %v412
        %v727 = vpop.f32.mrf.mxu0
        %v728 = vadd.f32 %v624, %v727
        %729 = vmatmul.f32.gmra.mxu0 %v415
        %v730 = vpop.f32.mrf.mxu0
        %v731 = vadd.f32 %v627, %v730
        %732 = vmatmul.f32.gmra.mxu0 %v418
        %v733 = vpop.f32.mrf.mxu0
        %v734 = vadd.f32 %v630, %v733
        %735 = vmatmul.f32.gmra.mxu0 %v421
        %v736 = vpop.f32.mrf.mxu0
        %v737 = vadd.f32 %v633, %v736
        %738 = vmatmul.f32.gmra.mxu0 %v424
        %v739 = vpop.f32.mrf.mxu0
        %v740 = vadd.f32 %v636, %v739
        %741 = vmatmul.f32.gmra.mxu0 %v427
        %v742 = vpop.f32.mrf.mxu0
        %v743 = vadd.f32 %v639, %v742
        %744 = vmatmul.f32.gmra.mxu0 %v430
        %v745 = vpop.f32.mrf.mxu0
        %v746 = vadd.f32 %v642, %v745
        %747 = vmatmul.f32.gmra.mxu0 %v433
        %v748 = vpop.f32.mrf.mxu0
        %v749 = vadd.f32 %v645, %v748
        %750 = vmatmul.f32.gmra.mxu0 %v436
        %v751 = vpop.f32.mrf.mxu0
        %v752 = vadd.f32 %v648, %v751
        %753 = vmatmul.f32.gmra.mxu0 %v439
        %v754 = vpop.f32.mrf.mxu0
        %v755 = vadd.f32 %v651, %v754
        %756 = vmatmul.f32.gmra.mxu0 %v442
        %v757 = vpop.f32.mrf.mxu0
        %v758 = vadd.f32 %v654, %v757
        %759 = vmatmul.f32.gmra.mxu0 %v445
        %v760 = vpop.f32.mrf.mxu0
        %v761 = vadd.f32 %v657, %v760
        %762 = vmatmul.f32.gmra.mxu0 %v448
        %v763 = vpop.f32.mrf.mxu0
        %v764 = vadd.f32 %v660, %v763
        %765 = vdwg.mxu0
        %v766 = vld [vmem:[%s1 + $0x278] sm:$0x1]
        %v767 = vperm.slane %v766, 0
        %v768 = vmul.f32 %v680, %v767
        %v769 = vmul.f32 %v683, %v767
        %v770 = vmul.f32 %v686, %v767
        %v771 = vmul.f32 %v689, %v767
        %v772 = vmul.f32 %v692, %v767
        %v773 = vmul.f32 %v695, %v767
        %v774 = vmul.f32 %v698, %v767
        %v775 = vmul.f32 %v701, %v767
        %v776 = vmul.f32 %v704, %v767
        %v777 = vmul.f32 %v707, %v767
        %v778 = vmul.f32 %v710, %v767
        %v779 = vmul.f32 %v713, %v767
        %v780 = vmul.f32 %v716, %v767
        %v781 = vmul.f32 %v719, %v767
        %v782 = vmul.f32 %v722, %v767
        %v783 = vmul.f32 %v725, %v767
        %v784 = vmul.f32 %v728, %v767
        %v785 = vmul.f32 %v731, %v767
        %v786 = vmul.f32 %v734, %v767
        %v787 = vmul.f32 %v737, %v767
        %v788 = vmul.f32 %v740, %v767
        %v789 = vmul.f32 %v743, %v767
        %v790 = vmul.f32 %v746, %v767
        %v791 = vmul.f32 %v749, %v767
        %v792 = vmul.f32 %v752, %v767
        %v793 = vmul.f32 %v755, %v767
        %v794 = vmul.f32 %v758, %v767
        %v795 = vmul.f32 %v761, %v767
        %v796 = vmul.f32 %v764, %v767
        %v797 = vld [vmem:[%s1 + $0x280] sm:$0x1]
        %v798 = vperm.slane %v797, 0
        %v799 = vadd.f32 %v768, %v798
        %v800 = vadd.f32 %v769, %v798
        %v801 = vadd.f32 %v770, %v798
        %v802 = vadd.f32 %v771, %v798
        %v803 = vadd.f32 %v772, %v798
        %v804 = vadd.f32 %v773, %v798
        %v805 = vadd.f32 %v774, %v798
        %v806 = vadd.f32 %v775, %v798
        %v807 = vadd.f32 %v776, %v798
        %v808 = vadd.f32 %v777, %v798
        %v809 = vadd.f32 %v778, %v798
        %v810 = vadd.f32 %v779, %v798
        %v811 = vadd.f32 %v780, %v798
        %v812 = vadd.f32 %v781, %v798
        %v813 = vadd.f32 %v782, %v798
        %v814 = vadd.f32 %v783, %v798
        %v815 = vadd.f32 %v784, %v798
        %v816 = vadd.f32 %v785, %v798
        %v817 = vadd.f32 %v786, %v798
        %v818 = vadd.f32 %v787, %v798
        %v819 = vadd.f32 %v788, %v798
        %v820 = vadd.f32 %v789, %v798
        %v821 = vadd.f32 %v790, %v798
        %v822 = vadd.f32 %v791, %v798
        %v823 = vadd.f32 %v792, %v798
        %v824 = vadd.f32 %v793, %v798
        %v825 = vadd.f32 %v794, %v798
        %v826 = vadd.f32 %v795, %v798
        %v827 = vadd.f32 %v796, %v798
        %vm828 = vcmp.gt.f32.partialorder %v799, 0.0
        %vm829 = vcmp.gt.f32.partialorder %v800, 0.0
        %vm830 = vcmp.gt.f32.partialorder %v801, 0.0
        %vm831 = vcmp.gt.f32.partialorder %v802, 0.0
        %vm832 = vcmp.gt.f32.partialorder %v803, 0.0
        %vm833 = vcmp.gt.f32.partialorder %v804, 0.0
        %vm834 = vcmp.gt.f32.partialorder %v805, 0.0
        %vm835 = vcmp.gt.f32.partialorder %v806, 0.0
        %vm836 = vcmp.gt.f32.partialorder %v807, 0.0
        %vm837 = vcmp.gt.f32.partialorder %v808, 0.0
        %vm838 = vcmp.gt.f32.partialorder %v809, 0.0
        %vm839 = vcmp.gt.f32.partialorder %v810, 0.0
        %vm840 = vcmp.gt.f32.partialorder %v811, 0.0
        %vm841 = vcmp.gt.f32.partialorder %v812, 0.0
        %vm842 = vcmp.gt.f32.partialorder %v813, 0.0
        %vm843 = vcmp.gt.f32.partialorder %v814, 0.0
        %vm844 = vcmp.gt.f32.partialorder %v815, 0.0
        %vm845 = vcmp.gt.f32.partialorder %v816, 0.0
        %vm846 = vcmp.gt.f32.partialorder %v817, 0.0
        %vm847 = vcmp.gt.f32.partialorder %v818, 0.0
        %vm848 = vcmp.gt.f32.partialorder %v819, 0.0
        %vm849 = vcmp.gt.f32.partialorder %v820, 0.0
        %vm850 = vcmp.gt.f32.partialorder %v821, 0.0
        %vm851 = vcmp.gt.f32.partialorder %v822, 0.0
        %vm852 = vcmp.gt.f32.partialorder %v823, 0.0
        %vm853 = vcmp.gt.f32.partialorder %v824, 0.0
        %vm854 = vcmp.gt.f32.partialorder %v825, 0.0
        %vm855 = vcmp.gt.f32.partialorder %v826, 0.0
        %vm856 = vcmp.gt.f32.partialorder %v827, 0.0
        %v857 = vmul.f32 %v799, 1.442695
        %v858 = vpow.pop %v857
        %v859 = vmul.f32 %v800, 1.442695
        %v860 = vpow.pop %v859
        %v861 = vmul.f32 %v801, 1.442695
        %v862 = vpow.pop %v861
        %v863 = vmul.f32 %v802, 1.442695
        %v864 = vpow.pop %v863
        %v865 = vmul.f32 %v803, 1.442695
        %v866 = vpow.pop %v865
        %v867 = vmul.f32 %v804, 1.442695
        %v868 = vpow.pop %v867
        %v869 = vmul.f32 %v805, 1.442695
        %v870 = vpow.pop %v869
        %v871 = vmul.f32 %v806, 1.442695
        %v872 = vpow.pop %v871
        %v873 = vmul.f32 %v807, 1.442695
        %v874 = vpow.pop %v873
        %v875 = vmul.f32 %v808, 1.442695
        %v876 = vpow.pop %v875
        %v877 = vmul.f32 %v809, 1.442695
        %v878 = vpow.pop %v877
        %v879 = vmul.f32 %v810, 1.442695
        %v880 = vpow.pop %v879
        %v881 = vmul.f32 %v811, 1.442695
        %v882 = vpow.pop %v881
        %v883 = vmul.f32 %v812, 1.442695
        %v884 = vpow.pop %v883
        %v885 = vmul.f32 %v813, 1.442695
        %v886 = vpow.pop %v885
        %v887 = vmul.f32 %v814, 1.442695
        %v888 = vpow.pop %v887
        %v889 = vmul.f32 %v815, 1.442695
        %v890 = vpow.pop %v889
        %v891 = vmul.f32 %v816, 1.442695
        %v892 = vpow.pop %v891
        %v893 = vmul.f32 %v817, 1.442695
        %v894 = vpow.pop %v893
        %v895 = vmul.f32 %v818, 1.442695
        %v896 = vpow.pop %v895
        %v897 = vmul.f32 %v819, 1.442695
        %v898 = vpow.pop %v897
        %v899 = vmul.f32 %v820, 1.442695
        %v900 = vpow.pop %v899
        %v901 = vmul.f32 %v821, 1.442695
        %v902 = vpow.pop %v901
        %v903 = vmul.f32 %v822, 1.442695
        %v904 = vpow.pop %v903
        %v905 = vmul.f32 %v823, 1.442695
        %v906 = vpow.pop %v905
        %v907 = vmul.f32 %v824, 1.442695
        %v908 = vpow.pop %v907
        %v909 = vmul.f32 %v825, 1.442695
        %v910 = vpow.pop %v909
        %v911 = vmul.f32 %v826, 1.442695
        %v912 = vpow.pop %v911
        %v913 = vmul.f32 %v827, 1.442695
        %v914 = vpow.pop %v913
        %v915 = vsub.f32 %v858, 1.0
        %v916 = vsub.f32 %v860, 1.0
        %v917 = vsub.f32 %v862, 1.0
        %v918 = vsub.f32 %v864, 1.0
        %v919 = vsub.f32 %v866, 1.0
        %v920 = vsub.f32 %v868, 1.0
        %v921 = vsub.f32 %v870, 1.0
        %v922 = vsub.f32 %v872, 1.0
        %v923 = vsub.f32 %v874, 1.0
        %v924 = vsub.f32 %v876, 1.0
        %v925 = vsub.f32 %v878, 1.0
        %v926 = vsub.f32 %v880, 1.0
        %v927 = vsub.f32 %v882, 1.0
        %v928 = vsub.f32 %v884, 1.0
        %v929 = vsub.f32 %v886, 1.0
        %v930 = vsub.f32 %v888, 1.0
        %v931 = vsub.f32 %v890, 1.0
        %v932 = vsub.f32 %v892, 1.0
        %v933 = vsub.f32 %v894, 1.0
        %v934 = vsub.f32 %v896, 1.0
        %v935 = vsub.f32 %v898, 1.0
        %v936 = vsub.f32 %v900, 1.0
        %v937 = vsub.f32 %v902, 1.0
        %v938 = vsub.f32 %v904, 1.0
        %v939 = vsub.f32 %v906, 1.0
        %v940 = vsub.f32 %v908, 1.0
        %v941 = vsub.f32 %v910, 1.0
        %v942 = vsub.f32 %v912, 1.0
        %v943 = vsub.f32 %v914, 1.0
        %v944 = vsel %vm828, %v799, %v915
        %v945 = vsel %vm829, %v800, %v916
        %v946 = vsel %vm830, %v801, %v917
        %v947 = vsel %vm831, %v802, %v918
        %v948 = vsel %vm832, %v803, %v919
        %v949 = vsel %vm833, %v804, %v920
        %v950 = vsel %vm834, %v805, %v921
        %v951 = vsel %vm835, %v806, %v922
        %v952 = vsel %vm836, %v807, %v923
        %v953 = vsel %vm837, %v808, %v924
        %v954 = vsel %vm838, %v809, %v925
        %v955 = vsel %vm839, %v810, %v926
        %v956 = vsel %vm840, %v811, %v927
        %v957 = vsel %vm841, %v812, %v928
        %v958 = vsel %vm842, %v813, %v929
        %v959 = vsel %vm843, %v814, %v930
        %v960 = vsel %vm844, %v815, %v931
        %v961 = vsel %vm845, %v816, %v932
        %v962 = vsel %vm846, %v817, %v933
        %v963 = vsel %vm847, %v818, %v934
        %v964 = vsel %vm848, %v819, %v935
        %v965 = vsel %vm849, %v820, %v936
        %v966 = vsel %vm850, %v821, %v937
        %v967 = vsel %vm851, %v822, %v938
        %v968 = vsel %vm852, %v823, %v939
        %v969 = vsel %vm853, %v824, %v940
        %v970 = vsel %vm854, %v825, %v941
        %v971 = vsel %vm855, %v826, %v942
        %v972 = vsel %vm856, %v827, %v943
        %v973 = vld [vmem:[%s2] sm:$0xff]
        %v974 = vld [vmem:[%s2 + $0x8] sm:$0xff]
        %v975 = vld [vmem:[%s2 + $0x10] sm:$0x7]
        %v976 = vld [vmem:[%s2 + $0x18] sm:$0x7]
        %vm977 = vcmask 801792
        %v979 = vsel %vm977, %v974, 0
        %v982 = vsel %vm977, %v976, 0
        %vm984 = vcmask 1041408
        %v986 = vsel %vm984, %v972, 0
        %988 = vmatpush.msra.mxu0 %v959
        %989 = vmatpush.msra.mxu0 %v958
        %990 = vmatpush.msra.mxu0 %v957
        %991 = vmatpush.msra.mxu0 %v956
        %992 = vmatpush.msra.mxu0 %v955
        %993 = vmatpush.msra.mxu0 %v954
        %994 = vmatpush.msra.mxu0 %v953
        %995 = vmatpush.msra.mxu0 %v952
        %996 = vmatpush.msra.mxu0 %v951
        %997 = vmatpush.msra.mxu0 %v950
        %998 = vmatpush.msra.mxu0 %v949
        %999 = vmatpush.msra.mxu0 %v948
        %1000 = vmatpush.msra.mxu0 %v947
        %1001 = vmatpush.msra.mxu0 %v946
        %1002 = vmatpush.msra.mxu0 %v945
        %1003 = vmatpush.msra.mxu0 %v944
        %1004 = vmatmul.f32.gmra.mxu0 %v973
        %v1005 = vpop.f32.mrf.mxu0
        %v1006 = vadd.f32 0.0, %v1005
        %1007 = vmatmul.f32.gmra.mxu0 %v975
        %v1008 = vpop.f32.mrf.mxu0
        %v1009 = vadd.f32 0.0, %v1008
        %1010 = vdwg.mxu0
        %1011 = vmatpush.msra.mxu0 0.0
        %1012 = vmatpush.msra.mxu0 0.0
        %1013 = vmatpush.msra.mxu0 0.0
        %1014 = vmatpush.msra.mxu0 %v986
        %1015 = vmatpush.msra.mxu0 %v971
        %1016 = vmatpush.msra.mxu0 %v970
        %1017 = vmatpush.msra.mxu0 %v969
        %1018 = vmatpush.msra.mxu0 %v968
        %1019 = vmatpush.msra.mxu0 %v967
        %1020 = vmatpush.msra.mxu0 %v966
        %1021 = vmatpush.msra.mxu0 %v965
        %1022 = vmatpush.msra.mxu0 %v964
        %1023 = vmatpush.msra.mxu0 %v963
        %1024 = vmatpush.msra.mxu0 %v962
        %1025 = vmatpush.msra.mxu0 %v961
        %1026 = vmatpush.msra.mxu0 %v960
        %1027 = vmatmul.f32.gmra.mxu0 %v979
        %v1028 = vpop.f32.mrf.mxu0
        %v1029 = vadd.f32 %v1006, %v1028
        %1030 = vmatmul.f32.gmra.mxu0 %v982
        %v1031 = vpop.f32.mrf.mxu0
        %v1032 = vadd.f32 %v1009, %v1031
        %1033 = vdwg.mxu0
        %v1034 = vld [vmem:[%s1 + $0x288] sm:$0xff]
        %v1035 = vld [vmem:[%s1 + $0x290] sm:$0xff]
        %v1036 = vld [vmem:[%s1 + $0x298] sm:$0xff]
        %v1037 = vld [vmem:[%s1 + $0x2a0] sm:$0xff]
        %v1038 = vld [vmem:[%s1 + $0x2a8] sm:$0xff]
        %v1039 = vld [vmem:[%s1 + $0x2b0] sm:$0x1]
        %v1040 = vperm.slane %v1039, 0
        %vm1041 = vcmask 326656
        %v1043 = vsel %vm1041, %v1029, 0
        %v1046 = vsel %vm1041, %v1032, 0
        %1048 = vmatpush.msra.mxu0 0.0
        %1049 = vmatpush.msra.mxu0 0.0
        %1050 = vmatpush.msra.mxu0 0.0
        %1051 = vmatpush.msra.mxu0 0.0
        %1052 = vmatpush.msra.mxu0 0.0
        %1053 = vmatpush.msra.mxu0 0.0
        %1054 = vmatpush.msra.mxu0 0.0
        %1055 = vmatpush.msra.mxu0 0.0
        %1056 = vmatpush.msra.mxu0 0.0
        %1057 = vmatpush.msra.mxu0 0.0
        %1058 = vmatpush.msra.mxu0 0.0
        %1059 = vmatpush.msra.mxu0 %v1038
        %1060 = vmatpush.msra.mxu0 %v1037
        %1061 = vmatpush.msra.mxu0 %v1036
        %1062 = vmatpush.msra.mxu0 %v1035
        %1063 = vmatpush.msra.mxu0 %v1034
        %1064 = vmatmul.f32.gmra.mxu0 %v1043
        %v1065 = vpop.f32.mrf.mxu0
        %v1066 = vadd.f32 %v1040, %v1065
        %1067 = vmatmul.f32.gmra.mxu0 %v1046
        %v1068 = vpop.f32.mrf.mxu0
        %v1069 = vadd.f32 %v1040, %v1068
        %1070 = vdwg.mxu0
        %v1071 = vld [vmem:[%s1 + $0x2b8] sm:$0x1]
        %v1072 = vld [vmem:[%s1 + $0x2c0] sm:$0x1]
        %v1073 = vld [vmem:[%s1 + $0x2c8] sm:$0xff]
        %v1074 = vld [vmem:[%s1 + $0x2d0] sm:$0xff]
        %v1075 = vld [vmem:[%s1 + $0x2d8] sm:$0xff]
        %v1076 = vld [vmem:[%s1 + $0x2e0] sm:$0xff]
        %v1077 = vld [vmem:[%s1 + $0x2e8] sm:$0xff]
        %v1078 = vld [vmem:[%s1 + $0x2f0] sm:$0x1]
        %v1079 = vld [vmem:[%s1 + $0x2f8] sm:$0xff]
        %v1080 = vld [vmem:[%s1 + $0x300] sm:$0xff]
        %v1081 = vld [vmem:[%s1 + $0x308] sm:$0xff]
        %v1082 = vld [vmem:[%s1 + $0x310] sm:$0xff]
        %v1083 = vld [vmem:[%s1 + $0x318] sm:$0xff]
        %v1084 = vld [vmem:[%s1 + $0x320] sm:$0x1]
        %v1085 = vsel %vm1041, %v1066, 0.0
        %1086 = vadd.xlane.f32.xlu0 %v1085
        %v1087 = vpop.xlane.xlu0 %1086
        %vm1088 = vcmask 321536
        %v1089 = vsel %vm1088, %v1069, 0.0
        %1090 = vadd.xlane.f32.xlu0 %v1089
        %v1091 = vpop.xlane.xlu0 %1090
        %v1092 = vrcp.pop 40.0
        %v1093 = vmul.f32 40.0, %v1092
        %v1094 = vsub.f32 1.0, %v1093
        %v1095 = vmul.f32 %v1092, %v1094
        %v1096 = vadd.f32 %v1092, %v1095
        %vm1097 = vweird.f32 %v1092
        %v1098 = vsel %vm1097, %v1092, %v1096
        %v1099 = vmul.f32 %v1087, %v1098
        %v1100 = vmul.f32 %v1091, %v1098
        %v1101 = vsub.f32 %v1066, %v1099
        %v1102 = vsub.f32 %v1069, %v1100
        %v1103 = vmul.f32 %v1101, %v1101
        %v1104 = vmul.f32 %v1102, %v1102
        %v1105 = vsel %vm1041, %v1103, 0.0
        %1106 = vadd.xlane.f32.xlu0 %v1105
        %v1107 = vpop.xlane.xlu0 %1106
        %v1108 = vsel %vm1088, %v1104, 0.0
        %1109 = vadd.xlane.f32.xlu0 %v1108
        %v1110 = vpop.xlane.xlu0 %1109
        %v1111 = vmul.f32 %v1107, %v1098
        %v1112 = vmul.f32 %v1110, %v1098
        %v1113 = vadd.f32 %v1111, 1e-05
        %v1114 = vadd.f32 %v1112, 1e-05
        %v1115 = vrsqrt.pop %v1113
        %v1116 = vmul.f32 %v1115, %v1113
        %v1117 = vmul.f32 %v1116, %v1115
        %v1118 = vmul.f32 0.5, %v1117
        %v1119 = vsub.f32 1.5, %v1118
        %v1120 = vmul.f32 %v1115, %v1119
        %vm1121 = vweird.f32 %v1113
        %vm1122 = vweird.f32 %v1115
        %vm1123 = vmor %vm1121, %vm1122
        %v1124 = vsel %vm1123, %v1115, %v1120
        %v1125 = vrsqrt.pop %v1114
        %v1126 = vmul.f32 %v1125, %v1114
        %v1127 = vmul.f32 %v1126, %v1125
        %v1128 = vmul.f32 0.5, %v1127
        %v1129 = vsub.f32 1.5, %v1128
        %v1130 = vmul.f32 %v1125, %v1129
        %vm1131 = vweird.f32 %v1114
        %vm1132 = vweird.f32 %v1125
        %vm1133 = vmor %vm1131, %vm1132
        %v1134 = vsel %vm1133, %v1125, %v1130
        %v1135 = vmul.f32 %v1101, %v1124
        %v1136 = vmul.f32 %v1102, %v1134
        %v1137 = vperm.slane %v1071, 0
        %v1138 = vmul.f32 %v1135, %v1137
        %v1139 = vmul.f32 %v1136, %v1137
        %v1140 = vperm.slane %v1072, 0
        %v1141 = vadd.f32 %v1138, %v1140
        %v1142 = vadd.f32 %v1139, %v1140
        %v1143 = vperm.slane %v1078, 0
        %v1145 = vsel %vm1041, %v1141, 0
        %v1148 = vsel %vm1041, %v1142, 0
        %1150 = vmatpush.msra.mxu0 0.0
        %1151 = vmatpush.msra.mxu0 0.0
        %1152 = vmatpush.msra.mxu0 0.0
        %1153 = vmatpush.msra.mxu0 0.0
        %1154 = vmatpush.msra.mxu0 0.0
        %1155 = vmatpush.msra.mxu0 0.0
        %1156 = vmatpush.msra.mxu0 0.0
        %1157 = vmatpush.msra.mxu0 0.0
        %1158 = vmatpush.msra.mxu0 0.0
        %1159 = vmatpush.msra.mxu0 0.0
        %1160 = vmatpush.msra.mxu0 0.0
        %1161 = vmatpush.msra.mxu0 %v1077
        %1162 = vmatpush.msra.mxu0 %v1076
        %1163 = vmatpush.msra.mxu0 %v1075
        %1164 = vmatpush.msra.mxu0 %v1074
        %1165 = vmatpush.msra.mxu0 %v1073
        %1166 = vmatmul.f32.gmra.mxu0 %v1145
        %v1167 = vpop.f32.mrf.mxu0
        %v1168 = vadd.f32 %v1143, %v1167
        %1169 = vmatmul.f32.gmra.mxu0 %v1148
        %v1170 = vpop.f32.mrf.mxu0
        %v1171 = vadd.f32 %v1143, %v1170
        %1172 = vdwg.mxu0
        %vm1173 = vcmask 89088
        %v1175 = vsel %vm1173, %v208, 0
        %v1178 = vsel %vm1173, %v209, 0
        %v1181 = vsel %vm1173, %v210, 0
        %v1184 = vsel %vm1173, %v211, 0
        %v1187 = vsel %vm1173, %v212, 0
        %v1190 = vsel %vm1173, %v213, 0
        %v1193 = vsel %vm1173, %v214, 0
        %v1196 = vsel %vm1173, %v215, 0
        %v1199 = vsel %vm1173, %v216, 0
        %v1202 = vsel %vm1173, %v217, 0
        %v1205 = vsel %vm1173, %v218, 0
        %vm1207 = vcmask 1042432
        %v1209 = vsel %vm1207, %v1171, 0
        %1211 = vmatpush.msra.mxu0 0.0
        %1212 = vmatpush.msra.mxu0 0.0
        %1213 = vmatpush.msra.mxu0 0.0
        %1214 = vmatpush.msra.mxu0 0.0
        %1215 = vmatpush.msra.mxu0 0.0
        %1216 = vmatpush.msra.mxu0 0.0
        %1217 = vmatpush.msra.mxu0 0.0
        %1218 = vmatpush.msra.mxu0 0.0
        %1219 = vmatpush.msra.mxu0 0.0
        %1220 = vmatpush.msra.mxu0 0.0
        %1221 = vmatpush.msra.mxu0 0.0
        %1222 = vmatpush.msra.mxu0 0.0
        %1223 = vmatpush.msra.mxu0 0.0
        %1224 = vmatpush.msra.mxu0 0.0
        %1225 = vmatpush.msra.mxu0 %v1209
        %1226 = vmatpush.msra.mxu0 %v1168
        %1227 = vmatmul.f32.gmra.mxu0 %v1175
        %v1228 = vpop.f32.mrf.mxu0
        %v1229 = vadd.f32 0.0, %v1228
        %1230 = vmatmul.f32.gmra.mxu0 %v1178
        %v1231 = vpop.f32.mrf.mxu0
        %v1232 = vadd.f32 0.0, %v1231
        %1233 = vmatmul.f32.gmra.mxu0 %v1181
        %v1234 = vpop.f32.mrf.mxu0
        %v1235 = vadd.f32 0.0, %v1234
        %1236 = vmatmul.f32.gmra.mxu0 %v1184
        %v1237 = vpop.f32.mrf.mxu0
        %v1238 = vadd.f32 0.0, %v1237
        %1239 = vmatmul.f32.gmra.mxu0 %v1187
        %v1240 = vpop.f32.mrf.mxu0
        %v1241 = vadd.f32 0.0, %v1240
        %1242 = vmatmul.f32.gmra.mxu0 %v1190
        %v1243 = vpop.f32.mrf.mxu0
        %v1244 = vadd.f32 0.0, %v1243
        %1245 = vmatmul.f32.gmra.mxu0 %v1193
        %v1246 = vpop.f32.mrf.mxu0
        %v1247 = vadd.f32 0.0, %v1246
        %1248 = vmatmul.f32.gmra.mxu0 %v1196
        %v1249 = vpop.f32.mrf.mxu0
        %v1250 = vadd.f32 0.0, %v1249
        %1251 = vmatmul.f32.gmra.mxu0 %v1199
        %v1252 = vpop.f32.mrf.mxu0
        %v1253 = vadd.f32 0.0, %v1252
        %1254 = vmatmul.f32.gmra.mxu0 %v1202
        %v1255 = vpop.f32.mrf.mxu0
        %v1256 = vadd.f32 0.0, %v1255
        %1257 = vmatmul.f32.gmra.mxu0 %v1205
        %v1258 = vpop.f32.mrf.mxu0
        %v1259 = vadd.f32 0.0, %v1258
        %1260 = vdwg.mxu0
        %v1261 = vmul.f32 %v1229, %v195
        %v1262 = vmul.f32 %v1232, %v196
        %v1263 = vmul.f32 %v1235, %v197
        %v1264 = vmul.f32 %v1238, %v198
        %v1265 = vmul.f32 %v1241, %v199
        %v1266 = vmul.f32 %v1244, %v200
        %v1267 = vmul.f32 %v1247, %v201
        %v1268 = vmul.f32 %v1250, %v202
        %v1269 = vmul.f32 %v1253, %v203
        %v1270 = vmul.f32 %v1256, %v204
        %v1271 = vmul.f32 %v1259, %v205
        %1273 = vrot.lane.b32.xlu0 %v1168, 88
        %v1274 = vpop.permute.xlu0 %1273
        %1275 = vrot.lane.b32.xlu0 %v1171, 88
        %v1276 = vpop.permute.xlu0 %1275
        %v1278 = vsel %vm1041, %v1261, 0
        %v1281 = vsel %vm1041, %v1262, 0
        %v1284 = vsel %vm1041, %v1263, 0
        %v1287 = vsel %vm1041, %v1264, 0
        %v1290 = vsel %vm1041, %v1265, 0
        %v1293 = vsel %vm1041, %v1266, 0
        %v1296 = vsel %vm1041, %v1267, 0
        %v1299 = vsel %vm1041, %v1268, 0
        %v1302 = vsel %vm1041, %v1269, 0
        %v1305 = vsel %vm1041, %v1270, 0
        %v1308 = vsel %vm1041, %v1271, 0
        %v1310 = vsel %vm1041, %v1274, 0
        %v1312 = vsel %vm1041, %v1276, 0
        %1314 = vmatpush.xpose.msra.mxu0 0.0
        %1315 = vmatpush.xpose.msra.mxu0 0.0
        %1316 = vmatpush.xpose.msra.mxu0 0.0
        %1317 = vmatpush.xpose.msra.mxu0 0.0
        %1318 = vmatpush.xpose.msra.mxu0 0.0
        %1319 = vmatpush.xpose.msra.mxu0 0.0
        %1320 = vmatpush.xpose.msra.mxu0 0.0
        %1321 = vmatpush.xpose.msra.mxu0 0.0
        %1322 = vmatpush.xpose.msra.mxu0 0.0
        %1323 = vmatpush.xpose.msra.mxu0 0.0
        %1324 = vmatpush.xpose.msra.mxu0 0.0
        %1325 = vmatpush.xpose.msra.mxu0 0.0
        %1326 = vmatpush.xpose.msra.mxu0 0.0
        %1327 = vmatpush.xpose.msra.mxu0 0.0
        %1328 = vmatpush.xpose.msra.mxu0 %v1312
        %1329 = vmatpush.xpose.msra.mxu0 %v1310
        %1330 = vmatmul.f32.gmra.mxu0 %v1278
        %v1331 = vpop.f32.mrf.mxu0
        %v1332 = vadd.f32 0.0, %v1331
        %1333 = vmatmul.f32.gmra.mxu0 %v1281
        %v1334 = vpop.f32.mrf.mxu0
        %v1335 = vadd.f32 0.0, %v1334
        %1336 = vmatmul.f32.gmra.mxu0 %v1284
        %v1337 = vpop.f32.mrf.mxu0
        %v1338 = vadd.f32 0.0, %v1337
        %1339 = vmatmul.f32.gmra.mxu0 %v1287
        %v1340 = vpop.f32.mrf.mxu0
        %v1341 = vadd.f32 0.0, %v1340
        %1342 = vmatmul.f32.gmra.mxu0 %v1290
        %v1343 = vpop.f32.mrf.mxu0
        %v1344 = vadd.f32 0.0, %v1343
        %1345 = vmatmul.f32.gmra.mxu0 %v1293
        %v1346 = vpop.f32.mrf.mxu0
        %v1347 = vadd.f32 0.0, %v1346
        %1348 = vmatmul.f32.gmra.mxu0 %v1296
        %v1349 = vpop.f32.mrf.mxu0
        %v1350 = vadd.f32 0.0, %v1349
        %1351 = vmatmul.f32.gmra.mxu0 %v1299
        %v1352 = vpop.f32.mrf.mxu0
        %v1353 = vadd.f32 0.0, %v1352
        %1354 = vmatmul.f32.gmra.mxu0 %v1302
        %v1355 = vpop.f32.mrf.mxu0
        %v1356 = vadd.f32 0.0, %v1355
        %1357 = vmatmul.f32.gmra.mxu0 %v1305
        %v1358 = vpop.f32.mrf.mxu0
        %v1359 = vadd.f32 0.0, %v1358
        %1360 = vmatmul.f32.gmra.mxu0 %v1308
        %v1361 = vpop.f32.mrf.mxu0
        %v1362 = vadd.f32 0.0, %v1361
        %1363 = vdwg.mxu0
        %v1364 = vmul.f32 %v1332, 0.15811388
        %v1365 = vmul.f32 %v1335, 0.15811388
        %v1366 = vmul.f32 %v1338, 0.15811388
        %v1367 = vmul.f32 %v1341, 0.15811388
        %v1368 = vmul.f32 %v1344, 0.15811388
        %v1369 = vmul.f32 %v1347, 0.15811388
        %v1370 = vmul.f32 %v1350, 0.15811388
        %v1371 = vmul.f32 %v1353, 0.15811388
        %v1372 = vmul.f32 %v1356, 0.15811388
        %v1373 = vmul.f32 %v1359, 0.15811388
        %v1374 = vmul.f32 %v1362, 0.15811388
        %v1375 = vsel %vm1173, %v1364, -inf
        %1376 = vmax.xlane.f32.xlu0 %v1375
        %v1377 = vpop.xlane.xlu0 %1376
        %v1378 = vsel %vm1173, %v1365, -inf
        %1379 = vmax.xlane.f32.xlu0 %v1378
        %v1380 = vpop.xlane.xlu0 %1379
        %v1381 = vsel %vm1173, %v1366, -inf
        %1382 = vmax.xlane.f32.xlu0 %v1381
        %v1383 = vpop.xlane.xlu0 %1382
        %v1384 = vsel %vm1173, %v1367, -inf
        %1385 = vmax.xlane.f32.xlu0 %v1384
        %v1386 = vpop.xlane.xlu0 %1385
        %v1387 = vsel %vm1173, %v1368, -inf
        %1388 = vmax.xlane.f32.xlu0 %v1387
        %v1389 = vpop.xlane.xlu0 %1388
        %v1390 = vsel %vm1173, %v1369, -inf
        %1391 = vmax.xlane.f32.xlu0 %v1390
        %v1392 = vpop.xlane.xlu0 %1391
        %v1393 = vsel %vm1173, %v1370, -inf
        %1394 = vmax.xlane.f32.xlu0 %v1393
        %v1395 = vpop.xlane.xlu0 %1394
        %v1396 = vsel %vm1173, %v1371, -inf
        %1397 = vmax.xlane.f32.xlu0 %v1396
        %v1398 = vpop.xlane.xlu0 %1397
        %v1399 = vsel %vm1173, %v1372, -inf
        %1400 = vmax.xlane.f32.xlu0 %v1399
        %v1401 = vpop.xlane.xlu0 %1400
        %v1402 = vsel %vm1173, %v1373, -inf
        %1403 = vmax.xlane.f32.xlu0 %v1402
        %v1404 = vpop.xlane.xlu0 %1403
        %v1405 = vsel %vm1173, %v1374, -inf
        %1406 = vmax.xlane.f32.xlu0 %v1405
        %v1407 = vpop.xlane.xlu0 %1406
        %v1408 = vsub.f32 %v1364, %v1377
        %v1409 = vsub.f32 %v1365, %v1380
        %v1410 = vsub.f32 %v1366, %v1383
        %v1411 = vsub.f32 %v1367, %v1386
        %v1412 = vsub.f32 %v1368, %v1389
        %v1413 = vsub.f32 %v1369, %v1392
        %v1414 = vsub.f32 %v1370, %v1395
        %v1415 = vsub.f32 %v1371, %v1398
        %v1416 = vsub.f32 %v1372, %v1401
        %v1417 = vsub.f32 %v1373, %v1404
        %v1418 = vsub.f32 %v1374, %v1407
        %v1419 = vmul.f32 %v1408, 1.442695
        %v1420 = vpow.pop %v1419
        %v1421 = vmul.f32 %v1409, 1.442695
        %v1422 = vpow.pop %v1421
        %v1423 = vmul.f32 %v1410, 1.442695
        %v1424 = vpow.pop %v1423
        %v1425 = vmul.f32 %v1411, 1.442695
        %v1426 = vpow.pop %v1425
        %v1427 = vmul.f32 %v1412, 1.442695
        %v1428 = vpow.pop %v1427
        %v1429 = vmul.f32 %v1413, 1.442695
        %v1430 = vpow.pop %v1429
        %v1431 = vmul.f32 %v1414, 1.442695
        %v1432 = vpow.pop %v1431
        %v1433 = vmul.f32 %v1415, 1.442695
        %v1434 = vpow.pop %v1433
        %v1435 = vmul.f32 %v1416, 1.442695
        %v1436 = vpow.pop %v1435
        %v1437 = vmul.f32 %v1417, 1.442695
        %v1438 = vpow.pop %v1437
        %v1439 = vmul.f32 %v1418, 1.442695
        %v1440 = vpow.pop %v1439
        %v1441 = vsel %vm1173, %v1420, 0.0
        %1442 = vadd.xlane.f32.xlu0 %v1441
        %v1443 = vpop.xlane.xlu0 %1442
        %v1444 = vsel %vm1173, %v1422, 0.0
        %1445 = vadd.xlane.f32.xlu0 %v1444
        %v1446 = vpop.xlane.xlu0 %1445
        %v1447 = vsel %vm1173, %v1424, 0.0
        %1448 = vadd.xlane.f32.xlu0 %v1447
        %v1449 = vpop.xlane.xlu0 %1448
        %v1450 = vsel %vm1173, %v1426, 0.0
        %1451 = vadd.xlane.f32.xlu0 %v1450
        %v1452 = vpop.xlane.xlu0 %1451
        %v1453 = vsel %vm1173, %v1428, 0.0
        %1454 = vadd.xlane.f32.xlu0 %v1453
        %v1455 = vpop.xlane.xlu0 %1454
        %v1456 = vsel %vm1173, %v1430, 0.0
        %1457 = vadd.xlane.f32.xlu0 %v1456
        %v1458 = vpop.xlane.xlu0 %1457
        %v1459 = vsel %vm1173, %v1432, 0.0
        %1460 = vadd.xlane.f32.xlu0 %v1459
        %v1461 = vpop.xlane.xlu0 %1460
        %v1462 = vsel %vm1173, %v1434, 0.0
        %1463 = vadd.xlane.f32.xlu0 %v1462
        %v1464 = vpop.xlane.xlu0 %1463
        %v1465 = vsel %vm1173, %v1436, 0.0
        %1466 = vadd.xlane.f32.xlu0 %v1465
        %v1467 = vpop.xlane.xlu0 %1466
        %v1468 = vsel %vm1173, %v1438, 0.0
        %1469 = vadd.xlane.f32.xlu0 %v1468
        %v1470 = vpop.xlane.xlu0 %1469
        %v1471 = vsel %vm1173, %v1440, 0.0
        %1472 = vadd.xlane.f32.xlu0 %v1471
        %v1473 = vpop.xlane.xlu0 %1472
        %v1474 = vrcp.pop %v1443
        %v1475 = vrcp.pop %v1446
        %v1476 = vrcp.pop %v1449
        %v1477 = vrcp.pop %v1452
        %v1478 = vrcp.pop %v1455
        %v1479 = vrcp.pop %v1458
        %v1480 = vrcp.pop %v1461
        %v1481 = vrcp.pop %v1464
        %v1482 = vrcp.pop %v1467
        %v1483 = vrcp.pop %v1470
        %v1484 = vrcp.pop %v1473
        %v1485 = vmul.f32 %v1420, %v1474
        %v1486 = vmul.f32 %v1422, %v1475
        %v1487 = vmul.f32 %v1424, %v1476
        %v1488 = vmul.f32 %v1426, %v1477
        %v1489 = vmul.f32 %v1428, %v1478
        %v1490 = vmul.f32 %v1430, %v1479
        %v1491 = vmul.f32 %v1432, %v1480
        %v1492 = vmul.f32 %v1434, %v1481
        %v1493 = vmul.f32 %v1436, %v1482
        %v1494 = vmul.f32 %v1438, %v1483
        %v1495 = vmul.f32 %v1440, %v1484
        %1496 = vrot.lane.b32.xlu0 %v1168, 48
        %v1497 = vpop.permute.xlu0 %1496
        %1498 = vrot.lane.b32.xlu0 %v1171, 48
        %v1499 = vpop.permute.xlu0 %1498
        %v1502 = vsel %vm1173, %v1485, 0
        %v1505 = vsel %vm1173, %v1486, 0
        %v1508 = vsel %vm1173, %v1487, 0
        %v1511 = vsel %vm1173, %v1488, 0
        %v1514 = vsel %vm1173, %v1489, 0
        %v1517 = vsel %vm1173, %v1490, 0
        %v1520 = vsel %vm1173, %v1491, 0
        %v1523 = vsel %vm1173, %v1492, 0
        %v1526 = vsel %vm1173, %v1493, 0
        %v1529 = vsel %vm1173, %v1494, 0
        %v1532 = vsel %vm1173, %v1495, 0
        %v1534 = vsel %vm1207, %v1499, 0
        %1536 = vmatpush.msra.mxu0 0.0
        %1537 = vmatpush.msra.mxu0 0.0
        %1538 = vmatpush.msra.mxu0 0.0
        %1539 = vmatpush.msra.mxu0 0.0
        %1540 = vmatpush.msra.mxu0 0.0
        %1541 = vmatpush.msra.mxu0 0.0
        %1542 = vmatpush.msra.mxu0 0.0
        %1543 = vmatpush.msra.mxu0 0.0
        %1544 = vmatpush.msra.mxu0 0.0
        %1545 = vmatpush.msra.mxu0 0.0
        %1546 = vmatpush.msra.mxu0 0.0
        %1547 = vmatpush.msra.mxu0 0.0
        %1548 = vmatpush.msra.mxu0 0.0
        %1549 = vmatpush.msra.mxu0 0.0
        %1550 = vmatpush.msra.mxu0 %v1534
        %1551 = vmatpush.msra.mxu0 %v1497
        %1552 = vmatmul.f32.gmra.mxu0 %v1502
        %v1553 = vpop.f32.mrf.mxu0
        %v1554 = vadd.f32 0.0, %v1553
        %1555 = vmatmul.f32.gmra.mxu0 %v1505
        %v1556 = vpop.f32.mrf.mxu0
        %v1557 = vadd.f32 0.0, %v1556
        %1558 = vmatmul.f32.gmra.mxu0 %v1508
        %v1559 = vpop.f32.mrf.mxu0
        %v1560 = vadd.f32 0.0, %v1559
        %1561 = vmatmul.f32.gmra.mxu0 %v1511
        %v1562 = vpop.f32.mrf.mxu0
        %v1563 = vadd.f32 0.0, %v1562
        %1564 = vmatmul.f32.gmra.mxu0 %v1514
        %v1565 = vpop.f32.mrf.mxu0
        %v1566 = vadd.f32 0.0, %v1565
        %1567 = vmatmul.f32.gmra.mxu0 %v1517
        %v1568 = vpop.f32.mrf.mxu0
        %v1569 = vadd.f32 0.0, %v1568
        %1570 = vmatmul.f32.gmra.mxu0 %v1520
        %v1571 = vpop.f32.mrf.mxu0
        %v1572 = vadd.f32 0.0, %v1571
        %1573 = vmatmul.f32.gmra.mxu0 %v1523
        %v1574 = vpop.f32.mrf.mxu0
        %v1575 = vadd.f32 0.0, %v1574
        %1576 = vmatmul.f32.gmra.mxu0 %v1526
        %v1577 = vpop.f32.mrf.mxu0
        %v1578 = vadd.f32 0.0, %v1577
        %1579 = vmatmul.f32.gmra.mxu0 %v1529
        %v1580 = vpop.f32.mrf.mxu0
        %v1581 = vadd.f32 0.0, %v1580
        %1582 = vmatmul.f32.gmra.mxu0 %v1532
        %v1583 = vpop.f32.mrf.mxu0
        %v1584 = vadd.f32 0.0, %v1583
        %1585 = vdwg.mxu0
        %v1586 = vmul.f32 %v1554, %v195
        %v1587 = vmul.f32 %v1557, %v196
        %v1588 = vmul.f32 %v1560, %v197
        %v1589 = vmul.f32 %v1563, %v198
        %v1590 = vmul.f32 %v1566, %v199
        %v1591 = vmul.f32 %v1569, %v200
        %v1592 = vmul.f32 %v1572, %v201
        %v1593 = vmul.f32 %v1575, %v202
        %v1594 = vmul.f32 %v1578, %v203
        %v1595 = vmul.f32 %v1581, %v204
        %v1596 = vmul.f32 %v1584, %v205
        %vm1597 = vcmask 719872
        %v1599 = vsel %vm1597, %v206, 0
        %v1602 = vsel %vm1597, %v207, 0
        %1604 = vmatpush.msra.mxu0 0.0
        %1605 = vmatpush.msra.mxu0 0.0
        %1606 = vmatpush.msra.mxu0 0.0
        %1607 = vmatpush.msra.mxu0 0.0
        %1608 = vmatpush.msra.mxu0 0.0
        %1609 = vmatpush.msra.mxu0 %v1596
        %1610 = vmatpush.msra.mxu0 %v1595
        %1611 = vmatpush.msra.mxu0 %v1594
        %1612 = vmatpush.msra.mxu0 %v1593
        %1613 = vmatpush.msra.mxu0 %v1592
        %1614 = vmatpush.msra.mxu0 %v1591
        %1615 = vmatpush.msra.mxu0 %v1590
        %1616 = vmatpush.msra.mxu0 %v1589
        %1617 = vmatpush.msra.mxu0 %v1588
        %1618 = vmatpush.msra.mxu0 %v1587
        %1619 = vmatpush.msra.mxu0 %v1586
        %1620 = vmatmul.f32.gmra.mxu0 %v1599
        %v1621 = vpop.f32.mrf.mxu0
        %v1622 = vadd.f32 0.0, %v1621
        %1623 = vmatmul.f32.gmra.mxu0 %v1602
        %v1624 = vpop.f32.mrf.mxu0
        %v1625 = vadd.f32 0.0, %v1624
        %1626 = vdwg.mxu0
        %v1628 = vsel %vm1041, %v1622, 0
        %v1631 = vsel %vm1041, %v1625, 0
        %1633 = vmatpush.msra.mxu0 0.0
        %1634 = vmatpush.msra.mxu0 0.0
        %1635 = vmatpush.msra.mxu0 0.0
        %1636 = vmatpush.msra.mxu0 0.0
        %1637 = vmatpush.msra.mxu0 0.0
        %1638 = vmatpush.msra.mxu0 0.0
        %1639 = vmatpush.msra.mxu0 0.0
        %1640 = vmatpush.msra.mxu0 0.0
        %1641 = vmatpush.msra.mxu0 0.0
        %1642 = vmatpush.msra.mxu0 0.0
        %1643 = vmatpush.msra.mxu0 0.0
        %1644 = vmatpush.msra.mxu0 %v1083
        %1645 = vmatpush.msra.mxu0 %v1082
        %1646 = vmatpush.msra.mxu0 %v1081
        %1647 = vmatpush.msra.mxu0 %v1080
        %1648 = vmatpush.msra.mxu0 %v1079
        %1649 = vmatmul.f32.gmra.mxu0 %v1628
        %v1650 = vpop.f32.mrf.mxu0
        %v1651 = vadd.f32 0.0, %v1650
        %1652 = vmatmul.f32.gmra.mxu0 %v1631
        %v1653 = vpop.f32.mrf.mxu0
        %v1654 = vadd.f32 0.0, %v1653
        %1655 = vdwg.mxu0
        %v1656 = vadd.f32 %v1066, %v1651
        %v1657 = vadd.f32 %v1069, %v1654
        %v1658 = vperm.slane %v1084, 0
        %v1659 = vadd.f32 %v1656, %v1658
        %v1660 = vadd.f32 %v1657, %v1658
        %v1661 = vld [vmem:[%s1 + $0x328] sm:$0x1]
        %v1662 = vld [vmem:[%s1 + $0x330] sm:$0x1]
        %v1663 = vld [vmem:[%s2 + $0x20] sm:$0xff]
        %v1664 = vld [vmem:[%s2 + $0x28] sm:$0xff]
        %v1665 = vld [vmem:[%s2 + $0x30] sm:$0xff]
        %v1666 = vld [vmem:[%s2 + $0x38] sm:$0xff]
        %v1667 = vld [vmem:[%s2 + $0x40] sm:$0xff]
        %v1668 = vld [vmem:[%s2 + $0x48] sm:$0xff]
        %v1669 = vld [vmem:[%s2 + $0x50] sm:$0xff]
        %v1670 = vld [vmem:[%s2 + $0x58] sm:$0xff]
        %v1671 = vld [vmem:[%s2 + $0x60] sm:$0xff]
        %v1672 = vld [vmem:[%s2 + $0x68] sm:$0xff]
        %s1673 = scalar_lea.vmem %s2, 112
        %v1674 = vld [vmem:[%s1673] ss:$8 sm:$0x3]
        %v1675 = vld [vmem:[%s1 + $0x338] sm:$0xff]
        %v1676 = vld [vmem:[%s1 + $0x340] sm:$0xff]
        %v1677 = vld [vmem:[%s1 + $0x348] sm:$0xff]
        %v1678 = vld [vmem:[%s1 + $0x350] sm:$0xff]
        %v1679 = vld [vmem:[%s1 + $0x358] sm:$0xff]
        %v1680 = vld [vmem:[%s1 + $0x360] sm:$0xff]
        %v1681 = vld [vmem:[%s1 + $0x368] sm:$0xff]
        %v1682 = vld [vmem:[%s1 + $0x370] sm:$0xff]
        %v1683 = vld [vmem:[%s1 + $0x378] sm:$0xff]
        %v1684 = vld [vmem:[%s1 + $0x380] sm:$0xff]
        %v1685 = vld [vmem:[%s1 + $0x388] sm:$0xff]
        %v1686 = vld [vmem:[%s1 + $0x390] sm:$0xff]
        %v1687 = vld [vmem:[%s1 + $0x398] sm:$0xff]
        %v1688 = vld [vmem:[%s1 + $0x3a0] sm:$0xff]
        %v1689 = vld [vmem:[%s1 + $0x3a8] sm:$0xff]
        %v1690 = vld [vmem:[%s1 + $0x3b0] sm:$0xff]
        %v1691 = vld [vmem:[%s1 + $0x3b8] sm:$0xff]
        %v1692 = vld [vmem:[%s1 + $0x3c0] sm:$0xff]
        %v1693 = vld [vmem:[%s1 + $0x3c8] sm:$0xff]
        %v1694 = vld [vmem:[%s1 + $0x3d0] sm:$0xff]
        %v1695 = vld [vmem:[%s1 + $0x3d8] sm:$0x1]
        %v1696 = vsel %vm1041, %v1659, 0.0
        %1697 = vadd.xlane.f32.xlu0 %v1696
        %v1698 = vpop.xlane.xlu0 %1697
        %v1699 = vsel %vm1088, %v1660, 0.0
        %1700 = vadd.xlane.f32.xlu0 %v1699
        %v1701 = vpop.xlane.xlu0 %1700
        %v1702 = vmul.f32 %v1698, %v1098
        %v1703 = vmul.f32 %v1701, %v1098
        %v1704 = vsub.f32 %v1659, %v1702
        %v1705 = vsub.f32 %v1660, %v1703
        %v1706 = vmul.f32 %v1704, %v1704
        %v1707 = vmul.f32 %v1705, %v1705
        %v1708 = vsel %vm1041, %v1706, 0.0
        %1709 = vadd.xlane.f32.xlu0 %v1708
        %v1710 = vpop.xlane.xlu0 %1709
        %v1711 = vsel %vm1088, %v1707, 0.0
        %1712 = vadd.xlane.f32.xlu0 %v1711
        %v1713 = vpop.xlane.xlu0 %1712
        %v1714 = vmul.f32 %v1710, %v1098
        %v1715 = vmul.f32 %v1713, %v1098
        %v1716 = vadd.f32 %v1714, 1e-05
        %v1717 = vadd.f32 %v1715, 1e-05
        %v1718 = vrsqrt.pop %v1716
        %v1719 = vmul.f32 %v1718, %v1716
        %v1720 = vmul.f32 %v1719, %v1718
        %v1721 = vmul.f32 0.5, %v1720
        %v1722 = vsub.f32 1.5, %v1721
        %v1723 = vmul.f32 %v1718, %v1722
        %vm1724 = vweird.f32 %v1716
        %vm1725 = vweird.f32 %v1718
        %vm1726 = vmor %vm1724, %vm1725
        %v1727 = vsel %vm1726, %v1718, %v1723
        %v1728 = vrsqrt.pop %v1717
        %v1729 = vmul.f32 %v1728, %v1717
        %v1730 = vmul.f32 %v1729, %v1728
        %v1731 = vmul.f32 0.5, %v1730
        %v1732 = vsub.f32 1.5, %v1731
        %v1733 = vmul.f32 %v1728, %v1732
        %vm1734 = vweird.f32 %v1717
        %vm1735 = vweird.f32 %v1728
        %vm1736 = vmor %vm1734, %vm1735
        %v1737 = vsel %vm1736, %v1728, %v1733
        %v1738 = vmul.f32 %v1704, %v1727
        %v1739 = vmul.f32 %v1705, %v1737
        %v1740 = vperm.slane %v1661, 0
        %v1741 = vmul.f32 %v1738, %v1740
        %v1742 = vmul.f32 %v1739, %v1740
        %v1743 = vperm.slane %v1662, 0
        %v1744 = vadd.f32 %v1741, %v1743
        %v1745 = vadd.f32 %v1742, %v1743
        %v1747 = vperm.slane %v1674, 0
        %v1748 = vperm.slane %v1674, 1
        %v1752 = vsel %vm1041, %v1744, 0
        %v1755 = vsel %vm1041, %v1745, 0
        %1757 = vmatpush.msra.mxu0 0.0
        %1758 = vmatpush.msra.mxu0 0.0
        %1759 = vmatpush.msra.mxu0 0.0
        %1760 = vmatpush.msra.mxu0 0.0
        %1761 = vmatpush.msra.mxu0 0.0
        %1762 = vmatpush.msra.mxu0 0.0
        %1763 = vmatpush.msra.mxu0 0.0
        %1764 = vmatpush.msra.mxu0 0.0
        %1765 = vmatpush.msra.mxu0 0.0
        %1766 = vmatpush.msra.mxu0 0.0
        %1767 = vmatpush.msra.mxu0 0.0
        %1768 = vmatpush.msra.mxu0 %v1671
        %1769 = vmatpush.msra.mxu0 %v1669
        %1770 = vmatpush.msra.mxu0 %v1667
        %1771 = vmatpush.msra.mxu0 %v1665
        %1772 = vmatpush.msra.mxu0 %v1663
        %1773 = vmatmul.f32.gmra.mxu0 %v1752
        %v1774 = vpop.f32.mrf.mxu0
        %v1775 = vadd.f32 %v1747, %v1774
        %1776 = vmatmul.f32.gmra.mxu0 %v1755
        %v1777 = vpop.f32.mrf.mxu0
        %v1778 = vadd.f32 %v1747, %v1777
        %1779 = vdwg.mxu0
        %1780 = vmatpush.msra.mxu0 0.0
        %1781 = vmatpush.msra.mxu0 0.0
        %1782 = vmatpush.msra.mxu0 0.0
        %1783 = vmatpush.msra.mxu0 0.0
        %1784 = vmatpush.msra.mxu0 0.0
        %1785 = vmatpush.msra.mxu0 0.0
        %1786 = vmatpush.msra.mxu0 0.0
        %1787 = vmatpush.msra.mxu0 0.0
        %1788 = vmatpush.msra.mxu0 0.0
        %1789 = vmatpush.msra.mxu0 0.0
        %1790 = vmatpush.msra.mxu0 0.0
        %1791 = vmatpush.msra.mxu0 %v1672
        %1792 = vmatpush.msra.mxu0 %v1670
        %1793 = vmatpush.msra.mxu0 %v1668
        %1794 = vmatpush.msra.mxu0 %v1666
        %1795 = vmatpush.msra.mxu0 %v1664
        %1796 = vmatmul.f32.gmra.mxu0 %v1752
        %v1797 = vpop.f32.mrf.mxu0
        %v1798 = vadd.f32 %v1748, %v1797
        %1799 = vmatmul.f32.gmra.mxu0 %v1755
        %v1800 = vpop.f32.mrf.mxu0
        %v1801 = vadd.f32 %v1748, %v1800
        %1802 = vdwg.mxu0
        %v1803 = vmul.f32 %v1775, 0.5
        %v1804 = vmul.f32 %v1798, 0.5
        %v1805 = vmul.f32 %v1778, 0.5
        %v1806 = vmul.f32 %v1801, 0.5
        %v1807 = vmul.f32 %v1775, 0.70710677
        %v1808 = vmul.f32 %v1798, 0.70710677
        %v1809 = vmul.f32 %v1778, 0.70710677
        %v1810 = vmul.f32 %v1801, 0.70710677
        %vm1811 = vcmp.lt.f32.partialorder %v1807, 0.0
        %vm1812 = vcmp.lt.f32.partialorder %v1808, 0.0
        %vm1813 = vcmp.lt.f32.partialorder %v1809, 0.0
        %vm1814 = vcmp.lt.f32.partialorder %v1810, 0.0
        %v1815 = vsel %vm1811, -1.0, 1.0
        %v1816 = vsel %vm1812, -1.0, 1.0
        %v1817 = vsel %vm1813, -1.0, 1.0
        %v1818 = vsel %vm1814, -1.0, 1.0
        %v1819 = vand.u32 2147483647, %v1807
        %v1820 = vand.u32 2147483647, %v1808
        %v1821 = vand.u32 2147483647, %v1809
        %v1822 = vand.u32 2147483647, %v1810
        %v1823 = vmul.f32 %v1819, 0.3275911
        %v1824 = vmul.f32 %v1820, 0.3275911
        %v1825 = vmul.f32 %v1821, 0.3275911
        %v1826 = vmul.f32 %v1822, 0.3275911
        %v1827 = vadd.f32 %v1823, 1.0
        %v1828 = vadd.f32 %v1824, 1.0
        %v1829 = vadd.f32 %v1825, 1.0
        %v1830 = vadd.f32 %v1826, 1.0
        %v1831 = vrcp.pop %v1827
        %v1832 = vmul.f32 %v1827, %v1831
        %v1833 = vsub.f32 1.0, %v1832
        %v1834 = vmul.f32 %v1831, %v1833
        %v1835 = vadd.f32 %v1831, %v1834
        %vm1836 = vweird.f32 %v1827
        %vm1837 = vweird.f32 %v1831
        %vm1838 = vmor %vm1836, %vm1837
        %v1839 = vsel %vm1838, %v1831, %v1835
        %v1840 = vand.u32 2147483647, %v1827
        %vm1841 = vcmp.eq.f32.partialorder %v1840, 8.507059e+37
        %v1842 = vand.u32 %v1827, 2147483648
        %v1843 = vor.u32 1.1754944e-38, %v1842
        %v1844 = vsel %vm1841, %v1843, %v1839
        %v1845 = vmul.f32 1.0, %v1844
        %v1846 = vrcp.pop %v1828
        %v1847 = vmul.f32 %v1828, %v1846
        %v1848 = vsub.f32 1.0, %v1847
        %v1849 = vmul.f32 %v1846, %v1848
        %v1850 = vadd.f32 %v1846, %v1849
        %vm1851 = vweird.f32 %v1828
        %vm1852 = vweird.f32 %v1846
        %vm1853 = vmor %vm1851, %vm1852
        %v1854 = vsel %vm1853, %v1846, %v1850
        %v1855 = vand.u32 2147483647, %v1828
        %vm1856 = vcmp.eq.f32.partialorder %v1855, 8.507059e+37
        %v1857 = vand.u32 %v1828, 2147483648
        %v1858 = vor.u32 1.1754944e-38, %v1857
        %v1859 = vsel %vm1856, %v1858, %v1854
        %v1860 = vmul.f32 1.0, %v1859
        %v1861 = vrcp.pop %v1829
        %v1862 = vmul.f32 %v1829, %v1861
        %v1863 = vsub.f32 1.0, %v1862
        %v1864 = vmul.f32 %v1861, %v1863
        %v1865 = vadd.f32 %v1861, %v1864
        %vm1866 = vweird.f32 %v1829
        %vm1867 = vweird.f32 %v1861
        %vm1868 = vmor %vm1866, %vm1867
        %v1869 = vsel %vm1868, %v1861, %v1865
        %v1870 = vand.u32 2147483647, %v1829
        %vm1871 = vcmp.eq.f32.partialorder %v1870, 8.507059e+37
        %v1872 = vand.u32 %v1829, 2147483648
        %v1873 = vor.u32 1.1754944e-38, %v1872
        %v1874 = vsel %vm1871, %v1873, %v1869
        %v1875 = vmul.f32 1.0, %v1874
        %v1876 = vrcp.pop %v1830
        %v1877 = vmul.f32 %v1830, %v1876
        %v1878 = vsub.f32 1.0, %v1877
        %v1879 = vmul.f32 %v1876, %v1878
        %v1880 = vadd.f32 %v1876, %v1879
        %vm1881 = vweird.f32 %v1830
        %vm1882 = vweird.f32 %v1876
        %vm1883 = vmor %vm1881, %vm1882
        %v1884 = vsel %vm1883, %v1876, %v1880
        %v1885 = vand.u32 2147483647, %v1830
        %vm1886 = vcmp.eq.f32.partialorder %v1885, 8.507059e+37
        %v1887 = vand.u32 %v1830, 2147483648
        %v1888 = vor.u32 1.1754944e-38, %v1887
        %v1889 = vsel %vm1886, %v1888, %v1884
        %v1890 = vmul.f32 1.0, %v1889
        %v1891 = vmul.f32 %v1845, 1.0614054
        %v1892 = vmul.f32 %v1860, 1.0614054
        %v1893 = vmul.f32 %v1875, 1.0614054
        %v1894 = vmul.f32 %v1890, 1.0614054
        %v1895 = vadd.f32 %v1891, -1.4531521
        %v1896 = vadd.f32 %v1892, -1.4531521
        %v1897 = vadd.f32 %v1893, -1.4531521
        %v1898 = vadd.f32 %v1894, -1.4531521
        %v1899 = vmul.f32 %v1845, %v1895
        %v1900 = vmul.f32 %v1860, %v1896
        %v1901 = vmul.f32 %v1875, %v1897
        %v1902 = vmul.f32 %v1890, %v1898
        %v1903 = vadd.f32 %v1899, 1.4214138
        %v1904 = vadd.f32 %v1900, 1.4214138
        %v1905 = vadd.f32 %v1901, 1.4214138
        %v1906 = vadd.f32 %v1902, 1.4214138
        %v1907 = vmul.f32 %v1845, %v1903
        %v1908 = vmul.f32 %v1860, %v1904
        %v1909 = vmul.f32 %v1875, %v1905
        %v1910 = vmul.f32 %v1890, %v1906
        %v1911 = vadd.f32 %v1907, -0.28449672
        %v1912 = vadd.f32 %v1908, -0.28449672
        %v1913 = vadd.f32 %v1909, -0.28449672
        %v1914 = vadd.f32 %v1910, -0.28449672
        %v1915 = vmul.f32 %v1845, %v1911
        %v1916 = vmul.f32 %v1860, %v1912
        %v1917 = vmul.f32 %v1875, %v1913
        %v1918 = vmul.f32 %v1890, %v1914
        %v1919 = vadd.f32 %v1915, 0.2548296
        %v1920 = vadd.f32 %v1916, 0.2548296
        %v1921 = vadd.f32 %v1917, 0.2548296
        %v1922 = vadd.f32 %v1918, 0.2548296
        %v1923 = vmul.f32 %v1845, %v1919
        %v1924 = vmul.f32 %v1860, %v1920
        %v1925 = vmul.f32 %v1875, %v1921
        %v1926 = vmul.f32 %v1890, %v1922
        %v1927 = vsub.f32 0.0, %v1819
        %v1928 = vsub.f32 0.0, %v1820
        %v1929 = vsub.f32 0.0, %v1821
        %v1930 = vsub.f32 0.0, %v1822
        %v1931 = vmul.f32 %v1927, %v1819
        %v1932 = vmul.f32 %v1928, %v1820
        %v1933 = vmul.f32 %v1929, %v1821
        %v1934 = vmul.f32 %v1930, %v1822
        %v1935 = vmul.f32 %v1931, 1.442695
        %v1936 = vpow.pop %v1935
        %v1937 = vmul.f32 %v1932, 1.442695
        %v1938 = vpow.pop %v1937
        %v1939 = vmul.f32 %v1933, 1.442695
        %v1940 = vpow.pop %v1939
        %v1941 = vmul.f32 %v1934, 1.442695
        %v1942 = vpow.pop %v1941
        %v1943 = vmul.f32 %v1923, %v1936
        %v1944 = vmul.f32 %v1924, %v1938
        %v1945 = vmul.f32 %v1925, %v1940
        %v1946 = vmul.f32 %v1926, %v1942
        %v1947 = vsub.f32 1.0, %v1943
        %v1948 = vsub.f32 1.0, %v1944
        %v1949 = vsub.f32 1.0, %v1945
        %v1950 = vsub.f32 1.0, %v1946
        %v1951 = vmul.f32 %v1815, %v1947
        %v1952 = vmul.f32 %v1816, %v1948
        %v1953 = vmul.f32 %v1817, %v1949
        %v1954 = vmul.f32 %v1818, %v1950
        %v1955 = vadd.f32 %v1951, 1.0
        %v1956 = vadd.f32 %v1952, 1.0
        %v1957 = vadd.f32 %v1953, 1.0
        %v1958 = vadd.f32 %v1954, 1.0
        %v1959 = vmul.f32 %v1803, %v1955
        %v1960 = vmul.f32 %v1804, %v1956
        %v1961 = vmul.f32 %v1805, %v1957
        %v1962 = vmul.f32 %v1806, %v1958
        %vm1963 = vcmask 261120
        %v1965 = vsel %vm1963, %v1960, 0
        %v1968 = vsel %vm1963, %v1962, 0
        %1970 = vmatpush.msra.mxu0 %v1690
        %1971 = vmatpush.msra.mxu0 %v1689
        %1972 = vmatpush.msra.mxu0 %v1688
        %1973 = vmatpush.msra.mxu0 %v1687
        %1974 = vmatpush.msra.mxu0 %v1686
        %1975 = vmatpush.msra.mxu0 %v1685
        %1976 = vmatpush.msra.mxu0 %v1684
        %1977 = vmatpush.msra.mxu0 %v1683
        %1978 = vmatpush.msra.mxu0 %v1682
        %1979 = vmatpush.msra.mxu0 %v1681
        %1980 = vmatpush.msra.mxu0 %v1680
        %1981 = vmatpush.msra.mxu0 %v1679
        %1982 = vmatpush.msra.mxu0 %v1678
        %1983 = vmatpush.msra.mxu0 %v1677
        %1984 = vmatpush.msra.mxu0 %v1676
        %1985 = vmatpush.msra.mxu0 %v1675
        %1986 = vmatmul.f32.gmra.mxu0 %v1959
        %v1987 = vpop.f32.mrf.mxu0
        %v1988 = vadd.f32 0.0, %v1987
        %1989 = vmatmul.f32.gmra.mxu0 %v1961
        %v1990 = vpop.f32.mrf.mxu0
        %v1991 = vadd.f32 0.0, %v1990
        %1992 = vdwg.mxu0
        %1993 = vmatpush.msra.mxu0 0.0
        %1994 = vmatpush.msra.mxu0 0.0
        %1995 = vmatpush.msra.mxu0 0.0
        %1996 = vmatpush.msra.mxu0 0.0
        %1997 = vmatpush.msra.mxu0 0.0
        %1998 = vmatpush.msra.mxu0 0.0
        %1999 = vmatpush.msra.mxu0 0.0
        %2000 = vmatpush.msra.mxu0 0.0
        %2001 = vmatpush.msra.mxu0 0.0
        %2002 = vmatpush.msra.mxu0 0.0
        %2003 = vmatpush.msra.mxu0 0.0
        %2004 = vmatpush.msra.mxu0 0.0
        %2005 = vmatpush.msra.mxu0 %v1694
        %2006 = vmatpush.msra.mxu0 %v1693
        %2007 = vmatpush.msra.mxu0 %v1692
        %2008 = vmatpush.msra.mxu0 %v1691
        %2009 = vmatmul.f32.gmra.mxu0 %v1965
        %v2010 = vpop.f32.mrf.mxu0
        %v2011 = vadd.f32 %v1988, %v2010
        %2012 = vmatmul.f32.gmra.mxu0 %v1968
        %v2013 = vpop.f32.mrf.mxu0
        %v2014 = vadd.f32 %v1991, %v2013
        %2015 = vdwg.mxu0
        %v2016 = vadd.f32 %v1659, %v2011
        %v2017 = vadd.f32 %v1660, %v2014
        %v2018 = vperm.slane %v1695, 0
        %v2019 = vadd.f32 %v2016, %v2018
        %v2020 = vadd.f32 %v2017, %v2018
        %v2021 = vld [vmem:[%s1 + $0x3e0] sm:$0x1]
        %v2022 = vld [vmem:[%s1 + $0x3e8] sm:$0x1]
        %v2023 = vld [vmem:[%s1 + $0x3f0] sm:$0xff]
        %v2024 = vld [vmem:[%s1 + $0x3f8] sm:$0xff]
        %v2025 = vld [vmem:[%s1 + $0x400] sm:$0xff]
        %v2026 = vld [vmem:[%s1 + $0x408] sm:$0xff]
        %v2027 = vld [vmem:[%s1 + $0x410] sm:$0xff]
        %v2028 = vld [vmem:[%s1 + $0x418] sm:$0x1]
        %v2029 = vld [vmem:[%s1 + $0x420] sm:$0xff]
        %v2030 = vld [vmem:[%s1 + $0x428] sm:$0xff]
        %v2031 = vld [vmem:[%s1 + $0x430] sm:$0xff]
        %v2032 = vld [vmem:[%s1 + $0x438] sm:$0xff]
        %v2033 = vld [vmem:[%s1 + $0x440] sm:$0xff]
        %v2034 = vld [vmem:[%s1 + $0x448] sm:$0x1]
        %v2035 = vsel %vm1041, %v2019, 0.0
        %2036 = vadd.xlane.f32.xlu0 %v2035
        %v2037 = vpop.xlane.xlu0 %2036
        %v2038 = vsel %vm1088, %v2020, 0.0
        %2039 = vadd.xlane.f32.xlu0 %v2038
        %v2040 = vpop.xlane.xlu0 %2039
        %v2041 = vmul.f32 %v2037, %v1098
        %v2042 = vmul.f32 %v2040, %v1098
        %v2043 = vsub.f32 %v2019, %v2041
        %v2044 = vsub.f32 %v2020, %v2042
        %v2045 = vmul.f32 %v2043, %v2043
        %v2046 = vmul.f32 %v2044, %v2044
        %v2047 = vsel %vm1041, %v2045, 0.0
        %2048 = vadd.xlane.f32.xlu0 %v2047
        %v2049 = vpop.xlane.xlu0 %2048
        %v2050 = vsel %vm1088, %v2046, 0.0
        %2051 = vadd.xlane.f32.xlu0 %v2050
        %v2052 = vpop.xlane.xlu0 %2051
        %v2053 = vmul.f32 %v2049, %v1098
        %v2054 = vmul.f32 %v2052, %v1098
        %v2055 = vadd.f32 %v2053, 1e-05
        %v2056 = vadd.f32 %v2054, 1e-05
        %v2057 = vrsqrt.pop %v2055
        %v2058 = vmul.f32 %v2057, %v2055
        %v2059 = vmul.f32 %v2058, %v2057
        %v2060 = vmul.f32 0.5, %v2059
        %v2061 = vsub.f32 1.5, %v2060
        %v2062 = vmul.f32 %v2057, %v2061
        %vm2063 = vweird.f32 %v2055
        %vm2064 = vweird.f32 %v2057
        %vm2065 = vmor %vm2063, %vm2064
        %v2066 = vsel %vm2065, %v2057, %v2062
        %v2067 = vrsqrt.pop %v2056
        %v2068 = vmul.f32 %v2067, %v2056
        %v2069 = vmul.f32 %v2068, %v2067
        %v2070 = vmul.f32 0.5, %v2069
        %v2071 = vsub.f32 1.5, %v2070
        %v2072 = vmul.f32 %v2067, %v2071
        %vm2073 = vweird.f32 %v2056
        %vm2074 = vweird.f32 %v2067
        %vm2075 = vmor %vm2073, %vm2074
        %v2076 = vsel %vm2075, %v2067, %v2072
        %v2077 = vmul.f32 %v2043, %v2066
        %v2078 = vmul.f32 %v2044, %v2076
        %v2079 = vperm.slane %v2021, 0
        %v2080 = vmul.f32 %v2077, %v2079
        %v2081 = vmul.f32 %v2078, %v2079
        %v2082 = vperm.slane %v2022, 0
        %v2083 = vadd.f32 %v2080, %v2082
        %v2084 = vadd.f32 %v2081, %v2082
        %v2085 = vperm.slane %v2028, 0
        %v2087 = vsel %vm1041, %v2083, 0
        %v2090 = vsel %vm1041, %v2084, 0
        %2092 = vmatpush.msra.mxu0 0.0
        %2093 = vmatpush.msra.mxu0 0.0
        %2094 = vmatpush.msra.mxu0 0.0
        %2095 = vmatpush.msra.mxu0 0.0
        %2096 = vmatpush.msra.mxu0 0.0
        %2097 = vmatpush.msra.mxu0 0.0
        %2098 = vmatpush.msra.mxu0 0.0
        %2099 = vmatpush.msra.mxu0 0.0
        %2100 = vmatpush.msra.mxu0 0.0
        %2101 = vmatpush.msra.mxu0 0.0
        %2102 = vmatpush.msra.mxu0 0.0
        %2103 = vmatpush.msra.mxu0 %v2027
        %2104 = vmatpush.msra.mxu0 %v2026
        %2105 = vmatpush.msra.mxu0 %v2025
        %2106 = vmatpush.msra.mxu0 %v2024
        %2107 = vmatpush.msra.mxu0 %v2023
        %2108 = vmatmul.f32.gmra.mxu0 %v2087
        %v2109 = vpop.f32.mrf.mxu0
        %v2110 = vadd.f32 %v2085, %v2109
        %2111 = vmatmul.f32.gmra.mxu0 %v2090
        %v2112 = vpop.f32.mrf.mxu0
        %v2113 = vadd.f32 %v2085, %v2112
        %2114 = vdwg.mxu0
        %v2116 = vsel %vm1207, %v2113, 0
        %2118 = vmatpush.msra.mxu0 0.0
        %2119 = vmatpush.msra.mxu0 0.0
        %2120 = vmatpush.msra.mxu0 0.0
        %2121 = vmatpush.msra.mxu0 0.0
        %2122 = vmatpush.msra.mxu0 0.0
        %2123 = vmatpush.msra.mxu0 0.0
        %2124 = vmatpush.msra.mxu0 0.0
        %2125 = vmatpush.msra.mxu0 0.0
        %2126 = vmatpush.msra.mxu0 0.0
        %2127 = vmatpush.msra.mxu0 0.0
        %2128 = vmatpush.msra.mxu0 0.0
        %2129 = vmatpush.msra.mxu0 0.0
        %2130 = vmatpush.msra.mxu0 0.0
        %2131 = vmatpush.msra.mxu0 0.0
        %2132 = vmatpush.msra.mxu0 %v2116
        %2133 = vmatpush.msra.mxu0 %v2110
        %2134 = vmatmul.f32.gmra.mxu0 %v1175
        %v2135 = vpop.f32.mrf.mxu0
        %v2136 = vadd.f32 0.0, %v2135
        %2137 = vmatmul.f32.gmra.mxu0 %v1178
        %v2138 = vpop.f32.mrf.mxu0
        %v2139 = vadd.f32 0.0, %v2138
        %2140 = vmatmul.f32.gmra.mxu0 %v1181
        %v2141 = vpop.f32.mrf.mxu0
        %v2142 = vadd.f32 0.0, %v2141
        %2143 = vmatmul.f32.gmra.mxu0 %v1184
        %v2144 = vpop.f32.mrf.mxu0
        %v2145 = vadd.f32 0.0, %v2144
        %2146 = vmatmul.f32.gmra.mxu0 %v1187
        %v2147 = vpop.f32.mrf.mxu0
        %v2148 = vadd.f32 0.0, %v2147
        %2149 = vmatmul.f32.gmra.mxu0 %v1190
        %v2150 = vpop.f32.mrf.mxu0
        %v2151 = vadd.f32 0.0, %v2150
        %2152 = vmatmul.f32.gmra.mxu0 %v1193
        %v2153 = vpop.f32.mrf.mxu0
        %v2154 = vadd.f32 0.0, %v2153
        %2155 = vmatmul.f32.gmra.mxu0 %v1196
        %v2156 = vpop.f32.mrf.mxu0
        %v2157 = vadd.f32 0.0, %v2156
        %2158 = vmatmul.f32.gmra.mxu0 %v1199
        %v2159 = vpop.f32.mrf.mxu0
        %v2160 = vadd.f32 0.0, %v2159
        %2161 = vmatmul.f32.gmra.mxu0 %v1202
        %v2162 = vpop.f32.mrf.mxu0
        %v2163 = vadd.f32 0.0, %v2162
        %2164 = vmatmul.f32.gmra.mxu0 %v1205
        %v2165 = vpop.f32.mrf.mxu0
        %v2166 = vadd.f32 0.0, %v2165
        %2167 = vdwg.mxu0
        %v2168 = vmul.f32 %v2136, %v195
        %v2169 = vmul.f32 %v2139, %v196
        %v2170 = vmul.f32 %v2142, %v197
        %v2171 = vmul.f32 %v2145, %v198
        %v2172 = vmul.f32 %v2148, %v199
        %v2173 = vmul.f32 %v2151, %v200
        %v2174 = vmul.f32 %v2154, %v201
        %v2175 = vmul.f32 %v2157, %v202
        %v2176 = vmul.f32 %v2160, %v203
        %v2177 = vmul.f32 %v2163, %v204
        %v2178 = vmul.f32 %v2166, %v205
        %2180 = vrot.lane.b32.xlu0 %v2110, 88
        %v2181 = vpop.permute.xlu0 %2180
        %2182 = vrot.lane.b32.xlu0 %v2113, 88
        %v2183 = vpop.permute.xlu0 %2182
        %v2185 = vsel %vm1041, %v2168, 0
        %v2188 = vsel %vm1041, %v2169, 0
        %v2191 = vsel %vm1041, %v2170, 0
        %v2194 = vsel %vm1041, %v2171, 0
        %v2197 = vsel %vm1041, %v2172, 0
        %v2200 = vsel %vm1041, %v2173, 0
        %v2203 = vsel %vm1041, %v2174, 0
        %v2206 = vsel %vm1041, %v2175, 0
        %v2209 = vsel %vm1041, %v2176, 0
        %v2212 = vsel %vm1041, %v2177, 0
        %v2215 = vsel %vm1041, %v2178, 0
        %v2217 = vsel %vm1041, %v2181, 0
        %v2219 = vsel %vm1041, %v2183, 0
        %2221 = vmatpush.xpose.msra.mxu0 0.0
        %2222 = vmatpush.xpose.msra.mxu0 0.0
        %2223 = vmatpush.xpose.msra.mxu0 0.0
        %2224 = vmatpush.xpose.msra.mxu0 0.0
        %2225 = vmatpush.xpose.msra.mxu0 0.0
        %2226 = vmatpush.xpose.msra.mxu0 0.0
        %2227 = vmatpush.xpose.msra.mxu0 0.0
        %2228 = vmatpush.xpose.msra.mxu0 0.0
        %2229 = vmatpush.xpose.msra.mxu0 0.0
        %2230 = vmatpush.xpose.msra.mxu0 0.0
        %2231 = vmatpush.xpose.msra.mxu0 0.0
        %2232 = vmatpush.xpose.msra.mxu0 0.0
        %2233 = vmatpush.xpose.msra.mxu0 0.0
        %2234 = vmatpush.xpose.msra.mxu0 0.0
        %2235 = vmatpush.xpose.msra.mxu0 %v2219
        %2236 = vmatpush.xpose.msra.mxu0 %v2217
        %2237 = vmatmul.f32.gmra.mxu0 %v2185
        %v2238 = vpop.f32.mrf.mxu0
        %v2239 = vadd.f32 0.0, %v2238
        %2240 = vmatmul.f32.gmra.mxu0 %v2188
        %v2241 = vpop.f32.mrf.mxu0
        %v2242 = vadd.f32 0.0, %v2241
        %2243 = vmatmul.f32.gmra.mxu0 %v2191
        %v2244 = vpop.f32.mrf.mxu0
        %v2245 = vadd.f32 0.0, %v2244
        %2246 = vmatmul.f32.gmra.mxu0 %v2194
        %v2247 = vpop.f32.mrf.mxu0
        %v2248 = vadd.f32 0.0, %v2247
        %2249 = vmatmul.f32.gmra.mxu0 %v2197
        %v2250 = vpop.f32.mrf.mxu0
        %v2251 = vadd.f32 0.0, %v2250
        %2252 = vmatmul.f32.gmra.mxu0 %v2200
        %v2253 = vpop.f32.mrf.mxu0
        %v2254 = vadd.f32 0.0, %v2253
        %2255 = vmatmul.f32.gmra.mxu0 %v2203
        %v2256 = vpop.f32.mrf.mxu0
        %v2257 = vadd.f32 0.0, %v2256
        %2258 = vmatmul.f32.gmra.mxu0 %v2206
        %v2259 = vpop.f32.mrf.mxu0
        %v2260 = vadd.f32 0.0, %v2259
        %2261 = vmatmul.f32.gmra.mxu0 %v2209
        %v2262 = vpop.f32.mrf.mxu0
        %v2263 = vadd.f32 0.0, %v2262
        %2264 = vmatmul.f32.gmra.mxu0 %v2212
        %v2265 = vpop.f32.mrf.mxu0
        %v2266 = vadd.f32 0.0, %v2265
        %2267 = vmatmul.f32.gmra.mxu0 %v2215
        %v2268 = vpop.f32.mrf.mxu0
        %v2269 = vadd.f32 0.0, %v2268
        %2270 = vdwg.mxu0
        %v2271 = vmul.f32 %v2239, 0.15811388
        %v2272 = vmul.f32 %v2242, 0.15811388
        %v2273 = vmul.f32 %v2245, 0.15811388
        %v2274 = vmul.f32 %v2248, 0.15811388
        %v2275 = vmul.f32 %v2251, 0.15811388
        %v2276 = vmul.f32 %v2254, 0.15811388
        %v2277 = vmul.f32 %v2257, 0.15811388
        %v2278 = vmul.f32 %v2260, 0.15811388
        %v2279 = vmul.f32 %v2263, 0.15811388
        %v2280 = vmul.f32 %v2266, 0.15811388
        %v2281 = vmul.f32 %v2269, 0.15811388
        %v2282 = vsel %vm1173, %v2271, -inf
        %2283 = vmax.xlane.f32.xlu0 %v2282
        %v2284 = vpop.xlane.xlu0 %2283
        %v2285 = vsel %vm1173, %v2272, -inf
        %2286 = vmax.xlane.f32.xlu0 %v2285
        %v2287 = vpop.xlane.xlu0 %2286
        %v2288 = vsel %vm1173, %v2273, -inf
        %2289 = vmax.xlane.f32.xlu0 %v2288
        %v2290 = vpop.xlane.xlu0 %2289
        %v2291 = vsel %vm1173, %v2274, -inf
        %2292 = vmax.xlane.f32.xlu0 %v2291
        %v2293 = vpop.xlane.xlu0 %2292
        %v2294 = vsel %vm1173, %v2275, -inf
        %2295 = vmax.xlane.f32.xlu0 %v2294
        %v2296 = vpop.xlane.xlu0 %2295
        %v2297 = vsel %vm1173, %v2276, -inf
        %2298 = vmax.xlane.f32.xlu0 %v2297
        %v2299 = vpop.xlane.xlu0 %2298
        %v2300 = vsel %vm1173, %v2277, -inf
        %2301 = vmax.xlane.f32.xlu0 %v2300
        %v2302 = vpop.xlane.xlu0 %2301
        %v2303 = vsel %vm1173, %v2278, -inf
        %2304 = vmax.xlane.f32.xlu0 %v2303
        %v2305 = vpop.xlane.xlu0 %2304
        %v2306 = vsel %vm1173, %v2279, -inf
        %2307 = vmax.xlane.f32.xlu0 %v2306
        %v2308 = vpop.xlane.xlu0 %2307
        %v2309 = vsel %vm1173, %v2280, -inf
        %2310 = vmax.xlane.f32.xlu0 %v2309
        %v2311 = vpop.xlane.xlu0 %2310
        %v2312 = vsel %vm1173, %v2281, -inf
        %2313 = vmax.xlane.f32.xlu0 %v2312
        %v2314 = vpop.xlane.xlu0 %2313
        %v2315 = vsub.f32 %v2271, %v2284
        %v2316 = vsub.f32 %v2272, %v2287
        %v2317 = vsub.f32 %v2273, %v2290
        %v2318 = vsub.f32 %v2274, %v2293
        %v2319 = vsub.f32 %v2275, %v2296
        %v2320 = vsub.f32 %v2276, %v2299
        %v2321 = vsub.f32 %v2277, %v2302
        %v2322 = vsub.f32 %v2278, %v2305
        %v2323 = vsub.f32 %v2279, %v2308
        %v2324 = vsub.f32 %v2280, %v2311
        %v2325 = vsub.f32 %v2281, %v2314
        %v2326 = vmul.f32 %v2315, 1.442695
        %v2327 = vpow.pop %v2326
        %v2328 = vmul.f32 %v2316, 1.442695
        %v2329 = vpow.pop %v2328
        %v2330 = vmul.f32 %v2317, 1.442695
        %v2331 = vpow.pop %v2330
        %v2332 = vmul.f32 %v2318, 1.442695
        %v2333 = vpow.pop %v2332
        %v2334 = vmul.f32 %v2319, 1.442695
        %v2335 = vpow.pop %v2334
        %v2336 = vmul.f32 %v2320, 1.442695
        %v2337 = vpow.pop %v2336
        %v2338 = vmul.f32 %v2321, 1.442695
        %v2339 = vpow.pop %v2338
        %v2340 = vmul.f32 %v2322, 1.442695
        %v2341 = vpow.pop %v2340
        %v2342 = vmul.f32 %v2323, 1.442695
        %v2343 = vpow.pop %v2342
        %v2344 = vmul.f32 %v2324, 1.442695
        %v2345 = vpow.pop %v2344
        %v2346 = vmul.f32 %v2325, 1.442695
        %v2347 = vpow.pop %v2346
        %v2348 = vsel %vm1173, %v2327, 0.0
        %2349 = vadd.xlane.f32.xlu0 %v2348
        %v2350 = vpop.xlane.xlu0 %2349
        %v2351 = vsel %vm1173, %v2329, 0.0
        %2352 = vadd.xlane.f32.xlu0 %v2351
        %v2353 = vpop.xlane.xlu0 %2352
        %v2354 = vsel %vm1173, %v2331, 0.0
        %2355 = vadd.xlane.f32.xlu0 %v2354
        %v2356 = vpop.xlane.xlu0 %2355
        %v2357 = vsel %vm1173, %v2333, 0.0
        %2358 = vadd.xlane.f32.xlu0 %v2357
        %v2359 = vpop.xlane.xlu0 %2358
        %v2360 = vsel %vm1173, %v2335, 0.0
        %2361 = vadd.xlane.f32.xlu0 %v2360
        %v2362 = vpop.xlane.xlu0 %2361
        %v2363 = vsel %vm1173, %v2337, 0.0
        %2364 = vadd.xlane.f32.xlu0 %v2363
        %v2365 = vpop.xlane.xlu0 %2364
        %v2366 = vsel %vm1173, %v2339, 0.0
        %2367 = vadd.xlane.f32.xlu0 %v2366
        %v2368 = vpop.xlane.xlu0 %2367
        %v2369 = vsel %vm1173, %v2341, 0.0
        %2370 = vadd.xlane.f32.xlu0 %v2369
        %v2371 = vpop.xlane.xlu0 %2370
        %v2372 = vsel %vm1173, %v2343, 0.0
        %2373 = vadd.xlane.f32.xlu0 %v2372
        %v2374 = vpop.xlane.xlu0 %2373
        %v2375 = vsel %vm1173, %v2345, 0.0
        %2376 = vadd.xlane.f32.xlu0 %v2375
        %v2377 = vpop.xlane.xlu0 %2376
        %v2378 = vsel %vm1173, %v2347, 0.0
        %2379 = vadd.xlane.f32.xlu0 %v2378
        %v2380 = vpop.xlane.xlu0 %2379
        %v2381 = vrcp.pop %v2350
        %v2382 = vrcp.pop %v2353
        %v2383 = vrcp.pop %v2356
        %v2384 = vrcp.pop %v2359
        %v2385 = vrcp.pop %v2362
        %v2386 = vrcp.pop %v2365
        %v2387 = vrcp.pop %v2368
        %v2388 = vrcp.pop %v2371
        %v2389 = vrcp.pop %v2374
        %v2390 = vrcp.pop %v2377
        %v2391 = vrcp.pop %v2380
        %v2392 = vmul.f32 %v2327, %v2381
        %v2393 = vmul.f32 %v2329, %v2382
        %v2394 = vmul.f32 %v2331, %v2383
        %v2395 = vmul.f32 %v2333, %v2384
        %v2396 = vmul.f32 %v2335, %v2385
        %v2397 = vmul.f32 %v2337, %v2386
        %v2398 = vmul.f32 %v2339, %v2387
        %v2399 = vmul.f32 %v2341, %v2388
        %v2400 = vmul.f32 %v2343, %v2389
        %v2401 = vmul.f32 %v2345, %v2390
        %v2402 = vmul.f32 %v2347, %v2391
        %2403 = vrot.lane.b32.xlu0 %v2110, 48
        %v2404 = vpop.permute.xlu0 %2403
        %2405 = vrot.lane.b32.xlu0 %v2113, 48
        %v2406 = vpop.permute.xlu0 %2405
        %v2409 = vsel %vm1173, %v2392, 0
        %v2412 = vsel %vm1173, %v2393, 0
        %v2415 = vsel %vm1173, %v2394, 0
        %v2418 = vsel %vm1173, %v2395, 0
        %v2421 = vsel %vm1173, %v2396, 0
        %v2424 = vsel %vm1173, %v2397, 0
        %v2427 = vsel %vm1173, %v2398, 0
        %v2430 = vsel %vm1173, %v2399, 0
        %v2433 = vsel %vm1173, %v2400, 0
        %v2436 = vsel %vm1173, %v2401, 0
        %v2439 = vsel %vm1173, %v2402, 0
        %v2441 = vsel %vm1207, %v2406, 0
        %2443 = vmatpush.msra.mxu0 0.0
        %2444 = vmatpush.msra.mxu0 0.0
        %2445 = vmatpush.msra.mxu0 0.0
        %2446 = vmatpush.msra.mxu0 0.0
        %2447 = vmatpush.msra.mxu0 0.0
        %2448 = vmatpush.msra.mxu0 0.0
        %2449 = vmatpush.msra.mxu0 0.0
        %2450 = vmatpush.msra.mxu0 0.0
        %2451 = vmatpush.msra.mxu0 0.0
        %2452 = vmatpush.msra.mxu0 0.0
        %2453 = vmatpush.msra.mxu0 0.0
        %2454 = vmatpush.msra.mxu0 0.0
        %2455 = vmatpush.msra.mxu0 0.0
        %2456 = vmatpush.msra.mxu0 0.0
        %2457 = vmatpush.msra.mxu0 %v2441
        %2458 = vmatpush.msra.mxu0 %v2404
        %2459 = vmatmul.f32.gmra.mxu0 %v2409
        %v2460 = vpop.f32.mrf.mxu0
        %v2461 = vadd.f32 0.0, %v2460
        %2462 = vmatmul.f32.gmra.mxu0 %v2412
        %v2463 = vpop.f32.mrf.mxu0
        %v2464 = vadd.f32 0.0, %v2463
        %2465 = vmatmul.f32.gmra.mxu0 %v2415
        %v2466 = vpop.f32.mrf.mxu0
        %v2467 = vadd.f32 0.0, %v2466
        %2468 = vmatmul.f32.gmra.mxu0 %v2418
        %v2469 = vpop.f32.mrf.mxu0
        %v2470 = vadd.f32 0.0, %v2469
        %2471 = vmatmul.f32.gmra.mxu0 %v2421
        %v2472 = vpop.f32.mrf.mxu0
        %v2473 = vadd.f32 0.0, %v2472
        %2474 = vmatmul.f32.gmra.mxu0 %v2424
        %v2475 = vpop.f32.mrf.mxu0
        %v2476 = vadd.f32 0.0, %v2475
        %2477 = vmatmul.f32.gmra.mxu0 %v2427
        %v2478 = vpop.f32.mrf.mxu0
        %v2479 = vadd.f32 0.0, %v2478
        %2480 = vmatmul.f32.gmra.mxu0 %v2430
        %v2481 = vpop.f32.mrf.mxu0
        %v2482 = vadd.f32 0.0, %v2481
        %2483 = vmatmul.f32.gmra.mxu0 %v2433
        %v2484 = vpop.f32.mrf.mxu0
        %v2485 = vadd.f32 0.0, %v2484
        %2486 = vmatmul.f32.gmra.mxu0 %v2436
        %v2487 = vpop.f32.mrf.mxu0
        %v2488 = vadd.f32 0.0, %v2487
        %2489 = vmatmul.f32.gmra.mxu0 %v2439
        %v2490 = vpop.f32.mrf.mxu0
        %v2491 = vadd.f32 0.0, %v2490
        %2492 = vdwg.mxu0
        %v2493 = vmul.f32 %v2461, %v195
        %v2494 = vmul.f32 %v2464, %v196
        %v2495 = vmul.f32 %v2467, %v197
        %v2496 = vmul.f32 %v2470, %v198
        %v2497 = vmul.f32 %v2473, %v199
        %v2498 = vmul.f32 %v2476, %v200
        %v2499 = vmul.f32 %v2479, %v201
        %v2500 = vmul.f32 %v2482, %v202
        %v2501 = vmul.f32 %v2485, %v203
        %v2502 = vmul.f32 %v2488, %v204
        %v2503 = vmul.f32 %v2491, %v205
        %2504 = vmatpush.msra.mxu0 0.0
        %2505 = vmatpush.msra.mxu0 0.0
        %2506 = vmatpush.msra.mxu0 0.0
        %2507 = vmatpush.msra.mxu0 0.0
        %2508 = vmatpush.msra.mxu0 0.0
        %2509 = vmatpush.msra.mxu0 %v2503
        %2510 = vmatpush.msra.mxu0 %v2502
        %2511 = vmatpush.msra.mxu0 %v2501
        %2512 = vmatpush.msra.mxu0 %v2500
        %2513 = vmatpush.msra.mxu0 %v2499
        %2514 = vmatpush.msra.mxu0 %v2498
        %2515 = vmatpush.msra.mxu0 %v2497
        %2516 = vmatpush.msra.mxu0 %v2496
        %2517 = vmatpush.msra.mxu0 %v2495
        %2518 = vmatpush.msra.mxu0 %v2494
        %2519 = vmatpush.msra.mxu0 %v2493
        %2520 = vmatmul.f32.gmra.mxu0 %v1599
        %v2521 = vpop.f32.mrf.mxu0
        %v2522 = vadd.f32 0.0, %v2521
        %2523 = vmatmul.f32.gmra.mxu0 %v1602
        %v2524 = vpop.f32.mrf.mxu0
        %v2525 = vadd.f32 0.0, %v2524
        %2526 = vdwg.mxu0
        %v2528 = vsel %vm1041, %v2522, 0
        %v2531 = vsel %vm1041, %v2525, 0
        %2533 = vmatpush.msra.mxu0 0.0
        %2534 = vmatpush.msra.mxu0 0.0
        %2535 = vmatpush.msra.mxu0 0.0
        %2536 = vmatpush.msra.mxu0 0.0
        %2537 = vmatpush.msra.mxu0 0.0
        %2538 = vmatpush.msra.mxu0 0.0
        %2539 = vmatpush.msra.mxu0 0.0
        %2540 = vmatpush.msra.mxu0 0.0
        %2541 = vmatpush.msra.mxu0 0.0
        %2542 = vmatpush.msra.mxu0 0.0
        %2543 = vmatpush.msra.mxu0 0.0
        %2544 = vmatpush.msra.mxu0 %v2033
        %2545 = vmatpush.msra.mxu0 %v2032
        %2546 = vmatpush.msra.mxu0 %v2031
        %2547 = vmatpush.msra.mxu0 %v2030
        %2548 = vmatpush.msra.mxu0 %v2029
        %2549 = vmatmul.f32.gmra.mxu0 %v2528
        %v2550 = vpop.f32.mrf.mxu0
        %v2551 = vadd.f32 0.0, %v2550
        %2552 = vmatmul.f32.gmra.mxu0 %v2531
        %v2553 = vpop.f32.mrf.mxu0
        %v2554 = vadd.f32 0.0, %v2553
        %2555 = vdwg.mxu0
        %v2556 = vadd.f32 %v2019, %v2551
        %v2557 = vadd.f32 %v2020, %v2554
        %v2558 = vperm.slane %v2034, 0
        %v2559 = vadd.f32 %v2556, %v2558
        %v2560 = vadd.f32 %v2557, %v2558
        %v2561 = vld [vmem:[%s1 + $0x450] sm:$0x1]
        %v2562 = vld [vmem:[%s1 + $0x458] sm:$0x1]
        %v2563 = vld [vmem:[%s2 + $0x80] sm:$0xff]
        %v2564 = vld [vmem:[%s2 + $0x88] sm:$0xff]
        %v2565 = vld [vmem:[%s2 + $0x90] sm:$0xff]
        %v2566 = vld [vmem:[%s2 + $0x98] sm:$0xff]
        %v2567 = vld [vmem:[%s2 + $0xa0] sm:$0xff]
        %v2568 = vld [vmem:[%s2 + $0xa8] sm:$0xff]
        %v2569 = vld [vmem:[%s2 + $0xb0] sm:$0xff]
        %v2570 = vld [vmem:[%s2 + $0xb8] sm:$0xff]
        %v2571 = vld [vmem:[%s2 + $0xc0] sm:$0xff]
        %v2572 = vld [vmem:[%s2 + $0xc8] sm:$0xff]
        %s2573 = scalar_lea.vmem %s2, 208
        %v2574 = vld [vmem:[%s2573] ss:$8 sm:$0x3]
        %v2575 = vld [vmem:[%s1 + $0x460] sm:$0xff]
        %v2576 = vld [vmem:[%s1 + $0x468] sm:$0xff]
        %v2577 = vld [vmem:[%s1 + $0x470] sm:$0xff]
        %v2578 = vld [vmem:[%s1 + $0x478] sm:$0xff]
        %v2579 = vld [vmem:[%s1 + $0x480] sm:$0xff]
        %v2580 = vld [vmem:[%s1 + $0x488] sm:$0xff]
        %v2581 = vld [vmem:[%s1 + $0x490] sm:$0xff]
        %v2582 = vld [vmem:[%s1 + $0x498] sm:$0xff]
        %v2583 = vld [vmem:[%s1 + $0x4a0] sm:$0xff]
        %v2584 = vld [vmem:[%s1 + $0x4a8] sm:$0xff]
        %v2585 = vld [vmem:[%s1 + $0x4b0] sm:$0xff]
        %v2586 = vld [vmem:[%s1 + $0x4b8] sm:$0xff]
        %v2587 = vld [vmem:[%s1 + $0x4c0] sm:$0xff]
        %v2588 = vld [vmem:[%s1 + $0x4c8] sm:$0xff]
        %v2589 = vld [vmem:[%s1 + $0x4d0] sm:$0xff]
        %v2590 = vld [vmem:[%s1 + $0x4d8] sm:$0xff]
        %v2591 = vld [vmem:[%s1 + $0x4e0] sm:$0xff]
        %v2592 = vld [vmem:[%s1 + $0x4e8] sm:$0xff]
        %v2593 = vld [vmem:[%s1 + $0x4f0] sm:$0xff]
        %v2594 = vld [vmem:[%s1 + $0x4f8] sm:$0xff]
        %v2595 = vld [vmem:[%s1 + $0x500] sm:$0x1]
        %v2596 = vsel %vm1041, %v2559, 0.0
        %2597 = vadd.xlane.f32.xlu0 %v2596
        %v2598 = vpop.xlane.xlu0 %2597
        %v2599 = vsel %vm1088, %v2560, 0.0
        %2600 = vadd.xlane.f32.xlu0 %v2599
        %v2601 = vpop.xlane.xlu0 %2600
        %v2602 = vmul.f32 %v2598, %v1098
        %v2603 = vmul.f32 %v2601, %v1098
        %v2604 = vsub.f32 %v2559, %v2602
        %v2605 = vsub.f32 %v2560, %v2603
        %v2606 = vmul.f32 %v2604, %v2604
        %v2607 = vmul.f32 %v2605, %v2605
        %v2608 = vsel %vm1041, %v2606, 0.0
        %2609 = vadd.xlane.f32.xlu0 %v2608
        %v2610 = vpop.xlane.xlu0 %2609
        %v2611 = vsel %vm1088, %v2607, 0.0
        %2612 = vadd.xlane.f32.xlu0 %v2611
        %v2613 = vpop.xlane.xlu0 %2612
        %v2614 = vmul.f32 %v2610, %v1098
        %v2615 = vmul.f32 %v2613, %v1098
        %v2616 = vadd.f32 %v2614, 1e-05
        %v2617 = vadd.f32 %v2615, 1e-05
        %v2618 = vrsqrt.pop %v2616
        %v2619 = vmul.f32 %v2618, %v2616
        %v2620 = vmul.f32 %v2619, %v2618
        %v2621 = vmul.f32 0.5, %v2620
        %v2622 = vsub.f32 1.5, %v2621
        %v2623 = vmul.f32 %v2618, %v2622
        %vm2624 = vweird.f32 %v2616
        %vm2625 = vweird.f32 %v2618
        %vm2626 = vmor %vm2624, %vm2625
        %v2627 = vsel %vm2626, %v2618, %v2623
        %v2628 = vrsqrt.pop %v2617
        %v2629 = vmul.f32 %v2628, %v2617
        %v2630 = vmul.f32 %v2629, %v2628
        %v2631 = vmul.f32 0.5, %v2630
        %v2632 = vsub.f32 1.5, %v2631
        %v2633 = vmul.f32 %v2628, %v2632
        %vm2634 = vweird.f32 %v2617
        %vm2635 = vweird.f32 %v2628
        %vm2636 = vmor %vm2634, %vm2635
        %v2637 = vsel %vm2636, %v2628, %v2633
        %v2638 = vmul.f32 %v2604, %v2627
        %v2639 = vmul.f32 %v2605, %v2637
        %v2640 = vperm.slane %v2561, 0
        %v2641 = vmul.f32 %v2638, %v2640
        %v2642 = vmul.f32 %v2639, %v2640
        %v2643 = vperm.slane %v2562, 0
        %v2644 = vadd.f32 %v2641, %v2643
        %v2645 = vadd.f32 %v2642, %v2643
        %v2647 = vperm.slane %v2574, 0
        %v2648 = vperm.slane %v2574, 1
        %v2652 = vsel %vm1041, %v2644, 0
        %v2655 = vsel %vm1041, %v2645, 0
        %2657 = vmatpush.msra.mxu0 0.0
        %2658 = vmatpush.msra.mxu0 0.0
        %2659 = vmatpush.msra.mxu0 0.0
        %2660 = vmatpush.msra.mxu0 0.0
        %2661 = vmatpush.msra.mxu0 0.0
        %2662 = vmatpush.msra.mxu0 0.0
        %2663 = vmatpush.msra.mxu0 0.0
        %2664 = vmatpush.msra.mxu0 0.0
        %2665 = vmatpush.msra.mxu0 0.0
        %2666 = vmatpush.msra.mxu0 0.0
        %2667 = vmatpush.msra.mxu0 0.0
        %2668 = vmatpush.msra.mxu0 %v2571
        %2669 = vmatpush.msra.mxu0 %v2569
        %2670 = vmatpush.msra.mxu0 %v2567
        %2671 = vmatpush.msra.mxu0 %v2565
        %2672 = vmatpush.msra.mxu0 %v2563
        %2673 = vmatmul.f32.gmra.mxu0 %v2652
        %v2674 = vpop.f32.mrf.mxu0
        %v2675 = vadd.f32 %v2647, %v2674
        %2676 = vmatmul.f32.gmra.mxu0 %v2655
        %v2677 = vpop.f32.mrf.mxu0
        %v2678 = vadd.f32 %v2647, %v2677
        %2679 = vdwg.mxu0
        %2680 = vmatpush.msra.mxu0 0.0
        %2681 = vmatpush.msra.mxu0 0.0
        %2682 = vmatpush.msra.mxu0 0.0
        %2683 = vmatpush.msra.mxu0 0.0
        %2684 = vmatpush.msra.mxu0 0.0
        %2685 = vmatpush.msra.mxu0 0.0
        %2686 = vmatpush.msra.mxu0 0.0
        %2687 = vmatpush.msra.mxu0 0.0
        %2688 = vmatpush.msra.mxu0 0.0
        %2689 = vmatpush.msra.mxu0 0.0
        %2690 = vmatpush.msra.mxu0 0.0
        %2691 = vmatpush.msra.mxu0 %v2572
        %2692 = vmatpush.msra.mxu0 %v2570
        %2693 = vmatpush.msra.mxu0 %v2568
        %2694 = vmatpush.msra.mxu0 %v2566
        %2695 = vmatpush.msra.mxu0 %v2564
        %2696 = vmatmul.f32.gmra.mxu0 %v2652
        %v2697 = vpop.f32.mrf.mxu0
        %v2698 = vadd.f32 %v2648, %v2697
        %2699 = vmatmul.f32.gmra.mxu0 %v2655
        %v2700 = vpop.f32.mrf.mxu0
        %v2701 = vadd.f32 %v2648, %v2700
        %2702 = vdwg.mxu0
        %v2703 = vmul.f32 %v2675, 0.5
        %v2704 = vmul.f32 %v2698, 0.5
        %v2705 = vmul.f32 %v2678, 0.5
        %v2706 = vmul.f32 %v2701, 0.5
        %v2707 = vmul.f32 %v2675, 0.70710677
        %v2708 = vmul.f32 %v2698, 0.70710677
        %v2709 = vmul.f32 %v2678, 0.70710677
        %v2710 = vmul.f32 %v2701, 0.70710677
        %vm2711 = vcmp.lt.f32.partialorder %v2707, 0.0
        %vm2712 = vcmp.lt.f32.partialorder %v2708, 0.0
        %vm2713 = vcmp.lt.f32.partialorder %v2709, 0.0
        %vm2714 = vcmp.lt.f32.partialorder %v2710, 0.0
        %v2715 = vsel %vm2711, -1.0, 1.0
        %v2716 = vsel %vm2712, -1.0, 1.0
        %v2717 = vsel %vm2713, -1.0, 1.0
        %v2718 = vsel %vm2714, -1.0, 1.0
        %v2719 = vand.u32 2147483647, %v2707
        %v2720 = vand.u32 2147483647, %v2708
        %v2721 = vand.u32 2147483647, %v2709
        %v2722 = vand.u32 2147483647, %v2710
        %v2723 = vmul.f32 %v2719, 0.3275911
        %v2724 = vmul.f32 %v2720, 0.3275911
        %v2725 = vmul.f32 %v2721, 0.3275911
        %v2726 = vmul.f32 %v2722, 0.3275911
        %v2727 = vadd.f32 %v2723, 1.0
        %v2728 = vadd.f32 %v2724, 1.0
        %v2729 = vadd.f32 %v2725, 1.0
        %v2730 = vadd.f32 %v2726, 1.0
        %v2731 = vrcp.pop %v2727
        %v2732 = vmul.f32 %v2727, %v2731
        %v2733 = vsub.f32 1.0, %v2732
        %v2734 = vmul.f32 %v2731, %v2733
        %v2735 = vadd.f32 %v2731, %v2734
        %vm2736 = vweird.f32 %v2727
        %vm2737 = vweird.f32 %v2731
        %vm2738 = vmor %vm2736, %vm2737
        %v2739 = vsel %vm2738, %v2731, %v2735
        %v2740 = vand.u32 2147483647, %v2727
        %vm2741 = vcmp.eq.f32.partialorder %v2740, 8.507059e+37
        %v2742 = vand.u32 %v2727, 2147483648
        %v2743 = vor.u32 1.1754944e-38, %v2742
        %v2744 = vsel %vm2741, %v2743, %v2739
        %v2745 = vmul.f32 1.0, %v2744
        %v2746 = vrcp.pop %v2728
        %v2747 = vmul.f32 %v2728, %v2746
        %v2748 = vsub.f32 1.0, %v2747
        %v2749 = vmul.f32 %v2746, %v2748
        %v2750 = vadd.f32 %v2746, %v2749
        %vm2751 = vweird.f32 %v2728
        %vm2752 = vweird.f32 %v2746
        %vm2753 = vmor %vm2751, %vm2752
        %v2754 = vsel %vm2753, %v2746, %v2750
        %v2755 = vand.u32 2147483647, %v2728
        %vm2756 = vcmp.eq.f32.partialorder %v2755, 8.507059e+37
        %v2757 = vand.u32 %v2728, 2147483648
        %v2758 = vor.u32 1.1754944e-38, %v2757
        %v2759 = vsel %vm2756, %v2758, %v2754
        %v2760 = vmul.f32 1.0, %v2759
        %v2761 = vrcp.pop %v2729
        %v2762 = vmul.f32 %v2729, %v2761
        %v2763 = vsub.f32 1.0, %v2762
        %v2764 = vmul.f32 %v2761, %v2763
        %v2765 = vadd.f32 %v2761, %v2764
        %vm2766 = vweird.f32 %v2729
        %vm2767 = vweird.f32 %v2761
        %vm2768 = vmor %vm2766, %vm2767
        %v2769 = vsel %vm2768, %v2761, %v2765
        %v2770 = vand.u32 2147483647, %v2729
        %vm2771 = vcmp.eq.f32.partialorder %v2770, 8.507059e+37
        %v2772 = vand.u32 %v2729, 2147483648
        %v2773 = vor.u32 1.1754944e-38, %v2772
        %v2774 = vsel %vm2771, %v2773, %v2769
        %v2775 = vmul.f32 1.0, %v2774
        %v2776 = vrcp.pop %v2730
        %v2777 = vmul.f32 %v2730, %v2776
        %v2778 = vsub.f32 1.0, %v2777
        %v2779 = vmul.f32 %v2776, %v2778
        %v2780 = vadd.f32 %v2776, %v2779
        %vm2781 = vweird.f32 %v2730
        %vm2782 = vweird.f32 %v2776
        %vm2783 = vmor %vm2781, %vm2782
        %v2784 = vsel %vm2783, %v2776, %v2780
        %v2785 = vand.u32 2147483647, %v2730
        %vm2786 = vcmp.eq.f32.partialorder %v2785, 8.507059e+37
        %v2787 = vand.u32 %v2730, 2147483648
        %v2788 = vor.u32 1.1754944e-38, %v2787
        %v2789 = vsel %vm2786, %v2788, %v2784
        %v2790 = vmul.f32 1.0, %v2789
        %v2791 = vmul.f32 %v2745, 1.0614054
        %v2792 = vmul.f32 %v2760, 1.0614054
        %v2793 = vmul.f32 %v2775, 1.0614054
        %v2794 = vmul.f32 %v2790, 1.0614054
        %v2795 = vadd.f32 %v2791, -1.4531521
        %v2796 = vadd.f32 %v2792, -1.4531521
        %v2797 = vadd.f32 %v2793, -1.4531521
        %v2798 = vadd.f32 %v2794, -1.4531521
        %v2799 = vmul.f32 %v2745, %v2795
        %v2800 = vmul.f32 %v2760, %v2796
        %v2801 = vmul.f32 %v2775, %v2797
        %v2802 = vmul.f32 %v2790, %v2798
        %v2803 = vadd.f32 %v2799, 1.4214138
        %v2804 = vadd.f32 %v2800, 1.4214138
        %v2805 = vadd.f32 %v2801, 1.4214138
        %v2806 = vadd.f32 %v2802, 1.4214138
        %v2807 = vmul.f32 %v2745, %v2803
        %v2808 = vmul.f32 %v2760, %v2804
        %v2809 = vmul.f32 %v2775, %v2805
        %v2810 = vmul.f32 %v2790, %v2806
        %v2811 = vadd.f32 %v2807, -0.28449672
        %v2812 = vadd.f32 %v2808, -0.28449672
        %v2813 = vadd.f32 %v2809, -0.28449672
        %v2814 = vadd.f32 %v2810, -0.28449672
        %v2815 = vmul.f32 %v2745, %v2811
        %v2816 = vmul.f32 %v2760, %v2812
        %v2817 = vmul.f32 %v2775, %v2813
        %v2818 = vmul.f32 %v2790, %v2814
        %v2819 = vadd.f32 %v2815, 0.2548296
        %v2820 = vadd.f32 %v2816, 0.2548296
        %v2821 = vadd.f32 %v2817, 0.2548296
        %v2822 = vadd.f32 %v2818, 0.2548296
        %v2823 = vmul.f32 %v2745, %v2819
        %v2824 = vmul.f32 %v2760, %v2820
        %v2825 = vmul.f32 %v2775, %v2821
        %v2826 = vmul.f32 %v2790, %v2822
        %v2827 = vsub.f32 0.0, %v2719
        %v2828 = vsub.f32 0.0, %v2720
        %v2829 = vsub.f32 0.0, %v2721
        %v2830 = vsub.f32 0.0, %v2722
        %v2831 = vmul.f32 %v2827, %v2719
        %v2832 = vmul.f32 %v2828, %v2720
        %v2833 = vmul.f32 %v2829, %v2721
        %v2834 = vmul.f32 %v2830, %v2722
        %v2835 = vmul.f32 %v2831, 1.442695
        %v2836 = vpow.pop %v2835
        %v2837 = vmul.f32 %v2832, 1.442695
        %v2838 = vpow.pop %v2837
        %v2839 = vmul.f32 %v2833, 1.442695
        %v2840 = vpow.pop %v2839
        %v2841 = vmul.f32 %v2834, 1.442695
        %v2842 = vpow.pop %v2841
        %v2843 = vmul.f32 %v2823, %v2836
        %v2844 = vmul.f32 %v2824, %v2838
        %v2845 = vmul.f32 %v2825, %v2840
        %v2846 = vmul.f32 %v2826, %v2842
        %v2847 = vsub.f32 1.0, %v2843
        %v2848 = vsub.f32 1.0, %v2844
        %v2849 = vsub.f32 1.0, %v2845
        %v2850 = vsub.f32 1.0, %v2846
        %v2851 = vmul.f32 %v2715, %v2847
        %v2852 = vmul.f32 %v2716, %v2848
        %v2853 = vmul.f32 %v2717, %v2849
        %v2854 = vmul.f32 %v2718, %v2850
        %v2855 = vadd.f32 %v2851, 1.0
        %v2856 = vadd.f32 %v2852, 1.0
        %v2857 = vadd.f32 %v2853, 1.0
        %v2858 = vadd.f32 %v2854, 1.0
        %v2859 = vmul.f32 %v2703, %v2855
        %v2860 = vmul.f32 %v2704, %v2856
        %v2861 = vmul.f32 %v2705, %v2857
        %v2862 = vmul.f32 %v2706, %v2858
        %v2864 = vsel %vm1963, %v2860, 0
        %v2867 = vsel %vm1963, %v2862, 0
        %2869 = vmatpush.msra.mxu0 %v2590
        %2870 = vmatpush.msra.mxu0 %v2589
        %2871 = vmatpush.msra.mxu0 %v2588
        %2872 = vmatpush.msra.mxu0 %v2587
        %2873 = vmatpush.msra.mxu0 %v2586
        %2874 = vmatpush.msra.mxu0 %v2585
        %2875 = vmatpush.msra.mxu0 %v2584
        %2876 = vmatpush.msra.mxu0 %v2583
        %2877 = vmatpush.msra.mxu0 %v2582
        %2878 = vmatpush.msra.mxu0 %v2581
        %2879 = vmatpush.msra.mxu0 %v2580
        %2880 = vmatpush.msra.mxu0 %v2579
        %2881 = vmatpush.msra.mxu0 %v2578
        %2882 = vmatpush.msra.mxu0 %v2577
        %2883 = vmatpush.msra.mxu0 %v2576
        %2884 = vmatpush.msra.mxu0 %v2575
        %2885 = vmatmul.f32.gmra.mxu0 %v2859
        %v2886 = vpop.f32.mrf.mxu0
        %v2887 = vadd.f32 0.0, %v2886
        %2888 = vmatmul.f32.gmra.mxu0 %v2861
        %v2889 = vpop.f32.mrf.mxu0
        %v2890 = vadd.f32 0.0, %v2889
        %2891 = vdwg.mxu0
        %2892 = vmatpush.msra.mxu0 0.0
        %2893 = vmatpush.msra.mxu0 0.0
        %2894 = vmatpush.msra.mxu0 0.0
        %2895 = vmatpush.msra.mxu0 0.0
        %2896 = vmatpush.msra.mxu0 0.0
        %2897 = vmatpush.msra.mxu0 0.0
        %2898 = vmatpush.msra.mxu0 0.0
        %2899 = vmatpush.msra.mxu0 0.0
        %2900 = vmatpush.msra.mxu0 0.0
        %2901 = vmatpush.msra.mxu0 0.0
        %2902 = vmatpush.msra.mxu0 0.0
        %2903 = vmatpush.msra.mxu0 0.0
        %2904 = vmatpush.msra.mxu0 %v2594
        %2905 = vmatpush.msra.mxu0 %v2593
        %2906 = vmatpush.msra.mxu0 %v2592
        %2907 = vmatpush.msra.mxu0 %v2591
        %2908 = vmatmul.f32.gmra.mxu0 %v2864
        %v2909 = vpop.f32.mrf.mxu0
        %v2910 = vadd.f32 %v2887, %v2909
        %2911 = vmatmul.f32.gmra.mxu0 %v2867
        %v2912 = vpop.f32.mrf.mxu0
        %v2913 = vadd.f32 %v2890, %v2912
        %2914 = vdwg.mxu0
        %v2915 = vadd.f32 %v2559, %v2910
        %v2916 = vadd.f32 %v2560, %v2913
        %v2917 = vperm.slane %v2595, 0
        %v2918 = vadd.f32 %v2915, %v2917
        %v2919 = vadd.f32 %v2916, %v2917
        %v2920 = vld [vmem:[%s1 + $0x6d0] sm:$0x7]
        %v2921 = vld [vmem:[%s1 + $0x508] sm:$0x1]
        %v2922 = vld [vmem:[%s1 + $0x510] sm:$0x1]
        %v2923 = vld [vmem:[%s1 + $0x518] sm:$0xff]
        %v2924 = vld [vmem:[%s1 + $0x520] sm:$0xff]
        %v2925 = vld [vmem:[%s1 + $0x528] sm:$0xff]
        %v2926 = vld [vmem:[%s1 + $0x530] sm:$0xff]
        %v2927 = vld [vmem:[%s1 + $0x538] sm:$0xff]
        %v2928 = vld [vmem:[%s1 + $0x540] sm:$0x1]
        %v2929 = vld [vmem:[%s1 + $0x548] sm:$0xff]
        %v2930 = vld [vmem:[%s1 + $0x550] sm:$0xff]
        %v2931 = vld [vmem:[%s1 + $0x558] sm:$0xff]
        %v2932 = vld [vmem:[%s1 + $0x560] sm:$0xff]
        %v2933 = vld [vmem:[%s1 + $0x568] sm:$0xff]
        %v2934 = vld [vmem:[%s1 + $0x570] sm:$0x1]
        %v2935 = vsel %vm1088, %v2920, 0.0
        %2936 = vadd.xlane.f32.xlu0 %v2935
        %v2937 = vpop.xlane.xlu0 %2936
        %v2938 = vmul.f32 %v2937, %v1098
        %v2939 = vsub.f32 %v2920, %v2938
        %v2940 = vmul.f32 %v2939, %v2939
        %v2941 = vsel %vm1088, %v2940, 0.0
        %2942 = vadd.xlane.f32.xlu0 %v2941
        %v2943 = vpop.xlane.xlu0 %2942
        %v2944 = vmul.f32 %v2943, %v1098
        %v2945 = vadd.f32 %v2944, 1e-05
        %v2946 = vrsqrt.pop %v2945
        %v2947 = vmul.f32 %v2946, %v2945
        %v2948 = vmul.f32 %v2947, %v2946
        %v2949 = vmul.f32 0.5, %v2948
        %v2950 = vsub.f32 1.5, %v2949
        %v2951 = vmul.f32 %v2946, %v2950
        %vm2952 = vweird.f32 %v2945
        %vm2953 = vweird.f32 %v2946
        %vm2954 = vmor %vm2952, %vm2953
        %v2955 = vsel %vm2954, %v2946, %v2951
        %v2956 = vmul.f32 %v2939, %v2955
        %v2957 = vperm.slane %v2921, 0
        %v2958 = vmul.f32 %v2956, %v2957
        %v2959 = vperm.slane %v2922, 0
        %v2960 = vadd.f32 %v2958, %v2959
        %v2961 = vperm.slane %v2928, 0
        %v2963 = vsel %vm1041, %v2960, 0
        %2965 = vmatpush.msra.mxu0 0.0
        %2966 = vmatpush.msra.mxu0 0.0
        %2967 = vmatpush.msra.mxu0 0.0
        %2968 = vmatpush.msra.mxu0 0.0
        %2969 = vmatpush.msra.mxu0 0.0
        %2970 = vmatpush.msra.mxu0 0.0
        %2971 = vmatpush.msra.mxu0 0.0
        %2972 = vmatpush.msra.mxu0 0.0
        %2973 = vmatpush.msra.mxu0 0.0
        %2974 = vmatpush.msra.mxu0 0.0
        %2975 = vmatpush.msra.mxu0 0.0
        %2976 = vmatpush.msra.mxu0 %v2927
        %2977 = vmatpush.msra.mxu0 %v2926
        %2978 = vmatpush.msra.mxu0 %v2925
        %2979 = vmatpush.msra.mxu0 %v2924
        %2980 = vmatpush.msra.mxu0 %v2923
        %2981 = vmatmul.f32.gmra.mxu0 %v2963
        %v2982 = vpop.f32.mrf.mxu0
        %v2983 = vadd.f32 %v2961, %v2982
        %2984 = vdwg.mxu0
        %vm2985 = vcmask 23552
        %v2987 = vsel %vm2985, %v223, 0
        %v2990 = vsel %vm2985, %v224, 0
        %v2993 = vsel %vm2985, %v225, 0
        %v2996 = vsel %vm1207, %v2983, 0
        %2998 = vmatpush.msra.mxu0 0.0
        %2999 = vmatpush.msra.mxu0 0.0
        %3000 = vmatpush.msra.mxu0 0.0
        %3001 = vmatpush.msra.mxu0 0.0
        %3002 = vmatpush.msra.mxu0 0.0
        %3003 = vmatpush.msra.mxu0 0.0
        %3004 = vmatpush.msra.mxu0 0.0
        %3005 = vmatpush.msra.mxu0 0.0
        %3006 = vmatpush.msra.mxu0 0.0
        %3007 = vmatpush.msra.mxu0 0.0
        %3008 = vmatpush.msra.mxu0 0.0
        %3009 = vmatpush.msra.mxu0 0.0
        %3010 = vmatpush.msra.mxu0 0.0
        %3011 = vmatpush.msra.mxu0 0.0
        %3012 = vmatpush.msra.mxu0 0.0
        %3013 = vmatpush.msra.mxu0 %v2996
        %3014 = vmatmul.f32.gmra.mxu0 %v2987
        %v3015 = vpop.f32.mrf.mxu0
        %v3016 = vadd.f32 0.0, %v3015
        %3017 = vmatmul.f32.gmra.mxu0 %v2990
        %v3018 = vpop.f32.mrf.mxu0
        %v3019 = vadd.f32 0.0, %v3018
        %3020 = vmatmul.f32.gmra.mxu0 %v2993
        %v3021 = vpop.f32.mrf.mxu0
        %v3022 = vadd.f32 0.0, %v3021
        %3023 = vdwg.mxu0
        %v3024 = vmul.f32 %v3016, %v219
        %v3025 = vmul.f32 %v3019, %v220
        %v3026 = vmul.f32 %v3022, %v221
        %3027 = vrot.lane.b32.xlu0 %v2983, 88
        %v3028 = vpop.permute.xlu0 %3027
        %v3030 = vsel %vm1041, %v3024, 0
        %v3033 = vsel %vm1041, %v3025, 0
        %v3036 = vsel %vm1041, %v3026, 0
        %v3038 = vsel %vm1041, %v3028, 0
        %3040 = vmatpush.xpose.msra.mxu0 0.0
        %3041 = vmatpush.xpose.msra.mxu0 0.0
        %3042 = vmatpush.xpose.msra.mxu0 0.0
        %3043 = vmatpush.xpose.msra.mxu0 0.0
        %3044 = vmatpush.xpose.msra.mxu0 0.0
        %3045 = vmatpush.xpose.msra.mxu0 0.0
        %3046 = vmatpush.xpose.msra.mxu0 0.0
        %3047 = vmatpush.xpose.msra.mxu0 0.0
        %3048 = vmatpush.xpose.msra.mxu0 0.0
        %3049 = vmatpush.xpose.msra.mxu0 0.0
        %3050 = vmatpush.xpose.msra.mxu0 0.0
        %3051 = vmatpush.xpose.msra.mxu0 0.0
        %3052 = vmatpush.xpose.msra.mxu0 0.0
        %3053 = vmatpush.xpose.msra.mxu0 0.0
        %3054 = vmatpush.xpose.msra.mxu0 0.0
        %3055 = vmatpush.xpose.msra.mxu0 %v3038
        %3056 = vmatmul.f32.gmra.mxu0 %v3030
        %v3057 = vpop.f32.mrf.mxu0
        %v3058 = vadd.f32 0.0, %v3057
        %3059 = vmatmul.f32.gmra.mxu0 %v3033
        %v3060 = vpop.f32.mrf.mxu0
        %v3061 = vadd.f32 0.0, %v3060
        %3062 = vmatmul.f32.gmra.mxu0 %v3036
        %v3063 = vpop.f32.mrf.mxu0
        %v3064 = vadd.f32 0.0, %v3063
        %3065 = vdwg.mxu0
        %v3066 = vmul.f32 %v3058, 0.15811388
        %v3067 = vmul.f32 %v3061, 0.15811388
        %v3068 = vmul.f32 %v3064, 0.15811388
        %v3069 = vsel %vm2985, %v3066, -inf
        %3070 = vmax.xlane.f32.xlu0 %v3069
        %v3071 = vpop.xlane.xlu0 %3070
        %v3072 = vsel %vm2985, %v3067, -inf
        %3073 = vmax.xlane.f32.xlu0 %v3072
        %v3074 = vpop.xlane.xlu0 %3073
        %v3075 = vsel %vm2985, %v3068, -inf
        %3076 = vmax.xlane.f32.xlu0 %v3075
        %v3077 = vpop.xlane.xlu0 %3076
        %v3078 = vsub.f32 %v3066, %v3071
        %v3079 = vsub.f32 %v3067, %v3074
        %v3080 = vsub.f32 %v3068, %v3077
        %v3081 = vmul.f32 %v3078, 1.442695
        %v3082 = vpow.pop %v3081
        %v3083 = vmul.f32 %v3079, 1.442695
        %v3084 = vpow.pop %v3083
        %v3085 = vmul.f32 %v3080, 1.442695
        %v3086 = vpow.pop %v3085
        %v3087 = vsel %vm2985, %v3082, 0.0
        %3088 = vadd.xlane.f32.xlu0 %v3087
        %v3089 = vpop.xlane.xlu0 %3088
        %v3090 = vsel %vm2985, %v3084, 0.0
        %3091 = vadd.xlane.f32.xlu0 %v3090
        %v3092 = vpop.xlane.xlu0 %3091
        %v3093 = vsel %vm2985, %v3086, 0.0
        %3094 = vadd.xlane.f32.xlu0 %v3093
        %v3095 = vpop.xlane.xlu0 %3094
        %v3096 = vrcp.pop %v3089
        %v3097 = vrcp.pop %v3092
        %v3098 = vrcp.pop %v3095
        %v3099 = vmul.f32 %v3082, %v3096
        %v3100 = vmul.f32 %v3084, %v3097
        %v3101 = vmul.f32 %v3086, %v3098
        %3102 = vrot.lane.b32.xlu0 %v2983, 48
        %v3103 = vpop.permute.xlu0 %3102
        %v3105 = vsel %vm2985, %v3099, 0
        %v3108 = vsel %vm2985, %v3100, 0
        %v3111 = vsel %vm2985, %v3101, 0
        %v3113 = vsel %vm1207, %v3103, 0
        %3115 = vmatpush.msra.mxu0 0.0
        %3116 = vmatpush.msra.mxu0 0.0
        %3117 = vmatpush.msra.mxu0 0.0
        %3118 = vmatpush.msra.mxu0 0.0
        %3119 = vmatpush.msra.mxu0 0.0
        %3120 = vmatpush.msra.mxu0 0.0
        %3121 = vmatpush.msra.mxu0 0.0
        %3122 = vmatpush.msra.mxu0 0.0
        %3123 = vmatpush.msra.mxu0 0.0
        %3124 = vmatpush.msra.mxu0 0.0
        %3125 = vmatpush.msra.mxu0 0.0
        %3126 = vmatpush.msra.mxu0 0.0
        %3127 = vmatpush.msra.mxu0 0.0
        %3128 = vmatpush.msra.mxu0 0.0
        %3129 = vmatpush.msra.mxu0 0.0
        %3130 = vmatpush.msra.mxu0 %v3113
        %3131 = vmatmul.f32.gmra.mxu0 %v3105
        %v3132 = vpop.f32.mrf.mxu0
        %v3133 = vadd.f32 0.0, %v3132
        %3134 = vmatmul.f32.gmra.mxu0 %v3108
        %v3135 = vpop.f32.mrf.mxu0
        %v3136 = vadd.f32 0.0, %v3135
        %3137 = vmatmul.f32.gmra.mxu0 %v3111
        %v3138 = vpop.f32.mrf.mxu0
        %v3139 = vadd.f32 0.0, %v3138
        %3140 = vdwg.mxu0
        %v3141 = vmul.f32 %v3133, %v219
        %v3142 = vmul.f32 %v3136, %v220
        %v3143 = vmul.f32 %v3139, %v221
        %vm3144 = vcmask 195584
        %v3146 = vsel %vm3144, %v222, 0
        %3148 = vmatpush.msra.mxu0 0.0
        %3149 = vmatpush.msra.mxu0 0.0
        %3150 = vmatpush.msra.mxu0 0.0
        %3151 = vmatpush.msra.mxu0 0.0
        %3152 = vmatpush.msra.mxu0 0.0
        %3153 = vmatpush.msra.mxu0 0.0
        %3154 = vmatpush.msra.mxu0 0.0
        %3155 = vmatpush.msra.mxu0 0.0
        %3156 = vmatpush.msra.mxu0 0.0
        %3157 = vmatpush.msra.mxu0 0.0
        %3158 = vmatpush.msra.mxu0 0.0
        %3159 = vmatpush.msra.mxu0 0.0
        %3160 = vmatpush.msra.mxu0 0.0
        %3161 = vmatpush.msra.mxu0 %v3143
        %3162 = vmatpush.msra.mxu0 %v3142
        %3163 = vmatpush.msra.mxu0 %v3141
        %3164 = vmatmul.f32.gmra.mxu0 %v3146
        %v3165 = vpop.f32.mrf.mxu0
        %v3166 = vadd.f32 0.0, %v3165
        %3167 = vdwg.mxu0
        %v3169 = vsel %vm1041, %v3166, 0
        %3171 = vmatpush.msra.mxu0 0.0
        %3172 = vmatpush.msra.mxu0 0.0
        %3173 = vmatpush.msra.mxu0 0.0
        %3174 = vmatpush.msra.mxu0 0.0
        %3175 = vmatpush.msra.mxu0 0.0
        %3176 = vmatpush.msra.mxu0 0.0
        %3177 = vmatpush.msra.mxu0 0.0
        %3178 = vmatpush.msra.mxu0 0.0
        %3179 = vmatpush.msra.mxu0 0.0
        %3180 = vmatpush.msra.mxu0 0.0
        %3181 = vmatpush.msra.mxu0 0.0
        %3182 = vmatpush.msra.mxu0 %v2933
        %3183 = vmatpush.msra.mxu0 %v2932
        %3184 = vmatpush.msra.mxu0 %v2931
        %3185 = vmatpush.msra.mxu0 %v2930
        %3186 = vmatpush.msra.mxu0 %v2929
        %3187 = vmatmul.f32.gmra.mxu0 %v3169
        %v3188 = vpop.f32.mrf.mxu0
        %v3189 = vadd.f32 0.0, %v3188
        %3190 = vdwg.mxu0
        %v3191 = vadd.f32 %v2920, %v3189
        %v3192 = vperm.slane %v2934, 0
        %v3193 = vadd.f32 %v3191, %v3192
        %v3194 = vld [vmem:[%s1 + $0x578] sm:$0x1]
        %v3195 = vld [vmem:[%s1 + $0x580] sm:$0x1]
        %v3196 = vsel %vm1088, %v3193, 0.0
        %3197 = vadd.xlane.f32.xlu0 %v3196
        %v3198 = vpop.xlane.xlu0 %3197
        %v3199 = vmul.f32 %v3198, %v1098
        %v3200 = vsub.f32 %v3193, %v3199
        %v3201 = vmul.f32 %v3200, %v3200
        %v3202 = vsel %vm1088, %v3201, 0.0
        %3203 = vadd.xlane.f32.xlu0 %v3202
        %v3204 = vpop.xlane.xlu0 %3203
        %v3205 = vmul.f32 %v3204, %v1098
        %v3206 = vadd.f32 %v3205, 1e-05
        %v3207 = vrsqrt.pop %v3206
        %v3208 = vmul.f32 %v3207, %v3206
        %v3209 = vmul.f32 %v3208, %v3207
        %v3210 = vmul.f32 0.5, %v3209
        %v3211 = vsub.f32 1.5, %v3210
        %v3212 = vmul.f32 %v3207, %v3211
        %vm3213 = vweird.f32 %v3206
        %vm3214 = vweird.f32 %v3207
        %vm3215 = vmor %vm3213, %vm3214
        %v3216 = vsel %vm3215, %v3207, %v3212
        %v3217 = vmul.f32 %v3200, %v3216
        %v3218 = vperm.slane %v3194, 0
        %v3219 = vmul.f32 %v3217, %v3218
        %v3220 = vperm.slane %v3195, 0
        %v3221 = vadd.f32 %v3219, %v3220
        %v3222 = vld [vmem:[%s1 + $0x588] sm:$0xff]
        %v3223 = vld [vmem:[%s1 + $0x590] sm:$0xff]
        %v3224 = vld [vmem:[%s1 + $0x598] sm:$0xff]
        %v3225 = vld [vmem:[%s1 + $0x5a0] sm:$0xff]
        %v3226 = vld [vmem:[%s1 + $0x5a8] sm:$0xff]
        %v3227 = vld [vmem:[%s1 + $0x5b0] sm:$0x1]
        %v3228 = vld [vmem:[%s1 + $0x5b8] sm:$0xff]
        %v3229 = vld [vmem:[%s1 + $0x5c0] sm:$0xff]
        %v3230 = vld [vmem:[%s1 + $0x5c8] sm:$0xff]
        %v3231 = vld [vmem:[%s1 + $0x5d0] sm:$0xff]
        %v3232 = vld [vmem:[%s1 + $0x5d8] sm:$0xff]
        %v3233 = vld [vmem:[%s1 + $0x5e0] sm:$0x1]
        %v3234 = vld [vmem:[%s1 + $0x5e8] sm:$0xff]
        %v3235 = vld [vmem:[%s1 + $0x5f0] sm:$0xff]
        %v3236 = vld [vmem:[%s1 + $0x5f8] sm:$0xff]
        %v3237 = vld [vmem:[%s1 + $0x600] sm:$0xff]
        %v3238 = vld [vmem:[%s1 + $0x608] sm:$0xff]
        %v3239 = vld [vmem:[%s1 + $0x610] sm:$0x1]
        %v3240 = vperm.slane %v3227, 0
        %v3242 = vsel %vm1041, %v3221, 0
        %3244 = vmatpush.msra.mxu0 0.0
        %3245 = vmatpush.msra.mxu0 0.0
        %3246 = vmatpush.msra.mxu0 0.0
        %3247 = vmatpush.msra.mxu0 0.0
        %3248 = vmatpush.msra.mxu0 0.0
        %3249 = vmatpush.msra.mxu0 0.0
        %3250 = vmatpush.msra.mxu0 0.0
        %3251 = vmatpush.msra.mxu0 0.0
        %3252 = vmatpush.msra.mxu0 0.0
        %3253 = vmatpush.msra.mxu0 0.0
        %3254 = vmatpush.msra.mxu0 0.0
        %3255 = vmatpush.msra.mxu0 %v3226
        %3256 = vmatpush.msra.mxu0 %v3225
        %3257 = vmatpush.msra.mxu0 %v3224
        %3258 = vmatpush.msra.mxu0 %v3223
        %3259 = vmatpush.msra.mxu0 %v3222
        %3260 = vmatmul.f32.gmra.mxu0 %v3242
        %v3261 = vpop.f32.mrf.mxu0
        %v3262 = vadd.f32 %v3240, %v3261
        %3263 = vdwg.mxu0
        %vm3264 = vcmask 387264
        %v3265 = vsel %vm3264, %v3262, -inf
        %3266 = vmax.xlane.f32.xlu0 %v3265
        %v3267 = vpop.xlane.xlu0 %3266
        %v3268 = vsub.f32 %v3262, %v3267
        %v3269 = vmul.f32 %v3268, 1.442695
        %v3270 = vpow.pop %v3269
        %3272 = vrot.lane.b32.xlu0 %v3270, 104
        %v3273 = vpop.permute.xlu0 %3272
        %vm3275 = vcmask 190464
        %v3276 = vsel %vm3275, %v3273, 0.0
        %3277 = vadd.xlane.f32.xlu0 %v3276
        %v3278 = vpop.xlane.xlu0 %3277
        %v3279 = vrcp.pop %v3278
        %v3280 = vmul.f32 %v3270, %v3279
        %v3281 = vxor.u32 %v3262, 2147483648
        %v3282 = vmul.f32 %v3281, 1.442695
        %v3283 = vpow.pop %v3282
        %v3284 = vadd.f32 %v3283, 1.0
        %v3285 = vrcp.pop %v3284
        %v3286 = vmul.f32 %v3284, %v3285
        %v3287 = vsub.f32 1.0, %v3286
        %v3288 = vmul.f32 %v3285, %v3287
        %v3289 = vadd.f32 %v3285, %v3288
        %vm3290 = vweird.f32 %v3284
        %vm3291 = vweird.f32 %v3285
        %vm3292 = vmor %vm3290, %vm3291
        %v3293 = vsel %vm3292, %v3285, %v3289
        %v3294 = vand.u32 2147483647, %v3284
        %vm3295 = vcmp.eq.f32.partialorder %v3294, 8.507059e+37
        %v3296 = vand.u32 %v3284, 2147483648
        %v3297 = vor.u32 1.1754944e-38, %v3296
        %v3298 = vsel %vm3295, %v3297, %v3293
        %v3299 = vmul.f32 1.0, %v3298
        %v3300 = vmul.f32 %v3299, 11.0
        %v3301 = vfloor.f32 %v3300
        %v3302 = vmin.f32 %v3301, 10.0
        %v3303 = vcvt.f32.s32.to.zero.pseudo %v3302
        %v3304 = vlaneseq
        %v3305 = vand.u32 %v3304, 127
        %v3306 = vperm.slane %v3303, 0
        %v3307 = vlaneseq
        %v3308 = vshrl.u32 %v3307, 7
        %3310 = vset.pattern.permute.xlu0 %v3308
        %3311 = vperm.xlu0 %3310, %v3306
        %v3312 = vpop.permute.xlu0 %3311
        %v3313 = vlaneseq
        %v3314 = vshrl.u32 %v3313, 7
        %v3315 = vadd.s32 %v3314, 8
        %3316 = vset.pattern.permute.xlu0 %v3315
        %3317 = vperm.xlu0 %3316, %v3306
        %v3318 = vpop.permute.xlu0 %3317
        %v3319 = vlaneseq
        %v3320 = vshrl.u32 %v3319, 7
        %v3321 = vadd.s32 %v3320, 16
        %3322 = vset.pattern.permute.xlu0 %v3321
        %3323 = vperm.xlu0 %3322, %v3306
        %v3324 = vpop.permute.xlu0 %3323
        %v3325 = vperm.slane %v3303, 1
        %v3326 = vlaneseq
        %v3327 = vshrl.u32 %v3326, 7
        %3329 = vset.pattern.permute.xlu0 %v3327
        %3330 = vperm.xlu0 %3329, %v3325
        %v3331 = vpop.permute.xlu0 %3330
        %v3332 = vlaneseq
        %v3333 = vshrl.u32 %v3332, 7
        %v3334 = vadd.s32 %v3333, 8
        %3335 = vset.pattern.permute.xlu0 %v3334
        %3336 = vperm.xlu0 %3335, %v3325
        %v3337 = vpop.permute.xlu0 %3336
        %v3338 = vlaneseq
        %v3339 = vshrl.u32 %v3338, 7
        %v3340 = vadd.s32 %v3339, 16
        %3341 = vset.pattern.permute.xlu0 %v3340
        %3342 = vperm.xlu0 %3341, %v3325
        %v3343 = vpop.permute.xlu0 %3342
        %v3344 = vperm.slane %v3303, 2
        %v3345 = vlaneseq
        %v3346 = vshrl.u32 %v3345, 7
        %3348 = vset.pattern.permute.xlu0 %v3346
        %3349 = vperm.xlu0 %3348, %v3344
        %v3350 = vpop.permute.xlu0 %3349
        %v3351 = vlaneseq
        %v3352 = vshrl.u32 %v3351, 7
        %v3353 = vadd.s32 %v3352, 8
        %3354 = vset.pattern.permute.xlu0 %v3353
        %3355 = vperm.xlu0 %3354, %v3344
        %v3356 = vpop.permute.xlu0 %3355
        %v3357 = vlaneseq
        %v3358 = vshrl.u32 %v3357, 7
        %v3359 = vadd.s32 %v3358, 16
        %3360 = vset.pattern.permute.xlu0 %v3359
        %3361 = vperm.xlu0 %3360, %v3344
        %v3362 = vpop.permute.xlu0 %3361
        %vm3363 = vcmp.eq.s32.totalorder %v3305, %v3312
        %vm3364 = vcmp.eq.s32.totalorder %v3305, %v3318
        %vm3365 = vcmp.eq.s32.totalorder %v3305, %v3324
        %vm3366 = vcmp.eq.s32.totalorder %v3305, %v3331
        %vm3367 = vcmp.eq.s32.totalorder %v3305, %v3337
        %vm3368 = vcmp.eq.s32.totalorder %v3305, %v3343
        %vm3369 = vcmp.eq.s32.totalorder %v3305, %v3350
        %vm3370 = vcmp.eq.s32.totalorder %v3305, %v3356
        %vm3371 = vcmp.eq.s32.totalorder %v3305, %v3362
        %v3372 = vperm.slane %v3280, 0
        %v3373 = vlaneseq
        %v3374 = vshrl.u32 %v3373, 7
        %v3375 = vadd.s32 %v3374, 24
        %3376 = vset.pattern.permute.xlu0 %v3375
        %3377 = vperm.xlu0 %3376, %v3372
        %v3378 = vpop.permute.xlu0 %3377
        %v3379 = vlaneseq
        %v3380 = vshrl.u32 %v3379, 7
        %v3381 = vadd.s32 %v3380, 32
        %3382 = vset.pattern.permute.xlu0 %v3381
        %3383 = vperm.xlu0 %3382, %v3372
        %v3384 = vpop.permute.xlu0 %3383
        %v3385 = vlaneseq
        %v3386 = vshrl.u32 %v3385, 7
        %v3387 = vadd.s32 %v3386, 40
        %3388 = vset.pattern.permute.xlu0 %v3387
        %3389 = vperm.xlu0 %3388, %v3372
        %v3390 = vpop.permute.xlu0 %3389
        %v3391 = vperm.slane %v3280, 1
        %v3392 = vlaneseq
        %v3393 = vshrl.u32 %v3392, 7
        %v3394 = vadd.s32 %v3393, 24
        %3395 = vset.pattern.permute.xlu0 %v3394
        %3396 = vperm.xlu0 %3395, %v3391
        %v3397 = vpop.permute.xlu0 %3396
        %v3398 = vlaneseq
        %v3399 = vshrl.u32 %v3398, 7
        %v3400 = vadd.s32 %v3399, 32
        %3401 = vset.pattern.permute.xlu0 %v3400
        %3402 = vperm.xlu0 %3401, %v3391
        %v3403 = vpop.permute.xlu0 %3402
        %v3404 = vlaneseq
        %v3405 = vshrl.u32 %v3404, 7
        %v3406 = vadd.s32 %v3405, 40
        %3407 = vset.pattern.permute.xlu0 %v3406
        %3408 = vperm.xlu0 %3407, %v3391
        %v3409 = vpop.permute.xlu0 %3408
        %v3410 = vperm.slane %v3280, 2
        %v3411 = vlaneseq
        %v3412 = vshrl.u32 %v3411, 7
        %v3413 = vadd.s32 %v3412, 24
        %3414 = vset.pattern.permute.xlu0 %v3413
        %3415 = vperm.xlu0 %3414, %v3410
        %v3416 = vpop.permute.xlu0 %3415
        %v3417 = vlaneseq
        %v3418 = vshrl.u32 %v3417, 7
        %v3419 = vadd.s32 %v3418, 32
        %3420 = vset.pattern.permute.xlu0 %v3419
        %3421 = vperm.xlu0 %3420, %v3410
        %v3422 = vpop.permute.xlu0 %3421
        %v3423 = vlaneseq
        %v3424 = vshrl.u32 %v3423, 7
        %v3425 = vadd.s32 %v3424, 40
        %3426 = vset.pattern.permute.xlu0 %v3425
        %3427 = vperm.xlu0 %3426, %v3410
        %v3428 = vpop.permute.xlu0 %3427
        %v3429 = vsel %vm3363, %v3378, 0.0
        %v3430 = vsel %vm3364, %v3384, 0.0
        %v3431 = vsel %vm3365, %v3390, 0.0
        %v3432 = vsel %vm3366, %v3397, 0.0
        %v3433 = vsel %vm3367, %v3403, 0.0
        %v3434 = vsel %vm3368, %v3409, 0.0
        %v3435 = vsel %vm3369, %v3416, 0.0
        %v3436 = vsel %vm3370, %v3422, 0.0
        %v3437 = vsel %vm3371, %v3428, 0.0
        %v3439 = vsel %vm1173, %v3429, 0
        %v3442 = vsel %vm1173, %v3430, 0
        %v3445 = vsel %vm1173, %v3431, 0
        %v3448 = vsel %vm1207, %v2919, 0
        %3450 = vmatpush.msra.mxu0 0.0
        %3451 = vmatpush.msra.mxu0 0.0
        %3452 = vmatpush.msra.mxu0 0.0
        %3453 = vmatpush.msra.mxu0 0.0
        %3454 = vmatpush.msra.mxu0 0.0
        %3455 = vmatpush.msra.mxu0 0.0
        %3456 = vmatpush.msra.mxu0 0.0
        %3457 = vmatpush.msra.mxu0 0.0
        %3458 = vmatpush.msra.mxu0 0.0
        %3459 = vmatpush.msra.mxu0 0.0
        %3460 = vmatpush.msra.mxu0 0.0
        %3461 = vmatpush.msra.mxu0 0.0
        %3462 = vmatpush.msra.mxu0 0.0
        %3463 = vmatpush.msra.mxu0 0.0
        %3464 = vmatpush.msra.mxu0 %v3448
        %3465 = vmatpush.msra.mxu0 %v2918
        %3466 = vmatmul.f32.gmra.mxu0 %v3439
        %v3467 = vpop.f32.mrf.mxu0
        %v3468 = vadd.f32 0.0, %v3467
        %3469 = vmatmul.f32.gmra.mxu0 %v3442
        %v3470 = vpop.f32.mrf.mxu0
        %v3471 = vadd.f32 0.0, %v3470
        %3472 = vmatmul.f32.gmra.mxu0 %v3445
        %v3473 = vpop.f32.mrf.mxu0
        %v3474 = vadd.f32 0.0, %v3473
        %3475 = vdwg.mxu0
        %v3477 = vsel %vm1173, %v3432, 0
        %v3480 = vsel %vm1173, %v3433, 0
        %v3483 = vsel %vm1173, %v3434, 0
        %3485 = vmatpush.msra.mxu0 0.0
        %3486 = vmatpush.msra.mxu0 0.0
        %3487 = vmatpush.msra.mxu0 0.0
        %3488 = vmatpush.msra.mxu0 0.0
        %3489 = vmatpush.msra.mxu0 0.0
        %3490 = vmatpush.msra.mxu0 0.0
        %3491 = vmatpush.msra.mxu0 0.0
        %3492 = vmatpush.msra.mxu0 0.0
        %3493 = vmatpush.msra.mxu0 0.0
        %3494 = vmatpush.msra.mxu0 0.0
        %3495 = vmatpush.msra.mxu0 0.0
        %3496 = vmatpush.msra.mxu0 0.0
        %3497 = vmatpush.msra.mxu0 0.0
        %3498 = vmatpush.msra.mxu0 0.0
        %3499 = vmatpush.msra.mxu0 %v3448
        %3500 = vmatpush.msra.mxu0 %v2918
        %3501 = vmatmul.f32.gmra.mxu0 %v3477
        %v3502 = vpop.f32.mrf.mxu0
        %v3503 = vadd.f32 0.0, %v3502
        %3504 = vmatmul.f32.gmra.mxu0 %v3480
        %v3505 = vpop.f32.mrf.mxu0
        %v3506 = vadd.f32 0.0, %v3505
        %3507 = vmatmul.f32.gmra.mxu0 %v3483
        %v3508 = vpop.f32.mrf.mxu0
        %v3509 = vadd.f32 0.0, %v3508
        %3510 = vdwg.mxu0
        %v3512 = vsel %vm1173, %v3435, 0
        %v3515 = vsel %vm1173, %v3436, 0
        %v3518 = vsel %vm1173, %v3437, 0
        %3520 = vmatpush.msra.mxu0 0.0
        %3521 = vmatpush.msra.mxu0 0.0
        %3522 = vmatpush.msra.mxu0 0.0
        %3523 = vmatpush.msra.mxu0 0.0
        %3524 = vmatpush.msra.mxu0 0.0
        %3525 = vmatpush.msra.mxu0 0.0
        %3526 = vmatpush.msra.mxu0 0.0
        %3527 = vmatpush.msra.mxu0 0.0
        %3528 = vmatpush.msra.mxu0 0.0
        %3529 = vmatpush.msra.mxu0 0.0
        %3530 = vmatpush.msra.mxu0 0.0
        %3531 = vmatpush.msra.mxu0 0.0
        %3532 = vmatpush.msra.mxu0 0.0
        %3533 = vmatpush.msra.mxu0 0.0
        %3534 = vmatpush.msra.mxu0 %v3448
        %3535 = vmatpush.msra.mxu0 %v2918
        %3536 = vmatmul.f32.gmra.mxu0 %v3512
        %v3537 = vpop.f32.mrf.mxu0
        %v3538 = vadd.f32 0.0, %v3537
        %3539 = vmatmul.f32.gmra.mxu0 %v3515
        %v3540 = vpop.f32.mrf.mxu0
        %v3541 = vadd.f32 0.0, %v3540
        %3542 = vmatmul.f32.gmra.mxu0 %v3518
        %v3543 = vpop.f32.mrf.mxu0
        %v3544 = vadd.f32 0.0, %v3543
        %3545 = vdwg.mxu0
        %v3546 = vperm.slane %v3233, 0
        %v3548 = vsel %vm1041, %v3468, 0
        %v3551 = vsel %vm1041, %v3471, 0
        %v3554 = vsel %vm1041, %v3474, 0
        %v3557 = vsel %vm1041, %v3503, 0
        %v3560 = vsel %vm1041, %v3506, 0
        %v3563 = vsel %vm1041, %v3509, 0
        %v3566 = vsel %vm1041, %v3538, 0
        %v3569 = vsel %vm1041, %v3541, 0
        %v3572 = vsel %vm1041, %v3544, 0
        %3574 = vmatpush.msra.mxu0 0.0
        %3575 = vmatpush.msra.mxu0 0.0
        %3576 = vmatpush.msra.mxu0 0.0
        %3577 = vmatpush.msra.mxu0 0.0
        %3578 = vmatpush.msra.mxu0 0.0
        %3579 = vmatpush.msra.mxu0 0.0
        %3580 = vmatpush.msra.mxu0 0.0
        %3581 = vmatpush.msra.mxu0 0.0
        %3582 = vmatpush.msra.mxu0 0.0
        %3583 = vmatpush.msra.mxu0 0.0
        %3584 = vmatpush.msra.mxu0 0.0
        %3585 = vmatpush.msra.mxu0 %v3232
        %3586 = vmatpush.msra.mxu0 %v3231
        %3587 = vmatpush.msra.mxu0 %v3230
        %3588 = vmatpush.msra.mxu0 %v3229
        %3589 = vmatpush.msra.mxu0 %v3228
        %3590 = vmatmul.f32.gmra.mxu0 %v3548
        %v3591 = vpop.f32.mrf.mxu0
        %v3592 = vadd.f32 %v3546, %v3591
        %3593 = vmatmul.f32.gmra.mxu0 %v3551
        %v3594 = vpop.f32.mrf.mxu0
        %v3595 = vadd.f32 %v3546, %v3594
        %3596 = vmatmul.f32.gmra.mxu0 %v3554
        %v3597 = vpop.f32.mrf.mxu0
        %v3598 = vadd.f32 %v3546, %v3597
        %3599 = vmatmul.f32.gmra.mxu0 %v3557
        %v3600 = vpop.f32.mrf.mxu0
        %v3601 = vadd.f32 %v3546, %v3600
        %3602 = vmatmul.f32.gmra.mxu0 %v3560
        %v3603 = vpop.f32.mrf.mxu0
        %v3604 = vadd.f32 %v3546, %v3603
        %3605 = vmatmul.f32.gmra.mxu0 %v3563
        %v3606 = vpop.f32.mrf.mxu0
        %v3607 = vadd.f32 %v3546, %v3606
        %3608 = vmatmul.f32.gmra.mxu0 %v3566
        %v3609 = vpop.f32.mrf.mxu0
        %v3610 = vadd.f32 %v3546, %v3609
        %3611 = vmatmul.f32.gmra.mxu0 %v3569
        %v3612 = vpop.f32.mrf.mxu0
        %v3613 = vadd.f32 %v3546, %v3612
        %3614 = vmatmul.f32.gmra.mxu0 %v3572
        %v3615 = vpop.f32.mrf.mxu0
        %v3616 = vadd.f32 %v3546, %v3615
        %3617 = vdwg.mxu0
        %v3618 = vsel %vm1207, %v3221, 0
        %3620 = vmatpush.msra.mxu0 0.0
        %3621 = vmatpush.msra.mxu0 0.0
        %3622 = vmatpush.msra.mxu0 0.0
        %3623 = vmatpush.msra.mxu0 0.0
        %3624 = vmatpush.msra.mxu0 0.0
        %3625 = vmatpush.msra.mxu0 0.0
        %3626 = vmatpush.msra.mxu0 0.0
        %3627 = vmatpush.msra.mxu0 0.0
        %3628 = vmatpush.msra.mxu0 0.0
        %3629 = vmatpush.msra.mxu0 0.0
        %3630 = vmatpush.msra.mxu0 0.0
        %3631 = vmatpush.msra.mxu0 0.0
        %3632 = vmatpush.msra.mxu0 0.0
        %3633 = vmatpush.msra.mxu0 0.0
        %3634 = vmatpush.msra.mxu0 0.0
        %3635 = vmatpush.msra.mxu0 %v3618
        %3636 = vmatmul.f32.gmra.mxu0 %v2987
        %v3637 = vpop.f32.mrf.mxu0
        %v3638 = vadd.f32 0.0, %v3637
        %3639 = vmatmul.f32.gmra.mxu0 %v2990
        %v3640 = vpop.f32.mrf.mxu0
        %v3641 = vadd.f32 0.0, %v3640
        %3642 = vmatmul.f32.gmra.mxu0 %v2993
        %v3643 = vpop.f32.mrf.mxu0
        %v3644 = vadd.f32 0.0, %v3643
        %3645 = vdwg.mxu0
        %v3646 = vmul.f32 %v3638, %v219
        %v3647 = vmul.f32 %v3641, %v220
        %v3648 = vmul.f32 %v3644, %v221
        %v3650 = vsel %vm1041, %v3646, 0
        %v3653 = vsel %vm1041, %v3647, 0
        %v3656 = vsel %vm1041, %v3648, 0
        %v3659 = vsel %vm1041, %v3592, 0
        %v3662 = vsel %vm1041, %v3595, 0
        %v3665 = vsel %vm1041, %v3598, 0
        %v3668 = vsel %vm1041, %v3601, 0
        %v3671 = vsel %vm1041, %v3604, 0
        %v3674 = vsel %vm1041, %v3607, 0
        %v3677 = vsel %vm1041, %v3610, 0
        %v3680 = vsel %vm1041, %v3613, 0
        %v3683 = vsel %vm1041, %v3616, 0
        %3685 = vmatpush.xpose.msra.mxu0 0.0
        %3686 = vmatpush.xpose.msra.mxu0 0.0
        %3687 = vmatpush.xpose.msra.mxu0 0.0
        %3688 = vmatpush.xpose.msra.mxu0 0.0
        %3689 = vmatpush.xpose.msra.mxu0 0.0
        %3690 = vmatpush.xpose.msra.mxu0 0.0
        %3691 = vmatpush.xpose.msra.mxu0 0.0
        %3692 = vmatpush.xpose.msra.mxu0 %v3683
        %3693 = vmatpush.xpose.msra.mxu0 %v3680
        %3694 = vmatpush.xpose.msra.mxu0 %v3677
        %3695 = vmatpush.xpose.msra.mxu0 %v3674
        %3696 = vmatpush.xpose.msra.mxu0 %v3671
        %3697 = vmatpush.xpose.msra.mxu0 %v3668
        %3698 = vmatpush.xpose.msra.mxu0 %v3665
        %3699 = vmatpush.xpose.msra.mxu0 %v3662
        %3700 = vmatpush.xpose.msra.mxu0 %v3659
        %3701 = vmatmul.f32.gmra.mxu0 %v3650
        %v3702 = vpop.f32.mrf.mxu0
        %v3703 = vadd.f32 0.0, %v3702
        %3704 = vmatmul.f32.gmra.mxu0 %v3653
        %v3705 = vpop.f32.mrf.mxu0
        %v3706 = vadd.f32 0.0, %v3705
        %3707 = vmatmul.f32.gmra.mxu0 %v3656
        %v3708 = vpop.f32.mrf.mxu0
        %v3709 = vadd.f32 0.0, %v3708
        %3710 = vdwg.mxu0
        %v3711 = vmul.f32 %v3703, 0.15811388
        %v3712 = vmul.f32 %v3706, 0.15811388
        %v3713 = vmul.f32 %v3709, 0.15811388
        %v3714 = vadd.f32 %v3711, %v226
        %v3715 = vadd.f32 %v3712, %v227
        %v3716 = vadd.f32 %v3713, %v228
        %vm3717 = vcmask 588800
        %v3718 = vsel %vm3717, %v3714, -inf
        %3719 = vmax.xlane.f32.xlu0 %v3718
        %v3720 = vpop.xlane.xlu0 %3719
        %v3721 = vsel %vm3717, %v3715, -inf
        %3722 = vmax.xlane.f32.xlu0 %v3721
        %v3723 = vpop.xlane.xlu0 %3722
        %v3724 = vsel %vm3717, %v3716, -inf
        %3725 = vmax.xlane.f32.xlu0 %v3724
        %v3726 = vpop.xlane.xlu0 %3725
        %v3727 = vsub.f32 %v3714, %v3720
        %v3728 = vsub.f32 %v3715, %v3723
        %v3729 = vsub.f32 %v3716, %v3726
        %v3730 = vmul.f32 %v3727, 1.442695
        %v3731 = vpow.pop %v3730
        %v3732 = vmul.f32 %v3728, 1.442695
        %v3733 = vpow.pop %v3732
        %v3734 = vmul.f32 %v3729, 1.442695
        %v3735 = vpow.pop %v3734
        %v3736 = vsel %vm3717, %v3731, 0.0
        %3737 = vadd.xlane.f32.xlu0 %v3736
        %v3738 = vpop.xlane.xlu0 %3737
        %v3739 = vsel %vm3717, %v3733, 0.0
        %3740 = vadd.xlane.f32.xlu0 %v3739
        %v3741 = vpop.xlane.xlu0 %3740
        %v3742 = vsel %vm3717, %v3735, 0.0
        %3743 = vadd.xlane.f32.xlu0 %v3742
        %v3744 = vpop.xlane.xlu0 %3743
        %v3745 = vrcp.pop %v3738
        %v3746 = vrcp.pop %v3741
        %v3747 = vrcp.pop %v3744
        %v3748 = vmul.f32 %v3731, %v3745
        %v3749 = vmul.f32 %v3733, %v3746
        %v3750 = vmul.f32 %v3735, %v3747
        %3751 = vrot.lane.b32.xlu0 %v3592, 88
        %v3752 = vpop.permute.xlu0 %3751
        %3753 = vrot.lane.b32.xlu0 %v3595, 88
        %v3754 = vpop.permute.xlu0 %3753
        %3755 = vrot.lane.b32.xlu0 %v3598, 88
        %v3756 = vpop.permute.xlu0 %3755
        %3757 = vrot.lane.b32.xlu0 %v3601, 88
        %v3758 = vpop.permute.xlu0 %3757
        %3759 = vrot.lane.b32.xlu0 %v3604, 88
        %v3760 = vpop.permute.xlu0 %3759
        %3761 = vrot.lane.b32.xlu0 %v3607, 88
        %v3762 = vpop.permute.xlu0 %3761
        %3763 = vrot.lane.b32.xlu0 %v3610, 88
        %v3764 = vpop.permute.xlu0 %3763
        %3765 = vrot.lane.b32.xlu0 %v3613, 88
        %v3766 = vpop.permute.xlu0 %3765
        %3767 = vrot.lane.b32.xlu0 %v3616, 88
        %v3768 = vpop.permute.xlu0 %3767
        %v3779 = vsel %vm3717, %v3748, 0
        %v3782 = vsel %vm3717, %v3749, 0
        %v3785 = vsel %vm3717, %v3750, 0
        %3787 = vmatpush.msra.mxu0 0.0
        %3788 = vmatpush.msra.mxu0 0.0
        %3789 = vmatpush.msra.mxu0 0.0
        %3790 = vmatpush.msra.mxu0 0.0
        %3791 = vmatpush.msra.mxu0 0.0
        %3792 = vmatpush.msra.mxu0 0.0
        %3793 = vmatpush.msra.mxu0 0.0
        %3794 = vmatpush.msra.mxu0 %v3768
        %3795 = vmatpush.msra.mxu0 %v3766
        %3796 = vmatpush.msra.mxu0 %v3764
        %3797 = vmatpush.msra.mxu0 %v3762
        %3798 = vmatpush.msra.mxu0 %v3760
        %3799 = vmatpush.msra.mxu0 %v3758
        %3800 = vmatpush.msra.mxu0 %v3756
        %3801 = vmatpush.msra.mxu0 %v3754
        %3802 = vmatpush.msra.mxu0 %v3752
        %3803 = vmatmul.f32.gmra.mxu0 %v3779
        %v3804 = vpop.f32.mrf.mxu0
        %v3805 = vadd.f32 0.0, %v3804
        %3806 = vmatmul.f32.gmra.mxu0 %v3782
        %v3807 = vpop.f32.mrf.mxu0
        %v3808 = vadd.f32 0.0, %v3807
        %3809 = vmatmul.f32.gmra.mxu0 %v3785
        %v3810 = vpop.f32.mrf.mxu0
        %v3811 = vadd.f32 0.0, %v3810
        %3812 = vdwg.mxu0
        %v3813 = vmul.f32 %v3805, %v219
        %v3814 = vmul.f32 %v3808, %v220
        %v3815 = vmul.f32 %v3811, %v221
        %3816 = vmatpush.msra.mxu0 0.0
        %3817 = vmatpush.msra.mxu0 0.0
        %3818 = vmatpush.msra.mxu0 0.0
        %3819 = vmatpush.msra.mxu0 0.0
        %3820 = vmatpush.msra.mxu0 0.0
        %3821 = vmatpush.msra.mxu0 0.0
        %3822 = vmatpush.msra.mxu0 0.0
        %3823 = vmatpush.msra.mxu0 0.0
        %3824 = vmatpush.msra.mxu0 0.0
        %3825 = vmatpush.msra.mxu0 0.0
        %3826 = vmatpush.msra.mxu0 0.0
        %3827 = vmatpush.msra.mxu0 0.0
        %3828 = vmatpush.msra.mxu0 0.0
        %3829 = vmatpush.msra.mxu0 %v3815
        %3830 = vmatpush.msra.mxu0 %v3814
        %3831 = vmatpush.msra.mxu0 %v3813
        %3832 = vmatmul.f32.gmra.mxu0 %v3146
        %v3833 = vpop.f32.mrf.mxu0
        %v3834 = vadd.f32 0.0, %v3833
        %3835 = vdwg.mxu0
        %v3836 = vperm.slane %v3239, 0
        %v3838 = vsel %vm1041, %v3834, 0
        %3840 = vmatpush.msra.mxu0 0.0
        %3841 = vmatpush.msra.mxu0 0.0
        %3842 = vmatpush.msra.mxu0 0.0
        %3843 = vmatpush.msra.mxu0 0.0
        %3844 = vmatpush.msra.mxu0 0.0
        %3845 = vmatpush.msra.mxu0 0.0
        %3846 = vmatpush.msra.mxu0 0.0
        %3847 = vmatpush.msra.mxu0 0.0
        %3848 = vmatpush.msra.mxu0 0.0
        %3849 = vmatpush.msra.mxu0 0.0
        %3850 = vmatpush.msra.mxu0 0.0
        %3851 = vmatpush.msra.mxu0 %v3238
        %3852 = vmatpush.msra.mxu0 %v3237
        %3853 = vmatpush.msra.mxu0 %v3236
        %3854 = vmatpush.msra.mxu0 %v3235
        %3855 = vmatpush.msra.mxu0 %v3234
        %3856 = vmatmul.f32.gmra.mxu0 %v3838
        %v3857 = vpop.f32.mrf.mxu0
        %v3858 = vadd.f32 %v3836, %v3857
        %3859 = vdwg.mxu0
        %v3860 = vld [vmem:[%s1 + $0x618] sm:$0x1]
        %v3861 = vld [vmem:[%s1 + $0x620] sm:$0x1]
        %v3862 = vld [vmem:[%s2 + $0xe0] sm:$0xff]
        %v3863 = vld [vmem:[%s2 + $0xe8] sm:$0xff]
        %v3864 = vld [vmem:[%s2 + $0xf0] sm:$0xff]
        %v3865 = vld [vmem:[%s2 + $0xf8] sm:$0xff]
        %v3866 = vld [vmem:[%s2 + $0x100] sm:$0xff]
        %v3867 = vld [vmem:[%s2 + $0x108] sm:$0xff]
        %v3868 = vld [vmem:[%s2 + $0x110] sm:$0xff]
        %v3869 = vld [vmem:[%s2 + $0x118] sm:$0xff]
        %v3870 = vld [vmem:[%s2 + $0x120] sm:$0xff]
        %v3871 = vld [vmem:[%s2 + $0x128] sm:$0xff]
        %s3872 = scalar_lea.vmem %s2, 304
        %v3873 = vld [vmem:[%s3872] ss:$8 sm:$0x3]
        %v3874 = vld [vmem:[%s1 + $0x628] sm:$0xff]
        %v3875 = vld [vmem:[%s1 + $0x630] sm:$0xff]
        %v3876 = vld [vmem:[%s1 + $0x638] sm:$0xff]
        %v3877 = vld [vmem:[%s1 + $0x640] sm:$0xff]
        %v3878 = vld [vmem:[%s1 + $0x648] sm:$0xff]
        %v3879 = vld [vmem:[%s1 + $0x650] sm:$0xff]
        %v3880 = vld [vmem:[%s1 + $0x658] sm:$0xff]
        %v3881 = vld [vmem:[%s1 + $0x660] sm:$0xff]
        %v3882 = vld [vmem:[%s1 + $0x668] sm:$0xff]
        %v3883 = vld [vmem:[%s1 + $0x670] sm:$0xff]
        %v3884 = vld [vmem:[%s1 + $0x678] sm:$0xff]
        %v3885 = vld [vmem:[%s1 + $0x680] sm:$0xff]
        %v3886 = vld [vmem:[%s1 + $0x688] sm:$0xff]
        %v3887 = vld [vmem:[%s1 + $0x690] sm:$0xff]
        %v3888 = vld [vmem:[%s1 + $0x698] sm:$0xff]
        %v3889 = vld [vmem:[%s1 + $0x6a0] sm:$0xff]
        %v3890 = vld [vmem:[%s1 + $0x6a8] sm:$0xff]
        %v3891 = vld [vmem:[%s1 + $0x6b0] sm:$0xff]
        %v3892 = vld [vmem:[%s1 + $0x6b8] sm:$0xff]
        %v3893 = vld [vmem:[%s1 + $0x6c0] sm:$0xff]
        %v3894 = vld [vmem:[%s1 + $0x6c8] sm:$0x1]
        %v3895 = vsel %vm1088, %v3858, 0.0
        %3896 = vadd.xlane.f32.xlu0 %v3895
        %v3897 = vpop.xlane.xlu0 %3896
        %v3898 = vmul.f32 %v3897, %v1098
        %v3899 = vsub.f32 %v3858, %v3898
        %v3900 = vmul.f32 %v3899, %v3899
        %v3901 = vsel %vm1088, %v3900, 0.0
        %3902 = vadd.xlane.f32.xlu0 %v3901
        %v3903 = vpop.xlane.xlu0 %3902
        %v3904 = vmul.f32 %v3903, %v1098
        %v3905 = vadd.f32 %v3904, 1e-05
        %v3906 = vrsqrt.pop %v3905
        %v3907 = vmul.f32 %v3906, %v3905
        %v3908 = vmul.f32 %v3907, %v3906
        %v3909 = vmul.f32 0.5, %v3908
        %v3910 = vsub.f32 1.5, %v3909
        %v3911 = vmul.f32 %v3906, %v3910
        %vm3912 = vweird.f32 %v3905
        %vm3913 = vweird.f32 %v3906
        %vm3914 = vmor %vm3912, %vm3913
        %v3915 = vsel %vm3914, %v3906, %v3911
        %v3916 = vmul.f32 %v3899, %v3915
        %v3917 = vperm.slane %v3860, 0
        %v3918 = vmul.f32 %v3916, %v3917
        %v3919 = vperm.slane %v3861, 0
        %v3920 = vadd.f32 %v3918, %v3919
        %v3922 = vperm.slane %v3873, 0
        %v3923 = vperm.slane %v3873, 1
        %v3927 = vsel %vm1041, %v3920, 0
        %3929 = vmatpush.msra.mxu0 0.0
        %3930 = vmatpush.msra.mxu0 0.0
        %3931 = vmatpush.msra.mxu0 0.0
        %3932 = vmatpush.msra.mxu0 0.0
        %3933 = vmatpush.msra.mxu0 0.0
        %3934 = vmatpush.msra.mxu0 0.0
        %3935 = vmatpush.msra.mxu0 0.0
        %3936 = vmatpush.msra.mxu0 0.0
        %3937 = vmatpush.msra.mxu0 0.0
        %3938 = vmatpush.msra.mxu0 0.0
        %3939 = vmatpush.msra.mxu0 0.0
        %3940 = vmatpush.msra.mxu0 %v3870
        %3941 = vmatpush.msra.mxu0 %v3868
        %3942 = vmatpush.msra.mxu0 %v3866
        %3943 = vmatpush.msra.mxu0 %v3864
        %3944 = vmatpush.msra.mxu0 %v3862
        %3945 = vmatmul.f32.gmra.mxu0 %v3927
        %v3946 = vpop.f32.mrf.mxu0
        %v3947 = vadd.f32 %v3922, %v3946
        %3948 = vdwg.mxu0
        %3949 = vmatpush.msra.mxu0 0.0
        %3950 = vmatpush.msra.mxu0 0.0
        %3951 = vmatpush.msra.mxu0 0.0
        %3952 = vmatpush.msra.mxu0 0.0
        %3953 = vmatpush.msra.mxu0 0.0
        %3954 = vmatpush.msra.mxu0 0.0
        %3955 = vmatpush.msra.mxu0 0.0
        %3956 = vmatpush.msra.mxu0 0.0
        %3957 = vmatpush.msra.mxu0 0.0
        %3958 = vmatpush.msra.mxu0 0.0
        %3959 = vmatpush.msra.mxu0 0.0
        %3960 = vmatpush.msra.mxu0 %v3871
        %3961 = vmatpush.msra.mxu0 %v3869
        %3962 = vmatpush.msra.mxu0 %v3867
        %3963 = vmatpush.msra.mxu0 %v3865
        %3964 = vmatpush.msra.mxu0 %v3863
        %3965 = vmatmul.f32.gmra.mxu0 %v3927
        %v3966 = vpop.f32.mrf.mxu0
        %v3967 = vadd.f32 %v3923, %v3966
        %3968 = vdwg.mxu0
        %v3969 = vmul.f32 %v3947, 0.5
        %v3970 = vmul.f32 %v3967, 0.5
        %v3971 = vmul.f32 %v3947, 0.70710677
        %v3972 = vmul.f32 %v3967, 0.70710677
        %vm3973 = vcmp.lt.f32.partialorder %v3971, 0.0
        %vm3974 = vcmp.lt.f32.partialorder %v3972, 0.0
        %v3975 = vsel %vm3973, -1.0, 1.0
        %v3976 = vsel %vm3974, -1.0, 1.0
        %v3977 = vand.u32 2147483647, %v3971
        %v3978 = vand.u32 2147483647, %v3972
        %v3979 = vmul.f32 %v3977, 0.3275911
        %v3980 = vmul.f32 %v3978, 0.3275911
        %v3981 = vadd.f32 %v3979, 1.0
        %v3982 = vadd.f32 %v3980, 1.0
        %v3983 = vrcp.pop %v3981
        %v3984 = vmul.f32 %v3981, %v3983
        %v3985 = vsub.f32 1.0, %v3984
        %v3986 = vmul.f32 %v3983, %v3985
        %v3987 = vadd.f32 %v3983, %v3986
        %vm3988 = vweird.f32 %v3981
        %vm3989 = vweird.f32 %v3983
        %vm3990 = vmor %vm3988, %vm3989
        %v3991 = vsel %vm3990, %v3983, %v3987
        %v3992 = vand.u32 2147483647, %v3981
        %vm3993 = vcmp.eq.f32.partialorder %v3992, 8.507059e+37
        %v3994 = vand.u32 %v3981, 2147483648
        %v3995 = vor.u32 1.1754944e-38, %v3994
        %v3996 = vsel %vm3993, %v3995, %v3991
        %v3997 = vmul.f32 1.0, %v3996
        %v3998 = vrcp.pop %v3982
        %v3999 = vmul.f32 %v3982, %v3998
        %v4000 = vsub.f32 1.0, %v3999
        %v4001 = vmul.f32 %v3998, %v4000
        %v4002 = vadd.f32 %v3998, %v4001
        %vm4003 = vweird.f32 %v3982
        %vm4004 = vweird.f32 %v3998
        %vm4005 = vmor %vm4003, %vm4004
        %v4006 = vsel %vm4005, %v3998, %v4002
        %v4007 = vand.u32 2147483647, %v3982
        %vm4008 = vcmp.eq.f32.partialorder %v4007, 8.507059e+37
        %v4009 = vand.u32 %v3982, 2147483648
        %v4010 = vor.u32 1.1754944e-38, %v4009
        %v4011 = vsel %vm4008, %v4010, %v4006
        %v4012 = vmul.f32 1.0, %v4011
        %v4013 = vmul.f32 %v3997, 1.0614054
        %v4014 = vmul.f32 %v4012, 1.0614054
        %v4015 = vadd.f32 %v4013, -1.4531521
        %v4016 = vadd.f32 %v4014, -1.4531521
        %v4017 = vmul.f32 %v3997, %v4015
        %v4018 = vmul.f32 %v4012, %v4016
        %v4019 = vadd.f32 %v4017, 1.4214138
        %v4020 = vadd.f32 %v4018, 1.4214138
        %v4021 = vmul.f32 %v3997, %v4019
        %v4022 = vmul.f32 %v4012, %v4020
        %v4023 = vadd.f32 %v4021, -0.28449672
        %v4024 = vadd.f32 %v4022, -0.28449672
        %v4025 = vmul.f32 %v3997, %v4023
        %v4026 = vmul.f32 %v4012, %v4024
        %v4027 = vadd.f32 %v4025, 0.2548296
        %v4028 = vadd.f32 %v4026, 0.2548296
        %v4029 = vmul.f32 %v3997, %v4027
        %v4030 = vmul.f32 %v4012, %v4028
        %v4031 = vsub.f32 0.0, %v3977
        %v4032 = vsub.f32 0.0, %v3978
        %v4033 = vmul.f32 %v4031, %v3977
        %v4034 = vmul.f32 %v4032, %v3978
        %v4035 = vmul.f32 %v4033, 1.442695
        %v4036 = vpow.pop %v4035
        %v4037 = vmul.f32 %v4034, 1.442695
        %v4038 = vpow.pop %v4037
        %v4039 = vmul.f32 %v4029, %v4036
        %v4040 = vmul.f32 %v4030, %v4038
        %v4041 = vsub.f32 1.0, %v4039
        %v4042 = vsub.f32 1.0, %v4040
        %v4043 = vmul.f32 %v3975, %v4041
        %v4044 = vmul.f32 %v3976, %v4042
        %v4045 = vadd.f32 %v4043, 1.0
        %v4046 = vadd.f32 %v4044, 1.0
        %v4047 = vmul.f32 %v3969, %v4045
        %v4048 = vmul.f32 %v3970, %v4046
        %v4050 = vsel %vm1963, %v4048, 0
        %4052 = vmatpush.msra.mxu0 %v3889
        %4053 = vmatpush.msra.mxu0 %v3888
        %4054 = vmatpush.msra.mxu0 %v3887
        %4055 = vmatpush.msra.mxu0 %v3886
        %4056 = vmatpush.msra.mxu0 %v3885
        %4057 = vmatpush.msra.mxu0 %v3884
        %4058 = vmatpush.msra.mxu0 %v3883
        %4059 = vmatpush.msra.mxu0 %v3882
        %4060 = vmatpush.msra.mxu0 %v3881
        %4061 = vmatpush.msra.mxu0 %v3880
        %4062 = vmatpush.msra.mxu0 %v3879
        %4063 = vmatpush.msra.mxu0 %v3878
        %4064 = vmatpush.msra.mxu0 %v3877
        %4065 = vmatpush.msra.mxu0 %v3876
        %4066 = vmatpush.msra.mxu0 %v3875
        %4067 = vmatpush.msra.mxu0 %v3874
        %4068 = vmatmul.f32.gmra.mxu0 %v4047
        %v4069 = vpop.f32.mrf.mxu0
        %v4070 = vadd.f32 0.0, %v4069
        %4071 = vdwg.mxu0
        %4072 = vmatpush.msra.mxu0 0.0
        %4073 = vmatpush.msra.mxu0 0.0
        %4074 = vmatpush.msra.mxu0 0.0
        %4075 = vmatpush.msra.mxu0 0.0
        %4076 = vmatpush.msra.mxu0 0.0
        %4077 = vmatpush.msra.mxu0 0.0
        %4078 = vmatpush.msra.mxu0 0.0
        %4079 = vmatpush.msra.mxu0 0.0
        %4080 = vmatpush.msra.mxu0 0.0
        %4081 = vmatpush.msra.mxu0 0.0
        %4082 = vmatpush.msra.mxu0 0.0
        %4083 = vmatpush.msra.mxu0 0.0
        %4084 = vmatpush.msra.mxu0 %v3893
        %4085 = vmatpush.msra.mxu0 %v3892
        %4086 = vmatpush.msra.mxu0 %v3891
        %4087 = vmatpush.msra.mxu0 %v3890
        %4088 = vmatmul.f32.gmra.mxu0 %v4050
        %v4089 = vpop.f32.mrf.mxu0
        %v4090 = vadd.f32 %v4070, %v4089
        %4091 = vdwg.mxu0
        %v4092 = vadd.f32 %v3858, %v4090
        %v4093 = vperm.slane %v3894, 0
        %v4094 = vadd.f32 %v4092, %v4093
        %v4096 = vrot.slane %v4094, 1
        %v4097 = vrot.slane %v4094, 2
        %v4098 = vld [vmem:[%s3] sm:$0xff]
        %v4099 = vld [vmem:[%s3 + $0x8] sm:$0xff]
        %v4100 = vld [vmem:[%s3 + $0x10] sm:$0xff]
        %v4101 = vld [vmem:[%s3 + $0x18] sm:$0xff]
        %v4102 = vld [vmem:[%s3 + $0x20] sm:$0xff]
        %v4103 = vld [vmem:[%s3 + $0x28] sm:$0xff]
        %v4104 = vld [vmem:[%s3 + $0x30] sm:$0xff]
        %v4105 = vld [vmem:[%s3 + $0x38] sm:$0xff]
        %v4106 = vld [vmem:[%s3 + $0x40] sm:$0xff]
        %v4107 = vld [vmem:[%s3 + $0x48] sm:$0xff]
        %v4108 = vld [vmem:[%s3 + $0x50] sm:$0xff]
        %v4109 = vld [vmem:[%s3 + $0x58] sm:$0xff]
        %v4110 = vld [vmem:[%s3 + $0x60] sm:$0xff]
        %v4111 = vld [vmem:[%s3 + $0x68] sm:$0xff]
        %v4112 = vld [vmem:[%s3 + $0x70] sm:$0xff]
        %v4113 = vld [vmem:[%s3 + $0x78] sm:$0xff]
        %v4114 = vld [vmem:[%s3 + $0x80] sm:$0xff]
        %v4115 = vld [vmem:[%s3 + $0x88] sm:$0xff]
        %v4116 = vld [vmem:[%s3 + $0x90] sm:$0xff]
        %v4117 = vld [vmem:[%s3 + $0x98] sm:$0xff]
        %v4118 = vld [vmem:[%s3 + $0xa0] sm:$0xff]
        %v4119 = vld [vmem:[%s3 + $0xa8] sm:$0xff]
        %v4120 = vld [vmem:[%s3 + $0xb0] sm:$0xff]
        %v4121 = vld [vmem:[%s3 + $0xb8] sm:$0xff]
        %v4122 = vld [vmem:[%s3 + $0xc0] sm:$0xff]
        %v4123 = vld [vmem:[%s3 + $0xc8] sm:$0xff]
        %v4124 = vld [vmem:[%s3 + $0xd0] sm:$0xff]
        %v4125 = vld [vmem:[%s3 + $0xd8] sm:$0xff]
        %v4126 = vld [vmem:[%s3 + $0xe0] sm:$0xff]
        %v4127 = vld [vmem:[%s3 + $0xe8] sm:$0xff]
        %v4128 = vsel %vm1041, %v4094, 0
        %4130 = vmatpush.msra.mxu0 0.0
        %4131 = vmatpush.msra.mxu0 0.0
        %4132 = vmatpush.msra.mxu0 0.0
        %4133 = vmatpush.msra.mxu0 0.0
        %4134 = vmatpush.msra.mxu0 0.0
        %4135 = vmatpush.msra.mxu0 0.0
        %4136 = vmatpush.msra.mxu0 0.0
        %4137 = vmatpush.msra.mxu0 0.0
        %4138 = vmatpush.msra.mxu0 0.0
        %4139 = vmatpush.msra.mxu0 0.0
        %4140 = vmatpush.msra.mxu0 0.0
        %4141 = vmatpush.msra.mxu0 %v4106
        %4142 = vmatpush.msra.mxu0 %v4104
        %4143 = vmatpush.msra.mxu0 %v4102
        %4144 = vmatpush.msra.mxu0 %v4100
        %4145 = vmatpush.msra.mxu0 %v4098
        %4146 = vmatmul.f32.gmra.mxu0 %v4128
        %v4147 = vpop.f32.mrf.mxu0
        %v4148 = vadd.f32 0.0, %v4147
        %4149 = vdwg.mxu0
        %4150 = vmatpush.msra.mxu0 0.0
        %4151 = vmatpush.msra.mxu0 0.0
        %4152 = vmatpush.msra.mxu0 0.0
        %4153 = vmatpush.msra.mxu0 0.0
        %4154 = vmatpush.msra.mxu0 0.0
        %4155 = vmatpush.msra.mxu0 0.0
        %4156 = vmatpush.msra.mxu0 0.0
        %4157 = vmatpush.msra.mxu0 0.0
        %4158 = vmatpush.msra.mxu0 0.0
        %4159 = vmatpush.msra.mxu0 0.0
        %4160 = vmatpush.msra.mxu0 0.0
        %4161 = vmatpush.msra.mxu0 %v4107
        %4162 = vmatpush.msra.mxu0 %v4105
        %4163 = vmatpush.msra.mxu0 %v4103
        %4164 = vmatpush.msra.mxu0 %v4101
        %4165 = vmatpush.msra.mxu0 %v4099
        %4166 = vmatmul.f32.gmra.mxu0 %v4128
        %v4167 = vpop.f32.mrf.mxu0
        %v4168 = vadd.f32 0.0, %v4167
        %4169 = vdwg.mxu0
        %v4170 = vsel %vm1041, %v4096, 0
        %4172 = vmatpush.msra.mxu0 0.0
        %4173 = vmatpush.msra.mxu0 0.0
        %4174 = vmatpush.msra.mxu0 0.0
        %4175 = vmatpush.msra.mxu0 0.0
        %4176 = vmatpush.msra.mxu0 0.0
        %4177 = vmatpush.msra.mxu0 0.0
        %4178 = vmatpush.msra.mxu0 0.0
        %4179 = vmatpush.msra.mxu0 0.0
        %4180 = vmatpush.msra.mxu0 0.0
        %4181 = vmatpush.msra.mxu0 0.0
        %4182 = vmatpush.msra.mxu0 0.0
        %4183 = vmatpush.msra.mxu0 %v4116
        %4184 = vmatpush.msra.mxu0 %v4114
        %4185 = vmatpush.msra.mxu0 %v4112
        %4186 = vmatpush.msra.mxu0 %v4110
        %4187 = vmatpush.msra.mxu0 %v4108
        %4188 = vmatmul.f32.gmra.mxu0 %v4170
        %v4189 = vpop.f32.mrf.mxu0
        %v4190 = vadd.f32 0.0, %v4189
        %4191 = vdwg.mxu0
        %4192 = vmatpush.msra.mxu0 0.0
        %4193 = vmatpush.msra.mxu0 0.0
        %4194 = vmatpush.msra.mxu0 0.0
        %4195 = vmatpush.msra.mxu0 0.0
        %4196 = vmatpush.msra.mxu0 0.0
        %4197 = vmatpush.msra.mxu0 0.0
        %4198 = vmatpush.msra.mxu0 0.0
        %4199 = vmatpush.msra.mxu0 0.0
        %4200 = vmatpush.msra.mxu0 0.0
        %4201 = vmatpush.msra.mxu0 0.0
        %4202 = vmatpush.msra.mxu0 0.0
        %4203 = vmatpush.msra.mxu0 %v4117
        %4204 = vmatpush.msra.mxu0 %v4115
        %4205 = vmatpush.msra.mxu0 %v4113
        %4206 = vmatpush.msra.mxu0 %v4111
        %4207 = vmatpush.msra.mxu0 %v4109
        %4208 = vmatmul.f32.gmra.mxu0 %v4170
        %v4209 = vpop.f32.mrf.mxu0
        %v4210 = vadd.f32 0.0, %v4209
        %4211 = vdwg.mxu0
        %v4212 = vsel %vm1041, %v4097, 0
        %4214 = vmatpush.msra.mxu0 0.0
        %4215 = vmatpush.msra.mxu0 0.0
        %4216 = vmatpush.msra.mxu0 0.0
        %4217 = vmatpush.msra.mxu0 0.0
        %4218 = vmatpush.msra.mxu0 0.0
        %4219 = vmatpush.msra.mxu0 0.0
        %4220 = vmatpush.msra.mxu0 0.0
        %4221 = vmatpush.msra.mxu0 0.0
        %4222 = vmatpush.msra.mxu0 0.0
        %4223 = vmatpush.msra.mxu0 0.0
        %4224 = vmatpush.msra.mxu0 0.0
        %4225 = vmatpush.msra.mxu0 %v4126
        %4226 = vmatpush.msra.mxu0 %v4124
        %4227 = vmatpush.msra.mxu0 %v4122
        %4228 = vmatpush.msra.mxu0 %v4120
        %4229 = vmatpush.msra.mxu0 %v4118
        %4230 = vmatmul.f32.gmra.mxu0 %v4212
        %v4231 = vpop.f32.mrf.mxu0
        %v4232 = vadd.f32 0.0, %v4231
        %4233 = vdwg.mxu0
        %4234 = vmatpush.msra.mxu0 0.0
        %4235 = vmatpush.msra.mxu0 0.0
        %4236 = vmatpush.msra.mxu0 0.0
        %4237 = vmatpush.msra.mxu0 0.0
        %4238 = vmatpush.msra.mxu0 0.0
        %4239 = vmatpush.msra.mxu0 0.0
        %4240 = vmatpush.msra.mxu0 0.0
        %4241 = vmatpush.msra.mxu0 0.0
        %4242 = vmatpush.msra.mxu0 0.0
        %4243 = vmatpush.msra.mxu0 0.0
        %4244 = vmatpush.msra.mxu0 0.0
        %4245 = vmatpush.msra.mxu0 %v4127
        %4246 = vmatpush.msra.mxu0 %v4125
        %4247 = vmatpush.msra.mxu0 %v4123
        %4248 = vmatpush.msra.mxu0 %v4121
        %4249 = vmatpush.msra.mxu0 %v4119
        %4250 = vmatmul.f32.gmra.mxu0 %v4212
        %v4251 = vpop.f32.mrf.mxu0
        %v4252 = vadd.f32 0.0, %v4251
        %4253 = vdwg.mxu0
        %vm4254 = vcmask 1040384
        %v4255 = vsel %vm4254, %v4148, 0.0
        %v4256 = vsel %vm4254, %v4190, 0.0
        %v4257 = vadd.f32 %v4255, %v4256
        %v4258 = vsel %vm4254, %v4232, 0.0
        %v4259 = vadd.f32 %v4257, %v4258
        %v4260 = vsel %vm4254, %v4168, 0.0
        %v4261 = vsel %vm4254, %v4210, 0.0
        %v4262 = vadd.f32 %v4260, %v4261
        %v4263 = vsel %vm4254, %v4252, 0.0
        %v4264 = vadd.f32 %v4262, %v4263
        %s4265 = scalar_lea.vmem %s2, 320
        %v4266 = vld [vmem:[%s4265] ss:$8 sm:$0x3]
        %v4268 = vperm.slane %v4266, 0
        %v4269 = vperm.slane %v4266, 1
        %v4272 = vadd.f32 %v4259, %v4268
        %v4273 = vadd.f32 %v4264, %v4269
        %vm4274 = vcmp.gt.f32.partialorder %v4272, 0.0
        %vm4275 = vcmp.gt.f32.partialorder %v4273, 0.0
        %v4276 = vmul.f32 %v4272, 1.442695
        %v4277 = vpow.pop %v4276
        %v4278 = vmul.f32 %v4273, 1.442695
        %v4279 = vpow.pop %v4278
        %v4280 = vsub.f32 %v4277, 1.0
        %v4281 = vsub.f32 %v4279, 1.0
        %v4282 = vsel %vm4274, %v4272, %v4280
        %v4283 = vsel %vm4275, %v4273, %v4281
        %v4284 = vld [vmem:[%s1 + $0x6d8] sm:$0xff]
        %v4285 = vld [vmem:[%s1 + $0x6e0] sm:$0xff]
        %v4286 = vld [vmem:[%s1 + $0x6e8] sm:$0xff]
        %v4287 = vld [vmem:[%s1 + $0x6f0] sm:$0xff]
        %v4288 = vld [vmem:[%s1 + $0x6f8] sm:$0xff]
        %v4289 = vld [vmem:[%s1 + $0x700] sm:$0xff]
        %v4290 = vld [vmem:[%s1 + $0x708] sm:$0xff]
        %v4291 = vld [vmem:[%s1 + $0x710] sm:$0xff]
        %v4292 = vld [vmem:[%s1 + $0x718] sm:$0xff]
        %v4293 = vld [vmem:[%s1 + $0x720] sm:$0xff]
        %v4294 = vld [vmem:[%s1 + $0x728] sm:$0xff]
        %v4295 = vld [vmem:[%s1 + $0x730] sm:$0xff]
        %v4296 = vld [vmem:[%s1 + $0x738] sm:$0xff]
        %v4297 = vld [vmem:[%s1 + $0x740] sm:$0xff]
        %v4298 = vld [vmem:[%s1 + $0x748] sm:$0xff]
        %v4299 = vld [vmem:[%s1 + $0x750] sm:$0xff]
        %v4300 = vld [vmem:[%s1 + $0x758] sm:$0xff]
        %v4301 = vld [vmem:[%s1 + $0x760] sm:$0xff]
        %v4302 = vld [vmem:[%s1 + $0x768] sm:$0xff]
        %v4303 = vld [vmem:[%s1 + $0x770] sm:$0xff]
        %v4304 = vld [vmem:[%s1 + $0x778] sm:$0xff]
        %v4305 = vld [vmem:[%s1 + $0x780] sm:$0xff]
        %v4306 = vld [vmem:[%s1 + $0x788] sm:$0xff]
        %v4307 = vld [vmem:[%s1 + $0x790] sm:$0xff]
        %v4308 = vld [vmem:[%s1 + $0x798] sm:$0xff]
        %v4309 = vld [vmem:[%s1 + $0x7a0] sm:$0xff]
        %v4310 = vld [vmem:[%s1 + $0x7a8] sm:$0xff]
        %v4311 = vld [vmem:[%s1 + $0x7b0] sm:$0xff]
        %v4312 = vld [vmem:[%s1 + $0x7b8] sm:$0xff]
        %v4313 = vld [vmem:[%s1 + $0x7c0] sm:$0xff]
        %v4314 = vld [vmem:[%s1 + $0x7c8] sm:$0xff]
        %v4315 = vld [vmem:[%s1 + $0x7d0] sm:$0xff]
        %v4316 = vld [vmem:[%s1 + $0x7d8] sm:$0x1]
        %4317 = vmatpush.msra.mxu0 %v4299
        %4318 = vmatpush.msra.mxu0 %v4298
        %4319 = vmatpush.msra.mxu0 %v4297
        %4320 = vmatpush.msra.mxu0 %v4296
        %4321 = vmatpush.msra.mxu0 %v4295
        %4322 = vmatpush.msra.mxu0 %v4294
        %4323 = vmatpush.msra.mxu0 %v4293
        %4324 = vmatpush.msra.mxu0 %v4292
        %4325 = vmatpush.msra.mxu0 %v4291
        %4326 = vmatpush.msra.mxu0 %v4290
        %4327 = vmatpush.msra.mxu0 %v4289
        %4328 = vmatpush.msra.mxu0 %v4288
        %4329 = vmatpush.msra.mxu0 %v4287
        %4330 = vmatpush.msra.mxu0 %v4286
        %4331 = vmatpush.msra.mxu0 %v4285
        %4332 = vmatpush.msra.mxu0 %v4284
        %4333 = vmatmul.f32.gmra.mxu0 %v4282
        %v4334 = vpop.f32.mrf.mxu0
        %v4335 = vadd.f32 %v4316, %v4334
        %4336 = vdwg.mxu0
        %4337 = vmatpush.msra.mxu0 %v4315
        %4338 = vmatpush.msra.mxu0 %v4314
        %4339 = vmatpush.msra.mxu0 %v4313
        %4340 = vmatpush.msra.mxu0 %v4312
        %4341 = vmatpush.msra.mxu0 %v4311
        %4342 = vmatpush.msra.mxu0 %v4310
        %4343 = vmatpush.msra.mxu0 %v4309
        %4344 = vmatpush.msra.mxu0 %v4308
        %4345 = vmatpush.msra.mxu0 %v4307
        %4346 = vmatpush.msra.mxu0 %v4306
        %4347 = vmatpush.msra.mxu0 %v4305
        %4348 = vmatpush.msra.mxu0 %v4304
        %4349 = vmatpush.msra.mxu0 %v4303
        %4350 = vmatpush.msra.mxu0 %v4302
        %4351 = vmatpush.msra.mxu0 %v4301
        %4352 = vmatpush.msra.mxu0 %v4300
        %4353 = vmatmul.f32.gmra.mxu0 %v4283
        %v4354 = vpop.f32.mrf.mxu0
        %v4355 = vadd.f32 %v4335, %v4354
        %4356 = vdwg.mxu0
        %vm4357 = vcmp.gt.f32.partialorder %v4355, 0.0
        %v4358 = vmul.f32 %v4355, 1.442695
        %v4359 = vpow.pop %v4358
        %v4360 = vsub.f32 %v4359, 1.0
        %v4361 = vsel %vm4357, %v4355, %v4360
        %v4362 = vld [vmem:[%s1 + $0x7e0] sm:$0xff]
        %v4363 = vld [vmem:[%s1 + $0x7e8] sm:$0xff]
        %v4364 = vld [vmem:[%s1 + $0x7f0] sm:$0xff]
        %v4365 = vld [vmem:[%s1 + $0x7f8] sm:$0xff]
        %v4366 = vld [vmem:[%s1 + $0x800] sm:$0xff]
        %v4367 = vld [vmem:[%s1 + $0x808] sm:$0xff]
        %v4368 = vld [vmem:[%s1 + $0x810] sm:$0xff]
        %v4369 = vld [vmem:[%s1 + $0x818] sm:$0xff]
        %v4370 = vld [vmem:[%s1 + $0x820] sm:$0x1]
        %vm4371 = vcmask 523264
        %v4373 = vsel %vm4371, %v4361, 0
        %4375 = vmatpush.msra.mxu0 0.0
        %4376 = vmatpush.msra.mxu0 0.0
        %4377 = vmatpush.msra.mxu0 0.0
        %4378 = vmatpush.msra.mxu0 0.0
        %4379 = vmatpush.msra.mxu0 0.0
        %4380 = vmatpush.msra.mxu0 0.0
        %4381 = vmatpush.msra.mxu0 0.0
        %4382 = vmatpush.msra.mxu0 0.0
        %4383 = vmatpush.msra.mxu0 %v4369
        %4384 = vmatpush.msra.mxu0 %v4368
        %4385 = vmatpush.msra.mxu0 %v4367
        %4386 = vmatpush.msra.mxu0 %v4366
        %4387 = vmatpush.msra.mxu0 %v4365
        %4388 = vmatpush.msra.mxu0 %v4364
        %4389 = vmatpush.msra.mxu0 %v4363
        %4390 = vmatpush.msra.mxu0 %v4362
        %4391 = vmatmul.f32.gmra.mxu0 %v4373
        %v4392 = vpop.f32.mrf.mxu0
        %v4393 = vadd.f32 %v4370, %v4392
        %4394 = vdwg.mxu0
        %4395 = vst [vmem:[%s189] sm:$0x1] %v4393
        %s4396 = sand.u32 %s115, 1
        %s4397 = scalar_lea.sflag [#allocation3], %s4396
        %s4398 = sand.u32 %s115, 1
        %s4399 = scalar_lea.vmem [#allocation2], %s4398
        // Predicated region
        $region37: #{forward.1} parent=35 // pred_check
          %p4400 = pneg %p125
        $region38: #{forward.1} parent=35 // pred_check_branch
          %4402 = sbr.rel (%p4400) target = $region40
        $region39: #{forward.1} parent=35 // pred_region
          %4404 = vsyncadd %s4397, 0
          %s4405 = scalar_lea.hbm %s4, %s18
          %s4407 = sshll.u32 %s4399, 4
          %s4408 = int_to_ptr.vmem [resolvable:$true] %s4407
          %s4409 = sshll.u32 %s4405, 4
          %s4410 = int_to_ptr.hbm [resolvable:$true] %s4409
          %4412 = dma.vmem_to_hbm [thread:$0]  %s4408, 16, %s4410, %s4397
        $region40: #{forward.1} parent=35 // pred_fallthru
          _
      $region36: #{forward.1} parent=5 // pred_fallthru
        _
      %p4413 = scmp.le.s32.totalorder 2, %s13
      // Predicated region
      $region41: #{forward.1} parent=5 // pred_check
        %p4414 = pneg %p4413
      $region42: #{forward.1} parent=5 // pred_check_branch
        %4416 = sbr.rel (%p4414) target = $region44
      $region43: #{forward.1} parent=5 // pred_region
        %s4417 = ssub.s32 %s13, 2
        // Predicated region
        $region45: #{forward.1} parent=43 // pred_check
          %p4418 = pneg %p131
        $region46: #{forward.1} parent=43 // pred_check_branch
          %4420 = sbr.rel (%p4418) target = $region48
        $region47: #{forward.1} parent=43 // pred_region
          %s4421 = sand.u32 %s116, 1
          %s4422 = scalar_lea.sflag [#allocation3], %s4421
          %s4423 = sand.u32 %s116, 1
          %s4424 = scalar_lea.vmem [#allocation2], %s4423
          %4426 = dma.done %s4422, 16
        $region48: #{forward.1} parent=43 // pred_fallthru
          _
      $region44: #{forward.1} parent=5 // pred_fallthru
        _
    $region6: #{forward.1} parent=1 // loop_footer
      %s17 = sadd.s32 1, %s13
    $region7: #{forward.1} parent=1 // loop_footer_branch
      %12 = sbr.rel target = $region3
    $region8: #{forward.1} parent=1 // loop_exit
      _
    %4427 = vsyncpa [#allocation3], 1
    %s4428 = scalar_lea.sflag [#allocation3], 1
    %4429 = vsyncpa %s4428, 1

</llo_original>
